<compile_context>
chip_gen: v7x
topology: tpu7x:2x2x1
jax: 0.10.0
libtpu: 0.0.40
codegen_flags: <defaults>
</compile_context>

<pallas_src>
import functools
import math

import jax
import jax.numpy as jnp
from jax.experimental import pallas as pl
from jax.experimental.pallas import tpu as pltpu


def _cssim_chunk_kernel(a_ref, b_ref, x_ref, y_ref, out_ref, *,
                        c1, c2, bc, h, w, h_out, w_out, nc, need_mask):
    """One chunk of BC images per grid step; writes this chunk's SSIM-map sum."""
    A = a_ref[...]                              # (H_out, H)  f32
    B = b_ref[...]                              # (W, W_out)  f32
    x = x_ref[...].astype(jnp.float32)          # (BC*H, W)
    y = y_ref[...].astype(jnp.float32)          # (BC*H, W)

    q = 5 * bc
    # Stack the five quantities along the sublane/row axis (rows are multiples
    # of 8 because BC*H % 8 == 0), then blur along W with ONE big matmul.
    P = jnp.concatenate([x, y, x * x, y * y, x * y], axis=0)      # (5*BC*H, W)
    T = jnp.dot(P, B, preferred_element_type=jnp.float32)         # (5*BC*H, W_out)

    # Blur along H: batched matmul over the 5*BC stacked maps.
    T3 = T.reshape(q, h, w_out)                                   # (Q, H, W_out)
    A_b = jnp.broadcast_to(A[None, :, :], (q, h_out, h))          # (Q, H_out, H)
    S = jnp.einsum('qoh,qhw->qow', A_b, T3,
                   preferred_element_type=jnp.float32)            # (Q, H_out, W_out)

    mu_x = S[0 * bc:1 * bc]
    mu_y = S[1 * bc:2 * bc]
    m_xx = S[2 * bc:3 * bc]
    m_yy = S[3 * bc:4 * bc]
    m_xy = S[4 * bc:5 * bc]

    var_x = m_xx - mu_x * mu_x
    var_y = m_yy - mu_y * mu_y
    cov_xy = m_xy - mu_x * mu_y

    num = (2.0 * mu_x * mu_y + c1) * (2.0 * cov_xy + c2)
    den = (mu_x * mu_x + mu_y * mu_y + c1) * (var_x + var_y + c2)
    ssim = num * pl.reciprocal(den)             # exact reciprocal (approx=False)

    if need_mask:
        # Mask images that are zero-padding of the last chunk (their SSIM is
        # exactly 1 and would bias the mean).
        i = pl.program_id(0)
        rows = jax.lax.broadcasted_iota(jnp.int32, (bc, h_out), 0)
        valid = (rows + i * bc) < nc                              # (BC, H_out)
        ssim = jnp.where(valid[:, :, None], ssim, 0.0)

    partial = jnp.sum(jnp.sum(ssim, axis=0))                      # scalar f32
    out_ref[...] = jnp.zeros((1, 1, 1), jnp.float32) + partial


def _gaussian_band_matrix(out_dim, in_dim, g):
    """Toeplitz band matrix M (out_dim, in_dim) with M[i, i + k] = g[k]."""
    fs = g.shape[0]
    rows = jnp.arange(out_dim)[:, None]
    cols = jnp.arange(in_dim)[None, :]
    off = cols - rows
    valid = (off >= 0) & (off < fs)
    return jnp.where(valid, g[jnp.clip(off, 0, fs - 1)], 0.0).astype(jnp.float32)


def _pick_chunk(nc, h, w, h_out, w_out, esize):
    """Pick images-per-grid-step BC so BC*H % 8 == 0 and VMEM stays bounded."""
    m = 8 // math.gcd(h, 8)                 # smallest step keeping BC*H % 8 == 0

    def est(bc):
        q = 5 * bc
        return (2 * 2 * bc * h * w * esize          # x, y blocks (double-buffered)
                + q * h * w * 4                      # stacked products P
                + q * h * w_out * 4                  # T
                + q * h_out * h * 4                  # broadcast A
                + 3 * q * h_out * w_out * 4)         # S + elementwise temps

    cap = m * pl.cdiv(nc, m)                # don't pad beyond one chunk
    cap = max(m, min(cap, 16 * m))          # bound stage-2 batch unroll
    budget = 24 * 1024 * 1024               # portable to v7x (64 MiB physical)
    bc = m
    cand = m
    while cand <= cap and est(cand) <= budget:
        bc = cand
        cand += m
    return bc, est(bc)


def cssim(x, y, *, max_val=1.0, filter_size=11, k1=0.01, k2=0.03, sigma=1.5,
          reduction="mean"):
    """CSSIM = 1 - SSIM(x, y).  x, y: (N, C, H, W) arrays (NCHW)."""
    assert x.shape == y.shape and x.ndim == 4
    N, C, H, W = x.shape
    fs = filter_size
    H_out, W_out = H - fs + 1, W - fs + 1
    assert H_out > 0 and W_out > 0, "spatial dims must exceed filter_size - 1"
    NC = N * C

    # --- glue: Gaussian window + separable band matrices (plain JAX) ---
    coords = jnp.arange(fs, dtype=jnp.float32) - (fs // 2)
    g = jnp.exp(-(coords ** 2) / (2.0 * sigma ** 2))
    g = g / jnp.sum(g)
    A = _gaussian_band_matrix(H_out, H, g)              # (H_out, H)
    B = _gaussian_band_matrix(W_out, W, g).T            # (W, W_out)

    esize = jnp.dtype(x.dtype).itemsize
    BC, vmem_est = _pick_chunk(NC, H, W, H_out, W_out, esize)
    NC_pad = pl.cdiv(NC, BC) * BC
    G = NC_pad // BC
    need_mask = NC_pad != NC

    # Row-stacked layout (NC*H, W): pure reshape, no HBM transpose, native dtype.
    x2 = x.reshape(NC * H, W)
    y2 = y.reshape(NC * H, W)
    if need_mask:
        pad_rows = (NC_pad - NC) * H
        x2 = jnp.pad(x2, ((0, pad_rows), (0, 0)))
        y2 = jnp.pad(y2, ((0, pad_rows), (0, 0)))

    c1 = (k1 * max_val) ** 2
    c2 = (k2 * max_val) ** 2

    kernel = functools.partial(
        _cssim_chunk_kernel, c1=float(c1), c2=float(c2), bc=BC, h=H, w=W,
        h_out=H_out, w_out=W_out, nc=NC, need_mask=need_mask)

    flops_per_img = 2 * 5 * H * W * W_out + 2 * 5 * H_out * H * W_out \
        + 15 * H_out * W_out
    cost = pl.CostEstimate(
        flops=int(NC_pad * flops_per_img),
        transcendentals=int(NC_pad * H_out * W_out),
        bytes_accessed=int(2 * NC_pad * H * W * esize
                           + G * (H_out * H + W * W_out + 1) * 4))

    vmem_limit = int(max(32 * 1024 * 1024, min(48 * 1024 * 1024, 4 * vmem_est)))

    partials = pl.pallas_call(
        kernel,
        out_shape=jax.ShapeDtypeStruct((G, 1, 1), jnp.float32),
        grid_spec=pltpu.PrefetchScalarGridSpec(
            num_scalar_prefetch=0,
            grid=(G,),
            in_specs=[
                pl.BlockSpec((H_out, H), lambda i: (0, 0)),
                pl.BlockSpec((W, W_out), lambda i: (0, 0)),
                pl.BlockSpec((BC * H, W), lambda i: (i, 0)),
                pl.BlockSpec((BC * H, W), lambda i: (i, 0)),
            ],
            out_specs=pl.BlockSpec((1, 1, 1), lambda i: (i, 0, 0)),
        ),
        compiler_params=pltpu.CompilerParams(
            dimension_semantics=("parallel",),      # independent partials -> 2 TCs on v7x
            vmem_limit_bytes=vmem_limit),
        cost_estimate=cost,
    )(A, B, x2, y2)

    count = NC * H_out * W_out
    ssim_mean = jnp.sum(partials) / count
    if reduction == "mean":
        return 1.0 - ssim_mean
    # TODO(synk): 'sum'/'none' reductions of the original ssim_loss not exposed here.
    return 1.0 - ssim_mean


if __name__ == "__main__":
    key = jax.random.PRNGKey(0)
    k1_, k2_ = jax.random.split(key)
    N, C, H, W = 2, 4, 16, 16
    x = jax.random.uniform(k1_, (N, C, H, W), dtype=jnp.float32)
    y = jnp.clip(x + 0.05 * jax.random.normal(k2_, (N, C, H, W), dtype=jnp.float32),
                 0.0, 1.0)

    out = cssim(x, y, max_val=1.0)
    out = jax.block_until_ready(out)

    # sanity: result is a finite scalar in a plausible range for CSSIM
    assert out.shape == () and bool(jnp.isfinite(out))
    print("KERNEL_OK")
</pallas_src>

<mosaic_0001>
module attributes {stable_mosaic.version = 11 : i64} {
  func.func @_cssim_chunk_kernel(%arg0: i32, %arg1: memref<6x16xf32, #tpu.memory_space<vmem>>, %arg2: memref<16x6xf32, #tpu.memory_space<vmem>>, %arg3: memref<128x16xf32, #tpu.memory_space<vmem>>, %arg4: memref<128x16xf32, #tpu.memory_space<vmem>>, %arg5: memref<1x1x1xf32, #tpu.memory_space<vmem>>) attributes {dimension_semantics = [#tpu.dimension_semantics<parallel>], iteration_bounds = array<i64: 1>, scalar_prefetch = 0 : i64, scratch_operands = 0 : i64, tpu.core_type = #tpu.core_type<tc>, window_params = [{pipeline_mode = #tpu.pipeline_mode<synchronous>, transform_indices = @transform_0, window_bounds = array<i64: 6, 16>}, {pipeline_mode = #tpu.pipeline_mode<synchronous>, transform_indices = @transform_1, window_bounds = array<i64: 16, 6>}, {transform_indices = @transform_2, window_bounds = array<i64: 128, 16>}, {transform_indices = @transform_3, window_bounds = array<i64: 128, 16>}, {transform_indices = @transform_4, window_bounds = array<i64: 1, 1, 1>}]} {
    %c0 = arith.constant 0 : index
    %c0_0 = arith.constant 0 : index
    %0 = vector.load %arg1[%c0, %c0_0] : memref<6x16xf32, #tpu.memory_space<vmem>>, vector<6x16xf32>
    %c0_1 = arith.constant 0 : index
    %c0_2 = arith.constant 0 : index
    %1 = vector.load %arg2[%c0_1, %c0_2] : memref<16x6xf32, #tpu.memory_space<vmem>>, vector<16x6xf32>
    %c0_3 = arith.constant 0 : index
    %c0_4 = arith.constant 0 : index
    %2 = vector.load %arg3[%c0_3, %c0_4] : memref<128x16xf32, #tpu.memory_space<vmem>>, vector<128x16xf32>
    %c0_5 = arith.constant 0 : index
    %c0_6 = arith.constant 0 : index
    %3 = vector.load %arg4[%c0_5, %c0_6] : memref<128x16xf32, #tpu.memory_space<vmem>>, vector<128x16xf32>
    %4 = arith.mulf %2, %2 : vector<128x16xf32>
    %5 = arith.mulf %3, %3 : vector<128x16xf32>
    %6 = arith.mulf %2, %3 : vector<128x16xf32>
    %7 = tpu.concatenate %2, %3, %4, %5, %6 in 0 : vector<128x16xf32>, vector<128x16xf32>, vector<128x16xf32>, vector<128x16xf32>, vector<128x16xf32> -> vector<640x16xf32>
    %cst = arith.constant dense<0.000000e+00> : vector<640x6xf32>
    %8 = tpu.matmul %7, %1, %cst {dimension_numbers = #tpu.dot_dimension_numbers<[1], [0], [0], [1], [0, 0, 1, 1], [], []>} : vector<640x16xf32>, vector<16x6xf32>, vector<640x6xf32> -> vector<640x6xf32>
    %9 = vector.shape_cast %8 : vector<640x6xf32> to vector<40x16x6xf32>
    %10 = vector.shape_cast %0 : vector<6x16xf32> to vector<1x6x16xf32>
    %11 = vector.shape_cast %10 : vector<1x6x16xf32> to vector<1x6x16xf32>
    %12 = vector.broadcast %11 : vector<1x6x16xf32> to vector<40x6x16xf32>
    "tpu.trace_start"() <{level = 10 : i32, message = "qoh,qhw->qow"}> : () -> ()
    %cst_7 = arith.constant dense<0.000000e+00> : vector<40x6x6xf32>
    %13 = tpu.matmul %12, %9, %cst_7 {dimension_numbers = #tpu.dot_dimension_numbers<[2], [1], [1], [2], [0, 0, 0, 1, 1, 2], [0], [0]>} : vector<40x6x16xf32>, vector<40x16x6xf32>, vector<40x6x6xf32> -> vector<40x6x6xf32>
    "tpu.trace_stop"() : () -> ()
    %14 = vector.extract_strided_slice %13 {offsets = [0, 0, 0], sizes = [8, 6, 6], strides = [1, 1, 1]} : vector<40x6x6xf32> to vector<8x6x6xf32>
    %15 = vector.extract_strided_slice %13 {offsets = [8, 0, 0], sizes = [8, 6, 6], strides = [1, 1, 1]} : vector<40x6x6xf32> to vector<8x6x6xf32>
    %16 = vector.extract_strided_slice %13 {offsets = [16, 0, 0], sizes = [8, 6, 6], strides = [1, 1, 1]} : vector<40x6x6xf32> to vector<8x6x6xf32>
    %17 = vector.extract_strided_slice %13 {offsets = [24, 0, 0], sizes = [8, 6, 6], strides = [1, 1, 1]} : vector<40x6x6xf32> to vector<8x6x6xf32>
    %18 = vector.extract_strided_slice %13 {offsets = [32, 0, 0], sizes = [8, 6, 6], strides = [1, 1, 1]} : vector<40x6x6xf32> to vector<8x6x6xf32>
    %19 = arith.mulf %14, %14 : vector<8x6x6xf32>
    %20 = arith.subf %16, %19 : vector<8x6x6xf32>
    %21 = arith.mulf %15, %15 : vector<8x6x6xf32>
    %22 = arith.subf %17, %21 : vector<8x6x6xf32>
    %23 = arith.mulf %14, %15 : vector<8x6x6xf32>
    %24 = arith.subf %18, %23 : vector<8x6x6xf32>
    %cst_8 = arith.constant 2.000000e+00 : f32
    %25 = vector.broadcast %cst_8 : f32 to vector<8x6x6xf32>
    %26 = arith.mulf %25, %14 : vector<8x6x6xf32>
    %27 = arith.mulf %26, %15 : vector<8x6x6xf32>
    %cst_9 = arith.constant 9.99999974E-5 : f32
    %28 = vector.broadcast %cst_9 : f32 to vector<8x6x6xf32>
    %29 = arith.addf %27, %28 : vector<8x6x6xf32>
    %cst_10 = arith.constant 2.000000e+00 : f32
    %30 = vector.broadcast %cst_10 : f32 to vector<8x6x6xf32>
    %31 = arith.mulf %30, %24 : vector<8x6x6xf32>
    %cst_11 = arith.constant 8.99999984E-4 : f32
    %32 = vector.broadcast %cst_11 : f32 to vector<8x6x6xf32>
    %33 = arith.addf %31, %32 : vector<8x6x6xf32>
    %34 = arith.mulf %29, %33 : vector<8x6x6xf32>
    %35 = arith.mulf %14, %14 : vector<8x6x6xf32>
    %36 = arith.mulf %15, %15 : vector<8x6x6xf32>
    %37 = arith.addf %35, %36 : vector<8x6x6xf32>
    %cst_12 = arith.constant 9.99999974E-5 : f32
    %38 = vector.broadcast %cst_12 : f32 to vector<8x6x6xf32>
    %39 = arith.addf %37, %38 : vector<8x6x6xf32>
    %40 = arith.addf %20, %22 : vector<8x6x6xf32>
    %cst_13 = arith.constant 8.99999984E-4 : f32
    %41 = vector.broadcast %cst_13 : f32 to vector<8x6x6xf32>
    %42 = arith.addf %40, %41 : vector<8x6x6xf32>
    %43 = arith.mulf %39, %42 : vector<8x6x6xf32>
    %44 = tpu.reciprocal %43 : vector<8x6x6xf32> -> vector<8x6x6xf32>
    %45 = arith.mulf %34, %44 : vector<8x6x6xf32>
    %cst_14 = arith.constant dense<0.000000e+00> : vector<6x6xf32>
    %46 = vector.multi_reduction <add>, %45, %cst_14 [0] : vector<8x6x6xf32> to vector<6x6xf32>
    %47 = vector.shape_cast %46 : vector<6x6xf32> to vector<1x6x6xf32>
    %cst_15 = arith.constant dense<0.000000e+00> : vector<1xf32>
    %48 = vector.multi_reduction <add>, %47, %cst_15 [1, 2] : vector<1x6x6xf32> to vector<1xf32>
    %49 = vector.shape_cast %48 : vector<1xf32> to vector<1x1x1xf32>
    %50 = vector.extract %49[0, 0, 0] : f32 from vector<1x1x1xf32>
    %cst_16 = arith.constant 0.000000e+00 : f32
    %51 = vector.broadcast %cst_16 : f32 to vector<1x1x1xf32>
    %52 = vector.broadcast %50 : f32 to vector<1x1x1xf32>
    %53 = arith.addf %51, %52 : vector<1x1x1xf32>
    %c0_17 = arith.constant 0 : index
    %c0_18 = arith.constant 0 : index
    %c0_19 = arith.constant 0 : index
    %54 = vector.load %arg5[%c0_17, %c0_18, %c0_19] : memref<1x1x1xf32, #tpu.memory_space<vmem>>, vector<1x1x1xf32>
    tpu.vector_store %arg5[%c0_17, %c0_18, %c0_19], %53 {strides = array<i32>} : memref<1x1x1xf32, #tpu.memory_space<vmem>>, vector<1x1x1xf32>,
    return
  }
  func.func @transform_0(%arg0: i32) -> (i32, i32) {
    %c0_i32 = arith.constant 0 : i32
    %c0_i32_0 = arith.constant 0 : i32
    %c0_i32_1 = arith.constant 0 : i32
    return %c0_i32, %c0_i32_0 : i32, i32
  }
  func.func @transform_1(%arg0: i32) -> (i32, i32) {
    %c0_i32 = arith.constant 0 : i32
    %c0_i32_0 = arith.constant 0 : i32
    %c0_i32_1 = arith.constant 0 : i32
    return %c0_i32, %c0_i32_0 : i32, i32
  }
  func.func @transform_2(%arg0: i32) -> (i32, i32) {
    %c0_i32 = arith.constant 0 : i32
    %c0_i32_0 = arith.constant 0 : i32
    return %arg0, %c0_i32 : i32, i32
  }
  func.func @transform_3(%arg0: i32) -> (i32, i32) {
    %c0_i32 = arith.constant 0 : i32
    %c0_i32_0 = arith.constant 0 : i32
    return %arg0, %c0_i32 : i32, i32
  }
  func.func @transform_4(%arg0: i32) -> (i32, i32, i32) {
    %c0_i32 = arith.constant 0 : i32
    %c0_i32_0 = arith.constant 0 : i32
    %c0_i32_1 = arith.constant 0 : i32
    return %arg0, %c0_i32, %c0_i32_0 : i32, i32, i32
  }
}

</mosaic_0001>

<llo_original>
// kernel: tpu_custom_call.1
$region0: #{tpu_custom_call.1}
  #allocation0 [shape = 'u32[]', space=smem, size = 0x4, offset = 0x4, fixed_abs, tag = 'smem constant byte address 0x4 - core index']
  #allocation1 [shape = 'u32[144,128]{1,0:T(1,128)}', space=vmem, size = 0x12000, scoped, tag = 'internal scratch']
  %s0 = inlined_call_operand.vmem [shape: f32[6,16], index: 0, kind: input, shape index: {}]
  %s1 = inlined_call_operand.vmem [shape: f32[16,6], index: 1, kind: input, shape index: {}]
  %s2 = inlined_call_operand.vmem [shape: f32[128,16], index: 2, kind: input, shape index: {}]
  %s3 = inlined_call_operand.vmem [shape: f32[128,16], index: 3, kind: input, shape index: {}]
  %s4 = inlined_call_operand.hbm [shape: f32[1,1,1], index: 4, kind: output, shape index: {}]
  %s5 = sld [smem:[#allocation0]]
  $region26: #{tpu_custom_call.1} parent=0
    _
  %s7 = ssub.s32 1, %s5
  %s8 = scalar_select 0, %s7, %s5
  $region1: #{tpu_custom_call.1} parent=0
    #allocation2 [shape = 'u8[512]{0}', space=vmem, size = 0x400, scoped, tag = 'output window, operand 0, single buffered']
    #allocation3 [shape = 's32[1]{0}', space=sflag, size = 0x4, scoped, tag = 'scoped memory for tpu_custom_call.1']
    %9 = vsyncpa [#allocation3], 0
    // Predicated region
    $region2: #{tpu_custom_call.1} parent=1 // pred_check
      _
    $region3: #{tpu_custom_call.1} parent=1 // pred_check_branch
      %11 = sbr.rel (0) target = $region5
    $region4: #{tpu_custom_call.1} parent=1 // pred_region
      _
    $region5: #{tpu_custom_call.1} parent=1 // pred_fallthru
      _
    // Predicated region
    $region6: #{tpu_custom_call.1} parent=1 // pred_check
      _
    $region7: #{tpu_custom_call.1} parent=1 // pred_check_branch
      %13 = sbr.rel (0) target = $region9
    $region8: #{tpu_custom_call.1} parent=1 // pred_region
      _
    $region9: #{tpu_custom_call.1} parent=1 // pred_fallthru
      _
    // Predicated region
    $region10: #{tpu_custom_call.1} parent=1 // pred_check
      _
    $region11: #{tpu_custom_call.1} parent=1 // pred_check_branch
      %15 = sbr.rel (0) target = $region13
    $region12: #{tpu_custom_call.1} parent=1 // pred_region
      _
    $region13: #{tpu_custom_call.1} parent=1 // pred_fallthru
      _
    // Predicated region
    $region14: #{tpu_custom_call.1} parent=1 // pred_check
      _
    $region15: #{tpu_custom_call.1} parent=1 // pred_check_branch
      %17 = sbr.rel (0) target = $region17
    $region16: #{tpu_custom_call.1} parent=1 // pred_region
      _
    $region17: #{tpu_custom_call.1} parent=1 // pred_fallthru
      _
    %v18 = vld [vmem:[%s0] sm:$0x3f]
    %v19 = vld [vmem:[%s1] sm:$0xff]
    %v20 = vld [vmem:[%s1 + $0x8] sm:$0xff]
    %v21 = vld [vmem:[%s2] sm:$0xff]
    %v22 = vld [vmem:[%s2 + $0x8] sm:$0xff]
    %v23 = vld [vmem:[%s2 + $0x10] sm:$0xff]
    %v24 = vld [vmem:[%s2 + $0x18] sm:$0xff]
    %v25 = vld [vmem:[%s2 + $0x20] sm:$0xff]
    %v26 = vld [vmem:[%s2 + $0x28] sm:$0xff]
    %v27 = vld [vmem:[%s2 + $0x30] sm:$0xff]
    %v28 = vld [vmem:[%s2 + $0x38] sm:$0xff]
    %v29 = vld [vmem:[%s2 + $0x40] sm:$0xff]
    %v30 = vld [vmem:[%s2 + $0x48] sm:$0xff]
    %v31 = vld [vmem:[%s2 + $0x50] sm:$0xff]
    %v32 = vld [vmem:[%s2 + $0x58] sm:$0xff]
    %v33 = vld [vmem:[%s2 + $0x60] sm:$0xff]
    %v34 = vld [vmem:[%s2 + $0x68] sm:$0xff]
    %v35 = vld [vmem:[%s2 + $0x70] sm:$0xff]
    %v36 = vld [vmem:[%s2 + $0x78] sm:$0xff]
    %v37 = vld [vmem:[%s3] sm:$0xff]
    %v38 = vld [vmem:[%s3 + $0x8] sm:$0xff]
    %v39 = vld [vmem:[%s3 + $0x10] sm:$0xff]
    %v40 = vld [vmem:[%s3 + $0x18] sm:$0xff]
    %v41 = vld [vmem:[%s3 + $0x20] sm:$0xff]
    %v42 = vld [vmem:[%s3 + $0x28] sm:$0xff]
    %v43 = vld [vmem:[%s3 + $0x30] sm:$0xff]
    %v44 = vld [vmem:[%s3 + $0x38] sm:$0xff]
    %v45 = vld [vmem:[%s3 + $0x40] sm:$0xff]
    %v46 = vld [vmem:[%s3 + $0x48] sm:$0xff]
    %v47 = vld [vmem:[%s3 + $0x50] sm:$0xff]
    %v48 = vld [vmem:[%s3 + $0x58] sm:$0xff]
    %v49 = vld [vmem:[%s3 + $0x60] sm:$0xff]
    %v50 = vld [vmem:[%s3 + $0x68] sm:$0xff]
    %v51 = vld [vmem:[%s3 + $0x70] sm:$0xff]
    %v52 = vld [vmem:[%s3 + $0x78] sm:$0xff]
    %v53 = vmul.f32 %v21, %v21
    %v54 = vmul.f32 %v22, %v22
    %v55 = vmul.f32 %v23, %v23
    %v56 = vmul.f32 %v24, %v24
    %v57 = vmul.f32 %v25, %v25
    %v58 = vmul.f32 %v26, %v26
    %v59 = vmul.f32 %v27, %v27
    %v60 = vmul.f32 %v28, %v28
    %v61 = vmul.f32 %v29, %v29
    %v62 = vmul.f32 %v30, %v30
    %v63 = vmul.f32 %v31, %v31
    %v64 = vmul.f32 %v32, %v32
    %v65 = vmul.f32 %v33, %v33
    %v66 = vmul.f32 %v34, %v34
    %v67 = vmul.f32 %v35, %v35
    %v68 = vmul.f32 %v36, %v36
    %v69 = vmul.f32 %v37, %v37
    %v70 = vmul.f32 %v38, %v38
    %v71 = vmul.f32 %v39, %v39
    %v72 = vmul.f32 %v40, %v40
    %v73 = vmul.f32 %v41, %v41
    %v74 = vmul.f32 %v42, %v42
    %v75 = vmul.f32 %v43, %v43
    %v76 = vmul.f32 %v44, %v44
    %v77 = vmul.f32 %v45, %v45
    %v78 = vmul.f32 %v46, %v46
    %v79 = vmul.f32 %v47, %v47
    %v80 = vmul.f32 %v48, %v48
    %v81 = vmul.f32 %v49, %v49
    %v82 = vmul.f32 %v50, %v50
    %v83 = vmul.f32 %v51, %v51
    %v84 = vmul.f32 %v52, %v52
    %v85 = vmul.f32 %v21, %v37
    %v86 = vmul.f32 %v22, %v38
    %v87 = vmul.f32 %v23, %v39
    %v88 = vmul.f32 %v24, %v40
    %v89 = vmul.f32 %v25, %v41
    %v90 = vmul.f32 %v26, %v42
    %v91 = vmul.f32 %v27, %v43
    %v92 = vmul.f32 %v28, %v44
    %v93 = vmul.f32 %v29, %v45
    %v94 = vmul.f32 %v30, %v46
    %v95 = vmul.f32 %v31, %v47
    %v96 = vmul.f32 %v32, %v48
    %v97 = vmul.f32 %v33, %v49
    %v98 = vmul.f32 %v34, %v50
    %v99 = vmul.f32 %v35, %v51
    %v100 = vmul.f32 %v36, %v52
    %vm101 = vcmask 130048
    %v103 = vsel %vm101, %v21, 0
    %v106 = vsel %vm101, %v22, 0
    %v109 = vsel %vm101, %v23, 0
    %v112 = vsel %vm101, %v24, 0
    %v115 = vsel %vm101, %v25, 0
    %v118 = vsel %vm101, %v26, 0
    %v121 = vsel %vm101, %v27, 0
    %v124 = vsel %vm101, %v28, 0
    %v127 = vsel %vm101, %v29, 0
    %v130 = vsel %vm101, %v30, 0
    %v133 = vsel %vm101, %v31, 0
    %v136 = vsel %vm101, %v32, 0
    %v139 = vsel %vm101, %v33, 0
    %v142 = vsel %vm101, %v34, 0
    %v145 = vsel %vm101, %v35, 0
    %v148 = vsel %vm101, %v36, 0
    %v151 = vsel %vm101, %v37, 0
    %v154 = vsel %vm101, %v38, 0
    %v157 = vsel %vm101, %v39, 0
    %v160 = vsel %vm101, %v40, 0
    %v163 = vsel %vm101, %v41, 0
    %v166 = vsel %vm101, %v42, 0
    %v169 = vsel %vm101, %v43, 0
    %v172 = vsel %vm101, %v44, 0
    %v175 = vsel %vm101, %v45, 0
    %v178 = vsel %vm101, %v46, 0
    %v181 = vsel %vm101, %v47, 0
    %v184 = vsel %vm101, %v48, 0
    %v187 = vsel %vm101, %v49, 0
    %v190 = vsel %vm101, %v50, 0
    %v193 = vsel %vm101, %v51, 0
    %v196 = vsel %vm101, %v52, 0
    %v199 = vsel %vm101, %v53, 0
    %v202 = vsel %vm101, %v54, 0
    %v205 = vsel %vm101, %v55, 0
    %v208 = vsel %vm101, %v56, 0
    %v211 = vsel %vm101, %v57, 0
    %v214 = vsel %vm101, %v58, 0
    %v217 = vsel %vm101, %v59, 0
    %v220 = vsel %vm101, %v60, 0
    %v223 = vsel %vm101, %v61, 0
    %v226 = vsel %vm101, %v62, 0
    %v229 = vsel %vm101, %v63, 0
    %v232 = vsel %vm101, %v64, 0
    %v235 = vsel %vm101, %v65, 0
    %v238 = vsel %vm101, %v66, 0
    %v241 = vsel %vm101, %v67, 0
    %v244 = vsel %vm101, %v68, 0
    %v247 = vsel %vm101, %v69, 0
    %v250 = vsel %vm101, %v70, 0
    %v253 = vsel %vm101, %v71, 0
    %v256 = vsel %vm101, %v72, 0
    %v259 = vsel %vm101, %v73, 0
    %v262 = vsel %vm101, %v74, 0
    %v265 = vsel %vm101, %v75, 0
    %v268 = vsel %vm101, %v76, 0
    %v271 = vsel %vm101, %v77, 0
    %v274 = vsel %vm101, %v78, 0
    %v277 = vsel %vm101, %v79, 0
    %v280 = vsel %vm101, %v80, 0
    %v283 = vsel %vm101, %v81, 0
    %v286 = vsel %vm101, %v82, 0
    %v289 = vsel %vm101, %v83, 0
    %v292 = vsel %vm101, %v84, 0
    %v295 = vsel %vm101, %v85, 0
    %v298 = vsel %vm101, %v86, 0
    %v301 = vsel %vm101, %v87, 0
    %v304 = vsel %vm101, %v88, 0
    %v307 = vsel %vm101, %v89, 0
    %v310 = vsel %vm101, %v90, 0
    %v313 = vsel %vm101, %v91, 0
    %v316 = vsel %vm101, %v92, 0
    %v319 = vsel %vm101, %v93, 0
    %v322 = vsel %vm101, %v94, 0
    %v325 = vsel %vm101, %v95, 0
    %v328 = vsel %vm101, %v96, 0
    %v331 = vsel %vm101, %v97, 0
    %v334 = vsel %vm101, %v98, 0
    %v337 = vsel %vm101, %v99, 0
    %v340 = vsel %vm101, %v100, 0
    %342 = vmatprep.subr.mxu0 0.0
    %343 = vmatpush1.msra.mxu0 %v19
    %344 = vmatprep.subr.mxu0 0.0
    %345 = vmatpush1.msra.mxu0 %v20
    %346 = vmatprep.subr.mxu0 0.0
    %347 = vmatpush1.msra.mxu0 0.0
    %348 = vmatprep.subr.mxu0 0.0
    %349 = vmatpush1.msra.mxu0 0.0
    %350 = vmatprep.subr.mxu0 0.0
    %351 = vmatpush1.msra.mxu0 0.0
    %352 = vmatprep.subr.mxu0 0.0
    %353 = vmatpush1.msra.mxu0 0.0
    %354 = vmatprep.subr.mxu0 0.0
    %355 = vmatpush1.msra.mxu0 0.0
    %356 = vmatprep.subr.mxu0 0.0
    %357 = vmatpush1.msra.mxu0 0.0
    %358 = vmatprep.subr.mxu0 0.0
    %359 = vmatpush1.msra.mxu0 0.0
    %360 = vmatprep.subr.mxu0 0.0
    %361 = vmatpush1.msra.mxu0 0.0
    %362 = vmatprep.subr.mxu0 0.0
    %363 = vmatpush1.msra.mxu0 0.0
    %364 = vmatprep.subr.mxu0 0.0
    %365 = vmatpush1.msra.mxu0 0.0
    %366 = vmatprep.subr.mxu0 0.0
    %367 = vmatpush1.msra.mxu0 0.0
    %368 = vmatprep.subr.mxu0 0.0
    %369 = vmatpush1.msra.mxu0 0.0
    %370 = vmatprep.subr.mxu0 0.0
    %371 = vmatpush1.msra.mxu0 0.0
    %372 = vmatprep.subr.mxu0 0.0
    %373 = vmatpush1.msra.mxu0 0.0
    %374 = vmatprep.subr.mxu0 0.0
    %375 = vmatpush1.msra.mxu0 0.0
    %376 = vmatprep.subr.mxu0 0.0
    %377 = vmatpush1.msra.mxu0 0.0
    %378 = vmatprep.subr.mxu0 0.0
    %379 = vmatpush1.msra.mxu0 0.0
    %380 = vmatprep.subr.mxu0 0.0
    %381 = vmatpush1.msra.mxu0 0.0
    %382 = vmatprep.subr.mxu0 0.0
    %383 = vmatpush1.msra.mxu0 0.0
    %384 = vmatprep.subr.mxu0 0.0
    %385 = vmatpush1.msra.mxu0 0.0
    %386 = vmatprep.subr.mxu0 0.0
    %387 = vmatpush1.msra.mxu0 0.0
    %388 = vmatprep.subr.mxu0 0.0
    %389 = vmatpush1.msra.mxu0 0.0
    %390 = vmatprep.subr.mxu0 0.0
    %391 = vmatpush1.msra.mxu0 0.0
    %392 = vmatprep.subr.mxu0 0.0
    %393 = vmatpush1.msra.mxu0 0.0
    %394 = vmatprep.subr.mxu0 0.0
    %395 = vmatpush1.msra.mxu0 0.0
    %396 = vmatprep.subr.mxu0 0.0
    %397 = vmatpush1.msra.mxu0 0.0
    %398 = vmatprep.subr.mxu0 0.0
    %399 = vmatpush1.msra.mxu0 0.0
    %400 = vmatprep.subr.mxu0 0.0
    %401 = vmatpush1.msra.mxu0 0.0
    %402 = vmatprep.subr.mxu0 0.0
    %403 = vmatpush1.msra.mxu0 0.0
    %404 = vmatprep.subr.mxu0 0.0
    %405 = vmatpush1.msra.mxu0 0.0
    %406 = vmatprep.mubr.f32.mxu0 0.0
    %407 = vmatmul.mubr.f32.gmra.mrb[0].mxu0 %v103
    %v408 = vpop.f32.mrb[0].mxu0
    %v409 = vadd.f32 0.0, %v408
    %v410 = vpop.f32.mrb[0].mxu0
    %411 = vmatprep.mubr.f32.mxu0 0.0
    %412 = vmatmul.mubr.f32.gmra.mrb[0].mxu0 %v106
    %v413 = vpop.f32.mrb[0].mxu0
    %v414 = vadd.f32 0.0, %v413
    %v415 = vpop.f32.mrb[0].mxu0
    %416 = vmatprep.mubr.f32.mxu0 0.0
    %417 = vmatmul.mubr.f32.gmra.mrb[0].mxu0 %v109
    %v418 = vpop.f32.mrb[0].mxu0
    %v419 = vadd.f32 0.0, %v418
    %v420 = vpop.f32.mrb[0].mxu0
    %421 = vmatprep.mubr.f32.mxu0 0.0
    %422 = vmatmul.mubr.f32.gmra.mrb[0].mxu0 %v112
    %v423 = vpop.f32.mrb[0].mxu0
    %v424 = vadd.f32 0.0, %v423
    %v425 = vpop.f32.mrb[0].mxu0
    %426 = vmatprep.mubr.f32.mxu0 0.0
    %427 = vmatmul.mubr.f32.gmra.mrb[0].mxu0 %v115
    %v428 = vpop.f32.mrb[0].mxu0
    %v429 = vadd.f32 0.0, %v428
    %v430 = vpop.f32.mrb[0].mxu0
    %431 = vmatprep.mubr.f32.mxu0 0.0
    %432 = vmatmul.mubr.f32.gmra.mrb[0].mxu0 %v118
    %v433 = vpop.f32.mrb[0].mxu0
    %v434 = vadd.f32 0.0, %v433
    %v435 = vpop.f32.mrb[0].mxu0
    %436 = vmatprep.mubr.f32.mxu0 0.0
    %437 = vmatmul.mubr.f32.gmra.mrb[0].mxu0 %v121
    %v438 = vpop.f32.mrb[0].mxu0
    %v439 = vadd.f32 0.0, %v438
    %v440 = vpop.f32.mrb[0].mxu0
    %441 = vmatprep.mubr.f32.mxu0 0.0
    %442 = vmatmul.mubr.f32.gmra.mrb[0].mxu0 %v124
    %v443 = vpop.f32.mrb[0].mxu0
    %v444 = vadd.f32 0.0, %v443
    %v445 = vpop.f32.mrb[0].mxu0
    %446 = vmatprep.mubr.f32.mxu0 0.0
    %447 = vmatmul.mubr.f32.gmra.mrb[0].mxu0 %v127
    %v448 = vpop.f32.mrb[0].mxu0
    %v449 = vadd.f32 0.0, %v448
    %v450 = vpop.f32.mrb[0].mxu0
    %451 = vmatprep.mubr.f32.mxu0 0.0
    %452 = vmatmul.mubr.f32.gmra.mrb[0].mxu0 %v130
    %v453 = vpop.f32.mrb[0].mxu0
    %v454 = vadd.f32 0.0, %v453
    %v455 = vpop.f32.mrb[0].mxu0
    %456 = vmatprep.mubr.f32.mxu0 0.0
    %457 = vmatmul.mubr.f32.gmra.mrb[0].mxu0 %v133
    %v458 = vpop.f32.mrb[0].mxu0
    %v459 = vadd.f32 0.0, %v458
    %v460 = vpop.f32.mrb[0].mxu0
    %461 = vmatprep.mubr.f32.mxu0 0.0
    %462 = vmatmul.mubr.f32.gmra.mrb[0].mxu0 %v136
    %v463 = vpop.f32.mrb[0].mxu0
    %v464 = vadd.f32 0.0, %v463
    %v465 = vpop.f32.mrb[0].mxu0
    %466 = vmatprep.mubr.f32.mxu0 0.0
    %467 = vmatmul.mubr.f32.gmra.mrb[0].mxu0 %v139
    %v468 = vpop.f32.mrb[0].mxu0
    %v469 = vadd.f32 0.0, %v468
    %v470 = vpop.f32.mrb[0].mxu0
    %471 = vmatprep.mubr.f32.mxu0 0.0
    %472 = vmatmul.mubr.f32.gmra.mrb[0].mxu0 %v142
    %v473 = vpop.f32.mrb[0].mxu0
    %v474 = vadd.f32 0.0, %v473
    %v475 = vpop.f32.mrb[0].mxu0
    %476 = vmatprep.mubr.f32.mxu0 0.0
    %477 = vmatmul.mubr.f32.gmra.mrb[0].mxu0 %v145
    %v478 = vpop.f32.mrb[0].mxu0
    %v479 = vadd.f32 0.0, %v478
    %v480 = vpop.f32.mrb[0].mxu0
    %481 = vmatprep.mubr.f32.mxu0 0.0
    %482 = vmatmul.mubr.f32.gmra.mrb[0].mxu0 %v148
    %v483 = vpop.f32.mrb[0].mxu0
    %v484 = vadd.f32 0.0, %v483
    %v485 = vpop.f32.mrb[0].mxu0
    %486 = vmatprep.mubr.f32.mxu0 0.0
    %487 = vmatmul.mubr.f32.gmra.mrb[0].mxu0 %v151
    %v488 = vpop.f32.mrb[0].mxu0
    %v489 = vadd.f32 0.0, %v488
    %v490 = vpop.f32.mrb[0].mxu0
    %491 = vmatprep.mubr.f32.mxu0 0.0
    %492 = vmatmul.mubr.f32.gmra.mrb[0].mxu0 %v154
    %v493 = vpop.f32.mrb[0].mxu0
    %v494 = vadd.f32 0.0, %v493
    %v495 = vpop.f32.mrb[0].mxu0
    %496 = vmatprep.mubr.f32.mxu0 0.0
    %497 = vmatmul.mubr.f32.gmra.mrb[0].mxu0 %v157
    %v498 = vpop.f32.mrb[0].mxu0
    %v499 = vadd.f32 0.0, %v498
    %v500 = vpop.f32.mrb[0].mxu0
    %501 = vmatprep.mubr.f32.mxu0 0.0
    %502 = vmatmul.mubr.f32.gmra.mrb[0].mxu0 %v160
    %v503 = vpop.f32.mrb[0].mxu0
    %v504 = vadd.f32 0.0, %v503
    %v505 = vpop.f32.mrb[0].mxu0
    %506 = vmatprep.mubr.f32.mxu0 0.0
    %507 = vmatmul.mubr.f32.gmra.mrb[0].mxu0 %v163
    %v508 = vpop.f32.mrb[0].mxu0
    %v509 = vadd.f32 0.0, %v508
    %v510 = vpop.f32.mrb[0].mxu0
    %511 = vmatprep.mubr.f32.mxu0 0.0
    %512 = vmatmul.mubr.f32.gmra.mrb[0].mxu0 %v166
    %v513 = vpop.f32.mrb[0].mxu0
    %v514 = vadd.f32 0.0, %v513
    %v515 = vpop.f32.mrb[0].mxu0
    %516 = vmatprep.mubr.f32.mxu0 0.0
    %517 = vmatmul.mubr.f32.gmra.mrb[0].mxu0 %v169
    %v518 = vpop.f32.mrb[0].mxu0
    %v519 = vadd.f32 0.0, %v518
    %v520 = vpop.f32.mrb[0].mxu0
    %521 = vmatprep.mubr.f32.mxu0 0.0
    %522 = vmatmul.mubr.f32.gmra.mrb[0].mxu0 %v172
    %v523 = vpop.f32.mrb[0].mxu0
    %v524 = vadd.f32 0.0, %v523
    %v525 = vpop.f32.mrb[0].mxu0
    %526 = vmatprep.mubr.f32.mxu0 0.0
    %527 = vmatmul.mubr.f32.gmra.mrb[0].mxu0 %v175
    %v528 = vpop.f32.mrb[0].mxu0
    %v529 = vadd.f32 0.0, %v528
    %v530 = vpop.f32.mrb[0].mxu0
    %531 = vmatprep.mubr.f32.mxu0 0.0
    %532 = vmatmul.mubr.f32.gmra.mrb[0].mxu0 %v178
    %v533 = vpop.f32.mrb[0].mxu0
    %v534 = vadd.f32 0.0, %v533
    %v535 = vpop.f32.mrb[0].mxu0
    %536 = vmatprep.mubr.f32.mxu0 0.0
    %537 = vmatmul.mubr.f32.gmra.mrb[0].mxu0 %v181
    %v538 = vpop.f32.mrb[0].mxu0
    %v539 = vadd.f32 0.0, %v538
    %v540 = vpop.f32.mrb[0].mxu0
    %541 = vmatprep.mubr.f32.mxu0 0.0
    %542 = vmatmul.mubr.f32.gmra.mrb[0].mxu0 %v184
    %v543 = vpop.f32.mrb[0].mxu0
    %v544 = vadd.f32 0.0, %v543
    %v545 = vpop.f32.mrb[0].mxu0
    %546 = vmatprep.mubr.f32.mxu0 0.0
    %547 = vmatmul.mubr.f32.gmra.mrb[0].mxu0 %v187
    %v548 = vpop.f32.mrb[0].mxu0
    %v549 = vadd.f32 0.0, %v548
    %v550 = vpop.f32.mrb[0].mxu0
    %551 = vmatprep.mubr.f32.mxu0 0.0
    %552 = vmatmul.mubr.f32.gmra.mrb[0].mxu0 %v190
    %v553 = vpop.f32.mrb[0].mxu0
    %v554 = vadd.f32 0.0, %v553
    %v555 = vpop.f32.mrb[0].mxu0
    %556 = vmatprep.mubr.f32.mxu0 0.0
    %557 = vmatmul.mubr.f32.gmra.mrb[0].mxu0 %v193
    %v558 = vpop.f32.mrb[0].mxu0
    %v559 = vadd.f32 0.0, %v558
    %v560 = vpop.f32.mrb[0].mxu0
    %561 = vmatprep.mubr.f32.mxu0 0.0
    %562 = vmatmul.mubr.f32.gmra.mrb[0].mxu0 %v196
    %v563 = vpop.f32.mrb[0].mxu0
    %v564 = vadd.f32 0.0, %v563
    %v565 = vpop.f32.mrb[0].mxu0
    %566 = vmatprep.mubr.f32.mxu0 0.0
    %567 = vmatmul.mubr.f32.gmra.mrb[0].mxu0 %v199
    %v568 = vpop.f32.mrb[0].mxu0
    %v569 = vadd.f32 0.0, %v568
    %v570 = vpop.f32.mrb[0].mxu0
    %571 = vmatprep.mubr.f32.mxu0 0.0
    %572 = vmatmul.mubr.f32.gmra.mrb[0].mxu0 %v202
    %v573 = vpop.f32.mrb[0].mxu0
    %v574 = vadd.f32 0.0, %v573
    %v575 = vpop.f32.mrb[0].mxu0
    %576 = vmatprep.mubr.f32.mxu0 0.0
    %577 = vmatmul.mubr.f32.gmra.mrb[0].mxu0 %v205
    %v578 = vpop.f32.mrb[0].mxu0
    %v579 = vadd.f32 0.0, %v578
    %v580 = vpop.f32.mrb[0].mxu0
    %581 = vmatprep.mubr.f32.mxu0 0.0
    %582 = vmatmul.mubr.f32.gmra.mrb[0].mxu0 %v208
    %v583 = vpop.f32.mrb[0].mxu0
    %v584 = vadd.f32 0.0, %v583
    %v585 = vpop.f32.mrb[0].mxu0
    %586 = vmatprep.mubr.f32.mxu0 0.0
    %587 = vmatmul.mubr.f32.gmra.mrb[0].mxu0 %v211
    %v588 = vpop.f32.mrb[0].mxu0
    %v589 = vadd.f32 0.0, %v588
    %v590 = vpop.f32.mrb[0].mxu0
    %591 = vmatprep.mubr.f32.mxu0 0.0
    %592 = vmatmul.mubr.f32.gmra.mrb[0].mxu0 %v214
    %v593 = vpop.f32.mrb[0].mxu0
    %v594 = vadd.f32 0.0, %v593
    %v595 = vpop.f32.mrb[0].mxu0
    %596 = vmatprep.mubr.f32.mxu0 0.0
    %597 = vmatmul.mubr.f32.gmra.mrb[0].mxu0 %v217
    %v598 = vpop.f32.mrb[0].mxu0
    %v599 = vadd.f32 0.0, %v598
    %v600 = vpop.f32.mrb[0].mxu0
    %601 = vmatprep.mubr.f32.mxu0 0.0
    %602 = vmatmul.mubr.f32.gmra.mrb[0].mxu0 %v220
    %v603 = vpop.f32.mrb[0].mxu0
    %v604 = vadd.f32 0.0, %v603
    %v605 = vpop.f32.mrb[0].mxu0
    %606 = vmatprep.mubr.f32.mxu0 0.0
    %607 = vmatmul.mubr.f32.gmra.mrb[0].mxu0 %v223
    %v608 = vpop.f32.mrb[0].mxu0
    %v609 = vadd.f32 0.0, %v608
    %v610 = vpop.f32.mrb[0].mxu0
    %611 = vmatprep.mubr.f32.mxu0 0.0
    %612 = vmatmul.mubr.f32.gmra.mrb[0].mxu0 %v226
    %v613 = vpop.f32.mrb[0].mxu0
    %v614 = vadd.f32 0.0, %v613
    %v615 = vpop.f32.mrb[0].mxu0
    %616 = vmatprep.mubr.f32.mxu0 0.0
    %617 = vmatmul.mubr.f32.gmra.mrb[0].mxu0 %v229
    %v618 = vpop.f32.mrb[0].mxu0
    %v619 = vadd.f32 0.0, %v618
    %v620 = vpop.f32.mrb[0].mxu0
    %621 = vmatprep.mubr.f32.mxu0 0.0
    %622 = vmatmul.mubr.f32.gmra.mrb[0].mxu0 %v232
    %v623 = vpop.f32.mrb[0].mxu0
    %v624 = vadd.f32 0.0, %v623
    %v625 = vpop.f32.mrb[0].mxu0
    %626 = vmatprep.mubr.f32.mxu0 0.0
    %627 = vmatmul.mubr.f32.gmra.mrb[0].mxu0 %v235
    %v628 = vpop.f32.mrb[0].mxu0
    %v629 = vadd.f32 0.0, %v628
    %v630 = vpop.f32.mrb[0].mxu0
    %631 = vmatprep.mubr.f32.mxu0 0.0
    %632 = vmatmul.mubr.f32.gmra.mrb[0].mxu0 %v238
    %v633 = vpop.f32.mrb[0].mxu0
    %v634 = vadd.f32 0.0, %v633
    %v635 = vpop.f32.mrb[0].mxu0
    %636 = vmatprep.mubr.f32.mxu0 0.0
    %637 = vmatmul.mubr.f32.gmra.mrb[0].mxu0 %v241
    %v638 = vpop.f32.mrb[0].mxu0
    %v639 = vadd.f32 0.0, %v638
    %v640 = vpop.f32.mrb[0].mxu0
    %641 = vmatprep.mubr.f32.mxu0 0.0
    %642 = vmatmul.mubr.f32.gmra.mrb[0].mxu0 %v244
    %v643 = vpop.f32.mrb[0].mxu0
    %v644 = vadd.f32 0.0, %v643
    %v645 = vpop.f32.mrb[0].mxu0
    %646 = vmatprep.mubr.f32.mxu0 0.0
    %647 = vmatmul.mubr.f32.gmra.mrb[0].mxu0 %v247
    %v648 = vpop.f32.mrb[0].mxu0
    %v649 = vadd.f32 0.0, %v648
    %v650 = vpop.f32.mrb[0].mxu0
    %651 = vmatprep.mubr.f32.mxu0 0.0
    %652 = vmatmul.mubr.f32.gmra.mrb[0].mxu0 %v250
    %v653 = vpop.f32.mrb[0].mxu0
    %v654 = vadd.f32 0.0, %v653
    %v655 = vpop.f32.mrb[0].mxu0
    %656 = vmatprep.mubr.f32.mxu0 0.0
    %657 = vmatmul.mubr.f32.gmra.mrb[0].mxu0 %v253
    %v658 = vpop.f32.mrb[0].mxu0
    %v659 = vadd.f32 0.0, %v658
    %v660 = vpop.f32.mrb[0].mxu0
    %661 = vmatprep.mubr.f32.mxu0 0.0
    %662 = vmatmul.mubr.f32.gmra.mrb[0].mxu0 %v256
    %v663 = vpop.f32.mrb[0].mxu0
    %v664 = vadd.f32 0.0, %v663
    %v665 = vpop.f32.mrb[0].mxu0
    %666 = vmatprep.mubr.f32.mxu0 0.0
    %667 = vmatmul.mubr.f32.gmra.mrb[0].mxu0 %v259
    %v668 = vpop.f32.mrb[0].mxu0
    %v669 = vadd.f32 0.0, %v668
    %v670 = vpop.f32.mrb[0].mxu0
    %671 = vmatprep.mubr.f32.mxu0 0.0
    %672 = vmatmul.mubr.f32.gmra.mrb[0].mxu0 %v262
    %v673 = vpop.f32.mrb[0].mxu0
    %v674 = vadd.f32 0.0, %v673
    %v675 = vpop.f32.mrb[0].mxu0
    %676 = vmatprep.mubr.f32.mxu0 0.0
    %677 = vmatmul.mubr.f32.gmra.mrb[0].mxu0 %v265
    %v678 = vpop.f32.mrb[0].mxu0
    %v679 = vadd.f32 0.0, %v678
    %v680 = vpop.f32.mrb[0].mxu0
    %681 = vmatprep.mubr.f32.mxu0 0.0
    %682 = vmatmul.mubr.f32.gmra.mrb[0].mxu0 %v268
    %v683 = vpop.f32.mrb[0].mxu0
    %v684 = vadd.f32 0.0, %v683
    %v685 = vpop.f32.mrb[0].mxu0
    %686 = vmatprep.mubr.f32.mxu0 0.0
    %687 = vmatmul.mubr.f32.gmra.mrb[0].mxu0 %v271
    %v688 = vpop.f32.mrb[0].mxu0
    %v689 = vadd.f32 0.0, %v688
    %v690 = vpop.f32.mrb[0].mxu0
    %691 = vmatprep.mubr.f32.mxu0 0.0
    %692 = vmatmul.mubr.f32.gmra.mrb[0].mxu0 %v274
    %v693 = vpop.f32.mrb[0].mxu0
    %v694 = vadd.f32 0.0, %v693
    %v695 = vpop.f32.mrb[0].mxu0
    %696 = vmatprep.mubr.f32.mxu0 0.0
    %697 = vmatmul.mubr.f32.gmra.mrb[0].mxu0 %v277
    %v698 = vpop.f32.mrb[0].mxu0
    %v699 = vadd.f32 0.0, %v698
    %v700 = vpop.f32.mrb[0].mxu0
    %701 = vmatprep.mubr.f32.mxu0 0.0
    %702 = vmatmul.mubr.f32.gmra.mrb[0].mxu0 %v280
    %v703 = vpop.f32.mrb[0].mxu0
    %v704 = vadd.f32 0.0, %v703
    %v705 = vpop.f32.mrb[0].mxu0
    %706 = vmatprep.mubr.f32.mxu0 0.0
    %707 = vmatmul.mubr.f32.gmra.mrb[0].mxu0 %v283
    %v708 = vpop.f32.mrb[0].mxu0
    %v709 = vadd.f32 0.0, %v708
    %v710 = vpop.f32.mrb[0].mxu0
    %711 = vmatprep.mubr.f32.mxu0 0.0
    %712 = vmatmul.mubr.f32.gmra.mrb[0].mxu0 %v286
    %v713 = vpop.f32.mrb[0].mxu0
    %v714 = vadd.f32 0.0, %v713
    %v715 = vpop.f32.mrb[0].mxu0
    %716 = vmatprep.mubr.f32.mxu0 0.0
    %717 = vmatmul.mubr.f32.gmra.mrb[0].mxu0 %v289
    %v718 = vpop.f32.mrb[0].mxu0
    %v719 = vadd.f32 0.0, %v718
    %v720 = vpop.f32.mrb[0].mxu0
    %721 = vmatprep.mubr.f32.mxu0 0.0
    %722 = vmatmul.mubr.f32.gmra.mrb[0].mxu0 %v292
    %v723 = vpop.f32.mrb[0].mxu0
    %v724 = vadd.f32 0.0, %v723
    %v725 = vpop.f32.mrb[0].mxu0
    %726 = vmatprep.mubr.f32.mxu0 0.0
    %727 = vmatmul.mubr.f32.gmra.mrb[0].mxu0 %v295
    %v728 = vpop.f32.mrb[0].mxu0
    %v729 = vadd.f32 0.0, %v728
    %v730 = vpop.f32.mrb[0].mxu0
    %731 = vmatprep.mubr.f32.mxu0 0.0
    %732 = vmatmul.mubr.f32.gmra.mrb[0].mxu0 %v298
    %v733 = vpop.f32.mrb[0].mxu0
    %v734 = vadd.f32 0.0, %v733
    %v735 = vpop.f32.mrb[0].mxu0
    %736 = vmatprep.mubr.f32.mxu0 0.0
    %737 = vmatmul.mubr.f32.gmra.mrb[0].mxu0 %v301
    %v738 = vpop.f32.mrb[0].mxu0
    %v739 = vadd.f32 0.0, %v738
    %v740 = vpop.f32.mrb[0].mxu0
    %741 = vmatprep.mubr.f32.mxu0 0.0
    %742 = vmatmul.mubr.f32.gmra.mrb[0].mxu0 %v304
    %v743 = vpop.f32.mrb[0].mxu0
    %v744 = vadd.f32 0.0, %v743
    %v745 = vpop.f32.mrb[0].mxu0
    %746 = vmatprep.mubr.f32.mxu0 0.0
    %747 = vmatmul.mubr.f32.gmra.mrb[0].mxu0 %v307
    %v748 = vpop.f32.mrb[0].mxu0
    %v749 = vadd.f32 0.0, %v748
    %v750 = vpop.f32.mrb[0].mxu0
    %751 = vmatprep.mubr.f32.mxu0 0.0
    %752 = vmatmul.mubr.f32.gmra.mrb[0].mxu0 %v310
    %v753 = vpop.f32.mrb[0].mxu0
    %v754 = vadd.f32 0.0, %v753
    %v755 = vpop.f32.mrb[0].mxu0
    %756 = vmatprep.mubr.f32.mxu0 0.0
    %757 = vmatmul.mubr.f32.gmra.mrb[0].mxu0 %v313
    %v758 = vpop.f32.mrb[0].mxu0
    %v759 = vadd.f32 0.0, %v758
    %v760 = vpop.f32.mrb[0].mxu0
    %761 = vmatprep.mubr.f32.mxu0 0.0
    %762 = vmatmul.mubr.f32.gmra.mrb[0].mxu0 %v316
    %v763 = vpop.f32.mrb[0].mxu0
    %v764 = vadd.f32 0.0, %v763
    %v765 = vpop.f32.mrb[0].mxu0
    %766 = vmatprep.mubr.f32.mxu0 0.0
    %767 = vmatmul.mubr.f32.gmra.mrb[0].mxu0 %v319
    %v768 = vpop.f32.mrb[0].mxu0
    %v769 = vadd.f32 0.0, %v768
    %v770 = vpop.f32.mrb[0].mxu0
    %771 = vmatprep.mubr.f32.mxu0 0.0
    %772 = vmatmul.mubr.f32.gmra.mrb[0].mxu0 %v322
    %v773 = vpop.f32.mrb[0].mxu0
    %v774 = vadd.f32 0.0, %v773
    %v775 = vpop.f32.mrb[0].mxu0
    %776 = vmatprep.mubr.f32.mxu0 0.0
    %777 = vmatmul.mubr.f32.gmra.mrb[0].mxu0 %v325
    %v778 = vpop.f32.mrb[0].mxu0
    %v779 = vadd.f32 0.0, %v778
    %v780 = vpop.f32.mrb[0].mxu0
    %781 = vmatprep.mubr.f32.mxu0 0.0
    %782 = vmatmul.mubr.f32.gmra.mrb[0].mxu0 %v328
    %v783 = vpop.f32.mrb[0].mxu0
    %v784 = vadd.f32 0.0, %v783
    %v785 = vpop.f32.mrb[0].mxu0
    %786 = vmatprep.mubr.f32.mxu0 0.0
    %787 = vmatmul.mubr.f32.gmra.mrb[0].mxu0 %v331
    %v788 = vpop.f32.mrb[0].mxu0
    %v789 = vadd.f32 0.0, %v788
    %v790 = vpop.f32.mrb[0].mxu0
    %791 = vmatprep.mubr.f32.mxu0 0.0
    %792 = vmatmul.mubr.f32.gmra.mrb[0].mxu0 %v334
    %v793 = vpop.f32.mrb[0].mxu0
    %v794 = vadd.f32 0.0, %v793
    %v795 = vpop.f32.mrb[0].mxu0
    %796 = vmatprep.mubr.f32.mxu0 0.0
    %797 = vmatmul.mubr.f32.gmra.mrb[0].mxu0 %v337
    %v798 = vpop.f32.mrb[0].mxu0
    %v799 = vadd.f32 0.0, %v798
    %v800 = vpop.f32.mrb[0].mxu0
    %801 = vmatprep.mubr.f32.mxu0 0.0
    %802 = vmatmul.mubr.f32.gmra.mrb[0].mxu0 %v340
    %v803 = vpop.f32.mrb[0].mxu0
    %v804 = vadd.f32 0.0, %v803
    %v805 = vpop.f32.mrb[0].mxu0
    %806 = vdwg.mxu0
    %v808 = vsel %vm101, %v18, 0
    %810 = vmatprep.subr.mxu0 0.0
    %811 = vmatpush1.msra.mxu0 %v409
    %812 = vmatprep.subr.mxu0 0.0
    %813 = vmatpush1.msra.mxu0 %v414
    %814 = vmatprep.subr.mxu0 0.0
    %815 = vmatpush1.msra.mxu0 0.0
    %816 = vmatprep.subr.mxu0 0.0
    %817 = vmatpush1.msra.mxu0 0.0
    %818 = vmatprep.subr.mxu0 0.0
    %819 = vmatpush1.msra.mxu0 0.0
    %820 = vmatprep.subr.mxu0 0.0
    %821 = vmatpush1.msra.mxu0 0.0
    %822 = vmatprep.subr.mxu0 0.0
    %823 = vmatpush1.msra.mxu0 0.0
    %824 = vmatprep.subr.mxu0 0.0
    %825 = vmatpush1.msra.mxu0 0.0
    %826 = vmatprep.subr.mxu0 0.0
    %827 = vmatpush1.msra.mxu0 0.0
    %828 = vmatprep.subr.mxu0 0.0
    %829 = vmatpush1.msra.mxu0 0.0
    %830 = vmatprep.subr.mxu0 0.0
    %831 = vmatpush1.msra.mxu0 0.0
    %832 = vmatprep.subr.mxu0 0.0
    %833 = vmatpush1.msra.mxu0 0.0
    %834 = vmatprep.subr.mxu0 0.0
    %835 = vmatpush1.msra.mxu0 0.0
    %836 = vmatprep.subr.mxu0 0.0
    %837 = vmatpush1.msra.mxu0 0.0
    %838 = vmatprep.subr.mxu0 0.0
    %839 = vmatpush1.msra.mxu0 0.0
    %840 = vmatprep.subr.mxu0 0.0
    %841 = vmatpush1.msra.mxu0 0.0
    %842 = vmatprep.subr.mxu0 0.0
    %843 = vmatpush1.msra.mxu0 0.0
    %844 = vmatprep.subr.mxu0 0.0
    %845 = vmatpush1.msra.mxu0 0.0
    %846 = vmatprep.subr.mxu0 0.0
    %847 = vmatpush1.msra.mxu0 0.0
    %848 = vmatprep.subr.mxu0 0.0
    %849 = vmatpush1.msra.mxu0 0.0
    %850 = vmatprep.subr.mxu0 0.0
    %851 = vmatpush1.msra.mxu0 0.0
    %852 = vmatprep.subr.mxu0 0.0
    %853 = vmatpush1.msra.mxu0 0.0
    %854 = vmatprep.subr.mxu0 0.0
    %855 = vmatpush1.msra.mxu0 0.0
    %856 = vmatprep.subr.mxu0 0.0
    %857 = vmatpush1.msra.mxu0 0.0
    %858 = vmatprep.subr.mxu0 0.0
    %859 = vmatpush1.msra.mxu0 0.0
    %860 = vmatprep.subr.mxu0 0.0
    %861 = vmatpush1.msra.mxu0 0.0
    %862 = vmatprep.subr.mxu0 0.0
    %863 = vmatpush1.msra.mxu0 0.0
    %864 = vmatprep.subr.mxu0 0.0
    %865 = vmatpush1.msra.mxu0 0.0
    %866 = vmatprep.subr.mxu0 0.0
    %867 = vmatpush1.msra.mxu0 0.0
    %868 = vmatprep.subr.mxu0 0.0
    %869 = vmatpush1.msra.mxu0 0.0
    %870 = vmatprep.subr.mxu0 0.0
    %871 = vmatpush1.msra.mxu0 0.0
    %872 = vmatprep.subr.mxu0 0.0
    %873 = vmatpush1.msra.mxu0 0.0
    %874 = vmatprep.mubr.f32.mxu0 0.0
    %875 = vmatmul.mubr.f32.gmra.mrb[0].mxu0 %v808
    %v876 = vpop.f32.mrb[0].mxu0
    %v877 = vadd.f32 0.0, %v876
    %v878 = vpop.f32.mrb[0].mxu0
    %879 = vdwg.mxu0
    %880 = vmatprep.subr.mxu0 0.0
    %881 = vmatpush1.msra.mxu0 %v419
    %882 = vmatprep.subr.mxu0 0.0
    %883 = vmatpush1.msra.mxu0 %v424
    %884 = vmatprep.subr.mxu0 0.0
    %885 = vmatpush1.msra.mxu0 0.0
    %886 = vmatprep.subr.mxu0 0.0
    %887 = vmatpush1.msra.mxu0 0.0
    %888 = vmatprep.subr.mxu0 0.0
    %889 = vmatpush1.msra.mxu0 0.0
    %890 = vmatprep.subr.mxu0 0.0
    %891 = vmatpush1.msra.mxu0 0.0
    %892 = vmatprep.subr.mxu0 0.0
    %893 = vmatpush1.msra.mxu0 0.0
    %894 = vmatprep.subr.mxu0 0.0
    %895 = vmatpush1.msra.mxu0 0.0
    %896 = vmatprep.subr.mxu0 0.0
    %897 = vmatpush1.msra.mxu0 0.0
    %898 = vmatprep.subr.mxu0 0.0
    %899 = vmatpush1.msra.mxu0 0.0
    %900 = vmatprep.subr.mxu0 0.0
    %901 = vmatpush1.msra.mxu0 0.0
    %902 = vmatprep.subr.mxu0 0.0
    %903 = vmatpush1.msra.mxu0 0.0
    %904 = vmatprep.subr.mxu0 0.0
    %905 = vmatpush1.msra.mxu0 0.0
    %906 = vmatprep.subr.mxu0 0.0
    %907 = vmatpush1.msra.mxu0 0.0
    %908 = vmatprep.subr.mxu0 0.0
    %909 = vmatpush1.msra.mxu0 0.0
    %910 = vmatprep.subr.mxu0 0.0
    %911 = vmatpush1.msra.mxu0 0.0
    %912 = vmatprep.subr.mxu0 0.0
    %913 = vmatpush1.msra.mxu0 0.0
    %914 = vmatprep.subr.mxu0 0.0
    %915 = vmatpush1.msra.mxu0 0.0
    %916 = vmatprep.subr.mxu0 0.0
    %917 = vmatpush1.msra.mxu0 0.0
    %918 = vmatprep.subr.mxu0 0.0
    %919 = vmatpush1.msra.mxu0 0.0
    %920 = vmatprep.subr.mxu0 0.0
    %921 = vmatpush1.msra.mxu0 0.0
    %922 = vmatprep.subr.mxu0 0.0
    %923 = vmatpush1.msra.mxu0 0.0
    %924 = vmatprep.subr.mxu0 0.0
    %925 = vmatpush1.msra.mxu0 0.0
    %926 = vmatprep.subr.mxu0 0.0
    %927 = vmatpush1.msra.mxu0 0.0
    %928 = vmatprep.subr.mxu0 0.0
    %929 = vmatpush1.msra.mxu0 0.0
    %930 = vmatprep.subr.mxu0 0.0
    %931 = vmatpush1.msra.mxu0 0.0
    %932 = vmatprep.subr.mxu0 0.0
    %933 = vmatpush1.msra.mxu0 0.0
    %934 = vmatprep.subr.mxu0 0.0
    %935 = vmatpush1.msra.mxu0 0.0
    %936 = vmatprep.subr.mxu0 0.0
    %937 = vmatpush1.msra.mxu0 0.0
    %938 = vmatprep.subr.mxu0 0.0
    %939 = vmatpush1.msra.mxu0 0.0
    %940 = vmatprep.subr.mxu0 0.0
    %941 = vmatpush1.msra.mxu0 0.0
    %942 = vmatprep.subr.mxu0 0.0
    %943 = vmatpush1.msra.mxu0 0.0
    %944 = vmatprep.mubr.f32.mxu0 0.0
    %945 = vmatmul.mubr.f32.gmra.mrb[0].mxu0 %v808
    %v946 = vpop.f32.mrb[0].mxu0
    %v947 = vadd.f32 0.0, %v946
    %v948 = vpop.f32.mrb[0].mxu0
    %949 = vdwg.mxu0
    %950 = vmatprep.subr.mxu0 0.0
    %951 = vmatpush1.msra.mxu0 %v429
    %952 = vmatprep.subr.mxu0 0.0
    %953 = vmatpush1.msra.mxu0 %v434
    %954 = vmatprep.subr.mxu0 0.0
    %955 = vmatpush1.msra.mxu0 0.0
    %956 = vmatprep.subr.mxu0 0.0
    %957 = vmatpush1.msra.mxu0 0.0
    %958 = vmatprep.subr.mxu0 0.0
    %959 = vmatpush1.msra.mxu0 0.0
    %960 = vmatprep.subr.mxu0 0.0
    %961 = vmatpush1.msra.mxu0 0.0
    %962 = vmatprep.subr.mxu0 0.0
    %963 = vmatpush1.msra.mxu0 0.0
    %964 = vmatprep.subr.mxu0 0.0
    %965 = vmatpush1.msra.mxu0 0.0
    %966 = vmatprep.subr.mxu0 0.0
    %967 = vmatpush1.msra.mxu0 0.0
    %968 = vmatprep.subr.mxu0 0.0
    %969 = vmatpush1.msra.mxu0 0.0
    %970 = vmatprep.subr.mxu0 0.0
    %971 = vmatpush1.msra.mxu0 0.0
    %972 = vmatprep.subr.mxu0 0.0
    %973 = vmatpush1.msra.mxu0 0.0
    %974 = vmatprep.subr.mxu0 0.0
    %975 = vmatpush1.msra.mxu0 0.0
    %976 = vmatprep.subr.mxu0 0.0
    %977 = vmatpush1.msra.mxu0 0.0
    %978 = vmatprep.subr.mxu0 0.0
    %979 = vmatpush1.msra.mxu0 0.0
    %980 = vmatprep.subr.mxu0 0.0
    %981 = vmatpush1.msra.mxu0 0.0
    %982 = vmatprep.subr.mxu0 0.0
    %983 = vmatpush1.msra.mxu0 0.0
    %984 = vmatprep.subr.mxu0 0.0
    %985 = vmatpush1.msra.mxu0 0.0
    %986 = vmatprep.subr.mxu0 0.0
    %987 = vmatpush1.msra.mxu0 0.0
    %988 = vmatprep.subr.mxu0 0.0
    %989 = vmatpush1.msra.mxu0 0.0
    %990 = vmatprep.subr.mxu0 0.0
    %991 = vmatpush1.msra.mxu0 0.0
    %992 = vmatprep.subr.mxu0 0.0
    %993 = vmatpush1.msra.mxu0 0.0
    %994 = vmatprep.subr.mxu0 0.0
    %995 = vmatpush1.msra.mxu0 0.0
    %996 = vmatprep.subr.mxu0 0.0
    %997 = vmatpush1.msra.mxu0 0.0
    %998 = vmatprep.subr.mxu0 0.0
    %999 = vmatpush1.msra.mxu0 0.0
    %1000 = vmatprep.subr.mxu0 0.0
    %1001 = vmatpush1.msra.mxu0 0.0
    %1002 = vmatprep.subr.mxu0 0.0
    %1003 = vmatpush1.msra.mxu0 0.0
    %1004 = vmatprep.subr.mxu0 0.0
    %1005 = vmatpush1.msra.mxu0 0.0
    %1006 = vmatprep.subr.mxu0 0.0
    %1007 = vmatpush1.msra.mxu0 0.0
    %1008 = vmatprep.subr.mxu0 0.0
    %1009 = vmatpush1.msra.mxu0 0.0
    %1010 = vmatprep.subr.mxu0 0.0
    %1011 = vmatpush1.msra.mxu0 0.0
    %1012 = vmatprep.subr.mxu0 0.0
    %1013 = vmatpush1.msra.mxu0 0.0
    %1014 = vmatprep.mubr.f32.mxu0 0.0
    %1015 = vmatmul.mubr.f32.gmra.mrb[0].mxu0 %v808
    %v1016 = vpop.f32.mrb[0].mxu0
    %v1017 = vadd.f32 0.0, %v1016
    %v1018 = vpop.f32.mrb[0].mxu0
    %1019 = vdwg.mxu0
    %1020 = vmatprep.subr.mxu0 0.0
    %1021 = vmatpush1.msra.mxu0 %v439
    %1022 = vmatprep.subr.mxu0 0.0
    %1023 = vmatpush1.msra.mxu0 %v444
    %1024 = vmatprep.subr.mxu0 0.0
    %1025 = vmatpush1.msra.mxu0 0.0
    %1026 = vmatprep.subr.mxu0 0.0
    %1027 = vmatpush1.msra.mxu0 0.0
    %1028 = vmatprep.subr.mxu0 0.0
    %1029 = vmatpush1.msra.mxu0 0.0
    %1030 = vmatprep.subr.mxu0 0.0
    %1031 = vmatpush1.msra.mxu0 0.0
    %1032 = vmatprep.subr.mxu0 0.0
    %1033 = vmatpush1.msra.mxu0 0.0
    %1034 = vmatprep.subr.mxu0 0.0
    %1035 = vmatpush1.msra.mxu0 0.0
    %1036 = vmatprep.subr.mxu0 0.0
    %1037 = vmatpush1.msra.mxu0 0.0
    %1038 = vmatprep.subr.mxu0 0.0
    %1039 = vmatpush1.msra.mxu0 0.0
    %1040 = vmatprep.subr.mxu0 0.0
    %1041 = vmatpush1.msra.mxu0 0.0
    %1042 = vmatprep.subr.mxu0 0.0
    %1043 = vmatpush1.msra.mxu0 0.0
    %1044 = vmatprep.subr.mxu0 0.0
    %1045 = vmatpush1.msra.mxu0 0.0
    %1046 = vmatprep.subr.mxu0 0.0
    %1047 = vmatpush1.msra.mxu0 0.0
    %1048 = vmatprep.subr.mxu0 0.0
    %1049 = vmatpush1.msra.mxu0 0.0
    %1050 = vmatprep.subr.mxu0 0.0
    %1051 = vmatpush1.msra.mxu0 0.0
    %1052 = vmatprep.subr.mxu0 0.0
    %1053 = vmatpush1.msra.mxu0 0.0
    %1054 = vmatprep.subr.mxu0 0.0
    %1055 = vmatpush1.msra.mxu0 0.0
    %1056 = vmatprep.subr.mxu0 0.0
    %1057 = vmatpush1.msra.mxu0 0.0
    %1058 = vmatprep.subr.mxu0 0.0
    %1059 = vmatpush1.msra.mxu0 0.0
    %1060 = vmatprep.subr.mxu0 0.0
    %1061 = vmatpush1.msra.mxu0 0.0
    %1062 = vmatprep.subr.mxu0 0.0
    %1063 = vmatpush1.msra.mxu0 0.0
    %1064 = vmatprep.subr.mxu0 0.0
    %1065 = vmatpush1.msra.mxu0 0.0
    %1066 = vmatprep.subr.mxu0 0.0
    %1067 = vmatpush1.msra.mxu0 0.0
    %1068 = vmatprep.subr.mxu0 0.0
    %1069 = vmatpush1.msra.mxu0 0.0
    %1070 = vmatprep.subr.mxu0 0.0
    %1071 = vmatpush1.msra.mxu0 0.0
    %1072 = vmatprep.subr.mxu0 0.0
    %1073 = vmatpush1.msra.mxu0 0.0
    %1074 = vmatprep.subr.mxu0 0.0
    %1075 = vmatpush1.msra.mxu0 0.0
    %1076 = vmatprep.subr.mxu0 0.0
    %1077 = vmatpush1.msra.mxu0 0.0
    %1078 = vmatprep.subr.mxu0 0.0
    %1079 = vmatpush1.msra.mxu0 0.0
    %1080 = vmatprep.subr.mxu0 0.0
    %1081 = vmatpush1.msra.mxu0 0.0
    %1082 = vmatprep.subr.mxu0 0.0
    %1083 = vmatpush1.msra.mxu0 0.0
    %1084 = vmatprep.mubr.f32.mxu0 0.0
    %1085 = vmatmul.mubr.f32.gmra.mrb[0].mxu0 %v808
    %v1086 = vpop.f32.mrb[0].mxu0
    %v1087 = vadd.f32 0.0, %v1086
    %v1088 = vpop.f32.mrb[0].mxu0
    %1089 = vdwg.mxu0
    %1090 = vmatprep.subr.mxu0 0.0
    %1091 = vmatpush1.msra.mxu0 %v449
    %1092 = vmatprep.subr.mxu0 0.0
    %1093 = vmatpush1.msra.mxu0 %v454
    %1094 = vmatprep.subr.mxu0 0.0
    %1095 = vmatpush1.msra.mxu0 0.0
    %1096 = vmatprep.subr.mxu0 0.0
    %1097 = vmatpush1.msra.mxu0 0.0
    %1098 = vmatprep.subr.mxu0 0.0
    %1099 = vmatpush1.msra.mxu0 0.0
    %1100 = vmatprep.subr.mxu0 0.0
    %1101 = vmatpush1.msra.mxu0 0.0
    %1102 = vmatprep.subr.mxu0 0.0
    %1103 = vmatpush1.msra.mxu0 0.0
    %1104 = vmatprep.subr.mxu0 0.0
    %1105 = vmatpush1.msra.mxu0 0.0
    %1106 = vmatprep.subr.mxu0 0.0
    %1107 = vmatpush1.msra.mxu0 0.0
    %1108 = vmatprep.subr.mxu0 0.0
    %1109 = vmatpush1.msra.mxu0 0.0
    %1110 = vmatprep.subr.mxu0 0.0
    %1111 = vmatpush1.msra.mxu0 0.0
    %1112 = vmatprep.subr.mxu0 0.0
    %1113 = vmatpush1.msra.mxu0 0.0
    %1114 = vmatprep.subr.mxu0 0.0
    %1115 = vmatpush1.msra.mxu0 0.0
    %1116 = vmatprep.subr.mxu0 0.0
    %1117 = vmatpush1.msra.mxu0 0.0
    %1118 = vmatprep.subr.mxu0 0.0
    %1119 = vmatpush1.msra.mxu0 0.0
    %1120 = vmatprep.subr.mxu0 0.0
    %1121 = vmatpush1.msra.mxu0 0.0
    %1122 = vmatprep.subr.mxu0 0.0
    %1123 = vmatpush1.msra.mxu0 0.0
    %1124 = vmatprep.subr.mxu0 0.0
    %1125 = vmatpush1.msra.mxu0 0.0
    %1126 = vmatprep.subr.mxu0 0.0
    %1127 = vmatpush1.msra.mxu0 0.0
    %1128 = vmatprep.subr.mxu0 0.0
    %1129 = vmatpush1.msra.mxu0 0.0
    %1130 = vmatprep.subr.mxu0 0.0
    %1131 = vmatpush1.msra.mxu0 0.0
    %1132 = vmatprep.subr.mxu0 0.0
    %1133 = vmatpush1.msra.mxu0 0.0
    %1134 = vmatprep.subr.mxu0 0.0
    %1135 = vmatpush1.msra.mxu0 0.0
    %1136 = vmatprep.subr.mxu0 0.0
    %1137 = vmatpush1.msra.mxu0 0.0
    %1138 = vmatprep.subr.mxu0 0.0
    %1139 = vmatpush1.msra.mxu0 0.0
    %1140 = vmatprep.subr.mxu0 0.0
    %1141 = vmatpush1.msra.mxu0 0.0
    %1142 = vmatprep.subr.mxu0 0.0
    %1143 = vmatpush1.msra.mxu0 0.0
    %1144 = vmatprep.subr.mxu0 0.0
    %1145 = vmatpush1.msra.mxu0 0.0
    %1146 = vmatprep.subr.mxu0 0.0
    %1147 = vmatpush1.msra.mxu0 0.0
    %1148 = vmatprep.subr.mxu0 0.0
    %1149 = vmatpush1.msra.mxu0 0.0
    %1150 = vmatprep.subr.mxu0 0.0
    %1151 = vmatpush1.msra.mxu0 0.0
    %1152 = vmatprep.subr.mxu0 0.0
    %1153 = vmatpush1.msra.mxu0 0.0
    %1154 = vmatprep.mubr.f32.mxu0 0.0
    %1155 = vmatmul.mubr.f32.gmra.mrb[0].mxu0 %v808
    %v1156 = vpop.f32.mrb[0].mxu0
    %v1157 = vadd.f32 0.0, %v1156
    %v1158 = vpop.f32.mrb[0].mxu0
    %1159 = vdwg.mxu0
    %1160 = vmatprep.subr.mxu0 0.0
    %1161 = vmatpush1.msra.mxu0 %v459
    %1162 = vmatprep.subr.mxu0 0.0
    %1163 = vmatpush1.msra.mxu0 %v464
    %1164 = vmatprep.subr.mxu0 0.0
    %1165 = vmatpush1.msra.mxu0 0.0
    %1166 = vmatprep.subr.mxu0 0.0
    %1167 = vmatpush1.msra.mxu0 0.0
    %1168 = vmatprep.subr.mxu0 0.0
    %1169 = vmatpush1.msra.mxu0 0.0
    %1170 = vmatprep.subr.mxu0 0.0
    %1171 = vmatpush1.msra.mxu0 0.0
    %1172 = vmatprep.subr.mxu0 0.0
    %1173 = vmatpush1.msra.mxu0 0.0
    %1174 = vmatprep.subr.mxu0 0.0
    %1175 = vmatpush1.msra.mxu0 0.0
    %1176 = vmatprep.subr.mxu0 0.0
    %1177 = vmatpush1.msra.mxu0 0.0
    %1178 = vmatprep.subr.mxu0 0.0
    %1179 = vmatpush1.msra.mxu0 0.0
    %1180 = vmatprep.subr.mxu0 0.0
    %1181 = vmatpush1.msra.mxu0 0.0
    %1182 = vmatprep.subr.mxu0 0.0
    %1183 = vmatpush1.msra.mxu0 0.0
    %1184 = vmatprep.subr.mxu0 0.0
    %1185 = vmatpush1.msra.mxu0 0.0
    %1186 = vmatprep.subr.mxu0 0.0
    %1187 = vmatpush1.msra.mxu0 0.0
    %1188 = vmatprep.subr.mxu0 0.0
    %1189 = vmatpush1.msra.mxu0 0.0
    %1190 = vmatprep.subr.mxu0 0.0
    %1191 = vmatpush1.msra.mxu0 0.0
    %1192 = vmatprep.subr.mxu0 0.0
    %1193 = vmatpush1.msra.mxu0 0.0
    %1194 = vmatprep.subr.mxu0 0.0
    %1195 = vmatpush1.msra.mxu0 0.0
    %1196 = vmatprep.subr.mxu0 0.0
    %1197 = vmatpush1.msra.mxu0 0.0
    %1198 = vmatprep.subr.mxu0 0.0
    %1199 = vmatpush1.msra.mxu0 0.0
    %1200 = vmatprep.subr.mxu0 0.0
    %1201 = vmatpush1.msra.mxu0 0.0
    %1202 = vmatprep.subr.mxu0 0.0
    %1203 = vmatpush1.msra.mxu0 0.0
    %1204 = vmatprep.subr.mxu0 0.0
    %1205 = vmatpush1.msra.mxu0 0.0
    %1206 = vmatprep.subr.mxu0 0.0
    %1207 = vmatpush1.msra.mxu0 0.0
    %1208 = vmatprep.subr.mxu0 0.0
    %1209 = vmatpush1.msra.mxu0 0.0
    %1210 = vmatprep.subr.mxu0 0.0
    %1211 = vmatpush1.msra.mxu0 0.0
    %1212 = vmatprep.subr.mxu0 0.0
    %1213 = vmatpush1.msra.mxu0 0.0
    %1214 = vmatprep.subr.mxu0 0.0
    %1215 = vmatpush1.msra.mxu0 0.0
    %1216 = vmatprep.subr.mxu0 0.0
    %1217 = vmatpush1.msra.mxu0 0.0
    %1218 = vmatprep.subr.mxu0 0.0
    %1219 = vmatpush1.msra.mxu0 0.0
    %1220 = vmatprep.subr.mxu0 0.0
    %1221 = vmatpush1.msra.mxu0 0.0
    %1222 = vmatprep.subr.mxu0 0.0
    %1223 = vmatpush1.msra.mxu0 0.0
    %1224 = vmatprep.mubr.f32.mxu0 0.0
    %1225 = vmatmul.mubr.f32.gmra.mrb[0].mxu0 %v808
    %v1226 = vpop.f32.mrb[0].mxu0
    %v1227 = vadd.f32 0.0, %v1226
    %v1228 = vpop.f32.mrb[0].mxu0
    %1229 = vdwg.mxu0
    %1230 = vmatprep.subr.mxu0 0.0
    %1231 = vmatpush1.msra.mxu0 %v469
    %1232 = vmatprep.subr.mxu0 0.0
    %1233 = vmatpush1.msra.mxu0 %v474
    %1234 = vmatprep.subr.mxu0 0.0
    %1235 = vmatpush1.msra.mxu0 0.0
    %1236 = vmatprep.subr.mxu0 0.0
    %1237 = vmatpush1.msra.mxu0 0.0
    %1238 = vmatprep.subr.mxu0 0.0
    %1239 = vmatpush1.msra.mxu0 0.0
    %1240 = vmatprep.subr.mxu0 0.0
    %1241 = vmatpush1.msra.mxu0 0.0
    %1242 = vmatprep.subr.mxu0 0.0
    %1243 = vmatpush1.msra.mxu0 0.0
    %1244 = vmatprep.subr.mxu0 0.0
    %1245 = vmatpush1.msra.mxu0 0.0
    %1246 = vmatprep.subr.mxu0 0.0
    %1247 = vmatpush1.msra.mxu0 0.0
    %1248 = vmatprep.subr.mxu0 0.0
    %1249 = vmatpush1.msra.mxu0 0.0
    %1250 = vmatprep.subr.mxu0 0.0
    %1251 = vmatpush1.msra.mxu0 0.0
    %1252 = vmatprep.subr.mxu0 0.0
    %1253 = vmatpush1.msra.mxu0 0.0
    %1254 = vmatprep.subr.mxu0 0.0
    %1255 = vmatpush1.msra.mxu0 0.0
    %1256 = vmatprep.subr.mxu0 0.0
    %1257 = vmatpush1.msra.mxu0 0.0
    %1258 = vmatprep.subr.mxu0 0.0
    %1259 = vmatpush1.msra.mxu0 0.0
    %1260 = vmatprep.subr.mxu0 0.0
    %1261 = vmatpush1.msra.mxu0 0.0
    %1262 = vmatprep.subr.mxu0 0.0
    %1263 = vmatpush1.msra.mxu0 0.0
    %1264 = vmatprep.subr.mxu0 0.0
    %1265 = vmatpush1.msra.mxu0 0.0
    %1266 = vmatprep.subr.mxu0 0.0
    %1267 = vmatpush1.msra.mxu0 0.0
    %1268 = vmatprep.subr.mxu0 0.0
    %1269 = vmatpush1.msra.mxu0 0.0
    %1270 = vmatprep.subr.mxu0 0.0
    %1271 = vmatpush1.msra.mxu0 0.0
    %1272 = vmatprep.subr.mxu0 0.0
    %1273 = vmatpush1.msra.mxu0 0.0
    %1274 = vmatprep.subr.mxu0 0.0
    %1275 = vmatpush1.msra.mxu0 0.0
    %1276 = vmatprep.subr.mxu0 0.0
    %1277 = vmatpush1.msra.mxu0 0.0
    %1278 = vmatprep.subr.mxu0 0.0
    %1279 = vmatpush1.msra.mxu0 0.0
    %1280 = vmatprep.subr.mxu0 0.0
    %1281 = vmatpush1.msra.mxu0 0.0
    %1282 = vmatprep.subr.mxu0 0.0
    %1283 = vmatpush1.msra.mxu0 0.0
    %1284 = vmatprep.subr.mxu0 0.0
    %1285 = vmatpush1.msra.mxu0 0.0
    %1286 = vmatprep.subr.mxu0 0.0
    %1287 = vmatpush1.msra.mxu0 0.0
    %1288 = vmatprep.subr.mxu0 0.0
    %1289 = vmatpush1.msra.mxu0 0.0
    %1290 = vmatprep.subr.mxu0 0.0
    %1291 = vmatpush1.msra.mxu0 0.0
    %1292 = vmatprep.subr.mxu0 0.0
    %1293 = vmatpush1.msra.mxu0 0.0
    %1294 = vmatprep.mubr.f32.mxu0 0.0
    %1295 = vmatmul.mubr.f32.gmra.mrb[0].mxu0 %v808
    %v1296 = vpop.f32.mrb[0].mxu0
    %v1297 = vadd.f32 0.0, %v1296
    %v1298 = vpop.f32.mrb[0].mxu0
    %1299 = vdwg.mxu0
    %1300 = vmatprep.subr.mxu0 0.0
    %1301 = vmatpush1.msra.mxu0 %v479
    %1302 = vmatprep.subr.mxu0 0.0
    %1303 = vmatpush1.msra.mxu0 %v484
    %1304 = vmatprep.subr.mxu0 0.0
    %1305 = vmatpush1.msra.mxu0 0.0
    %1306 = vmatprep.subr.mxu0 0.0
    %1307 = vmatpush1.msra.mxu0 0.0
    %1308 = vmatprep.subr.mxu0 0.0
    %1309 = vmatpush1.msra.mxu0 0.0
    %1310 = vmatprep.subr.mxu0 0.0
    %1311 = vmatpush1.msra.mxu0 0.0
    %1312 = vmatprep.subr.mxu0 0.0
    %1313 = vmatpush1.msra.mxu0 0.0
    %1314 = vmatprep.subr.mxu0 0.0
    %1315 = vmatpush1.msra.mxu0 0.0
    %1316 = vmatprep.subr.mxu0 0.0
    %1317 = vmatpush1.msra.mxu0 0.0
    %1318 = vmatprep.subr.mxu0 0.0
    %1319 = vmatpush1.msra.mxu0 0.0
    %1320 = vmatprep.subr.mxu0 0.0
    %1321 = vmatpush1.msra.mxu0 0.0
    %1322 = vmatprep.subr.mxu0 0.0
    %1323 = vmatpush1.msra.mxu0 0.0
    %1324 = vmatprep.subr.mxu0 0.0
    %1325 = vmatpush1.msra.mxu0 0.0
    %1326 = vmatprep.subr.mxu0 0.0
    %1327 = vmatpush1.msra.mxu0 0.0
    %1328 = vmatprep.subr.mxu0 0.0
    %1329 = vmatpush1.msra.mxu0 0.0
    %1330 = vmatprep.subr.mxu0 0.0
    %1331 = vmatpush1.msra.mxu0 0.0
    %1332 = vmatprep.subr.mxu0 0.0
    %1333 = vmatpush1.msra.mxu0 0.0
    %1334 = vmatprep.subr.mxu0 0.0
    %1335 = vmatpush1.msra.mxu0 0.0
    %1336 = vmatprep.subr.mxu0 0.0
    %1337 = vmatpush1.msra.mxu0 0.0
    %1338 = vmatprep.subr.mxu0 0.0
    %1339 = vmatpush1.msra.mxu0 0.0
    %1340 = vmatprep.subr.mxu0 0.0
    %1341 = vmatpush1.msra.mxu0 0.0
    %1342 = vmatprep.subr.mxu0 0.0
    %1343 = vmatpush1.msra.mxu0 0.0
    %1344 = vmatprep.subr.mxu0 0.0
    %1345 = vmatpush1.msra.mxu0 0.0
    %1346 = vmatprep.subr.mxu0 0.0
    %1347 = vmatpush1.msra.mxu0 0.0
    %1348 = vmatprep.subr.mxu0 0.0
    %1349 = vmatpush1.msra.mxu0 0.0
    %1350 = vmatprep.subr.mxu0 0.0
    %1351 = vmatpush1.msra.mxu0 0.0
    %1352 = vmatprep.subr.mxu0 0.0
    %1353 = vmatpush1.msra.mxu0 0.0
    %1354 = vmatprep.subr.mxu0 0.0
    %1355 = vmatpush1.msra.mxu0 0.0
    %1356 = vmatprep.subr.mxu0 0.0
    %1357 = vmatpush1.msra.mxu0 0.0
    %1358 = vmatprep.subr.mxu0 0.0
    %1359 = vmatpush1.msra.mxu0 0.0
    %1360 = vmatprep.subr.mxu0 0.0
    %1361 = vmatpush1.msra.mxu0 0.0
    %1362 = vmatprep.subr.mxu0 0.0
    %1363 = vmatpush1.msra.mxu0 0.0
    %1364 = vmatprep.mubr.f32.mxu0 0.0
    %1365 = vmatmul.mubr.f32.gmra.mrb[0].mxu0 %v808
    %v1366 = vpop.f32.mrb[0].mxu0
    %v1367 = vadd.f32 0.0, %v1366
    %v1368 = vpop.f32.mrb[0].mxu0
    %1369 = vdwg.mxu0
    %1370 = vmatprep.subr.mxu0 0.0
    %1371 = vmatpush1.msra.mxu0 %v489
    %1372 = vmatprep.subr.mxu0 0.0
    %1373 = vmatpush1.msra.mxu0 %v494
    %1374 = vmatprep.subr.mxu0 0.0
    %1375 = vmatpush1.msra.mxu0 0.0
    %1376 = vmatprep.subr.mxu0 0.0
    %1377 = vmatpush1.msra.mxu0 0.0
    %1378 = vmatprep.subr.mxu0 0.0
    %1379 = vmatpush1.msra.mxu0 0.0
    %1380 = vmatprep.subr.mxu0 0.0
    %1381 = vmatpush1.msra.mxu0 0.0
    %1382 = vmatprep.subr.mxu0 0.0
    %1383 = vmatpush1.msra.mxu0 0.0
    %1384 = vmatprep.subr.mxu0 0.0
    %1385 = vmatpush1.msra.mxu0 0.0
    %1386 = vmatprep.subr.mxu0 0.0
    %1387 = vmatpush1.msra.mxu0 0.0
    %1388 = vmatprep.subr.mxu0 0.0
    %1389 = vmatpush1.msra.mxu0 0.0
    %1390 = vmatprep.subr.mxu0 0.0
    %1391 = vmatpush1.msra.mxu0 0.0
    %1392 = vmatprep.subr.mxu0 0.0
    %1393 = vmatpush1.msra.mxu0 0.0
    %1394 = vmatprep.subr.mxu0 0.0
    %1395 = vmatpush1.msra.mxu0 0.0
    %1396 = vmatprep.subr.mxu0 0.0
    %1397 = vmatpush1.msra.mxu0 0.0
    %1398 = vmatprep.subr.mxu0 0.0
    %1399 = vmatpush1.msra.mxu0 0.0
    %1400 = vmatprep.subr.mxu0 0.0
    %1401 = vmatpush1.msra.mxu0 0.0
    %1402 = vmatprep.subr.mxu0 0.0
    %1403 = vmatpush1.msra.mxu0 0.0
    %1404 = vmatprep.subr.mxu0 0.0
    %1405 = vmatpush1.msra.mxu0 0.0
    %1406 = vmatprep.subr.mxu0 0.0
    %1407 = vmatpush1.msra.mxu0 0.0
    %1408 = vmatprep.subr.mxu0 0.0
    %1409 = vmatpush1.msra.mxu0 0.0
    %1410 = vmatprep.subr.mxu0 0.0
    %1411 = vmatpush1.msra.mxu0 0.0
    %1412 = vmatprep.subr.mxu0 0.0
    %1413 = vmatpush1.msra.mxu0 0.0
    %1414 = vmatprep.subr.mxu0 0.0
    %1415 = vmatpush1.msra.mxu0 0.0
    %1416 = vmatprep.subr.mxu0 0.0
    %1417 = vmatpush1.msra.mxu0 0.0
    %1418 = vmatprep.subr.mxu0 0.0
    %1419 = vmatpush1.msra.mxu0 0.0
    %1420 = vmatprep.subr.mxu0 0.0
    %1421 = vmatpush1.msra.mxu0 0.0
    %1422 = vmatprep.subr.mxu0 0.0
    %1423 = vmatpush1.msra.mxu0 0.0
    %1424 = vmatprep.subr.mxu0 0.0
    %1425 = vmatpush1.msra.mxu0 0.0
    %1426 = vmatprep.subr.mxu0 0.0
    %1427 = vmatpush1.msra.mxu0 0.0
    %1428 = vmatprep.subr.mxu0 0.0
    %1429 = vmatpush1.msra.mxu0 0.0
    %1430 = vmatprep.subr.mxu0 0.0
    %1431 = vmatpush1.msra.mxu0 0.0
    %1432 = vmatprep.subr.mxu0 0.0
    %1433 = vmatpush1.msra.mxu0 0.0
    %1434 = vmatprep.mubr.f32.mxu0 0.0
    %1435 = vmatmul.mubr.f32.gmra.mrb[0].mxu0 %v808
    %v1436 = vpop.f32.mrb[0].mxu0
    %v1437 = vadd.f32 0.0, %v1436
    %v1438 = vpop.f32.mrb[0].mxu0
    %1439 = vdwg.mxu0
    %1440 = vmatprep.subr.mxu0 0.0
    %1441 = vmatpush1.msra.mxu0 %v499
    %1442 = vmatprep.subr.mxu0 0.0
    %1443 = vmatpush1.msra.mxu0 %v504
    %1444 = vmatprep.subr.mxu0 0.0
    %1445 = vmatpush1.msra.mxu0 0.0
    %1446 = vmatprep.subr.mxu0 0.0
    %1447 = vmatpush1.msra.mxu0 0.0
    %1448 = vmatprep.subr.mxu0 0.0
    %1449 = vmatpush1.msra.mxu0 0.0
    %1450 = vmatprep.subr.mxu0 0.0
    %1451 = vmatpush1.msra.mxu0 0.0
    %1452 = vmatprep.subr.mxu0 0.0
    %1453 = vmatpush1.msra.mxu0 0.0
    %1454 = vmatprep.subr.mxu0 0.0
    %1455 = vmatpush1.msra.mxu0 0.0
    %1456 = vmatprep.subr.mxu0 0.0
    %1457 = vmatpush1.msra.mxu0 0.0
    %1458 = vmatprep.subr.mxu0 0.0
    %1459 = vmatpush1.msra.mxu0 0.0
    %1460 = vmatprep.subr.mxu0 0.0
    %1461 = vmatpush1.msra.mxu0 0.0
    %1462 = vmatprep.subr.mxu0 0.0
    %1463 = vmatpush1.msra.mxu0 0.0
    %1464 = vmatprep.subr.mxu0 0.0
    %1465 = vmatpush1.msra.mxu0 0.0
    %1466 = vmatprep.subr.mxu0 0.0
    %1467 = vmatpush1.msra.mxu0 0.0
    %1468 = vmatprep.subr.mxu0 0.0
    %1469 = vmatpush1.msra.mxu0 0.0
    %1470 = vmatprep.subr.mxu0 0.0
    %1471 = vmatpush1.msra.mxu0 0.0
    %1472 = vmatprep.subr.mxu0 0.0
    %1473 = vmatpush1.msra.mxu0 0.0
    %1474 = vmatprep.subr.mxu0 0.0
    %1475 = vmatpush1.msra.mxu0 0.0
    %1476 = vmatprep.subr.mxu0 0.0
    %1477 = vmatpush1.msra.mxu0 0.0
    %1478 = vmatprep.subr.mxu0 0.0
    %1479 = vmatpush1.msra.mxu0 0.0
    %1480 = vmatprep.subr.mxu0 0.0
    %1481 = vmatpush1.msra.mxu0 0.0
    %1482 = vmatprep.subr.mxu0 0.0
    %1483 = vmatpush1.msra.mxu0 0.0
    %1484 = vmatprep.subr.mxu0 0.0
    %1485 = vmatpush1.msra.mxu0 0.0
    %1486 = vmatprep.subr.mxu0 0.0
    %1487 = vmatpush1.msra.mxu0 0.0
    %1488 = vmatprep.subr.mxu0 0.0
    %1489 = vmatpush1.msra.mxu0 0.0
    %1490 = vmatprep.subr.mxu0 0.0
    %1491 = vmatpush1.msra.mxu0 0.0
    %1492 = vmatprep.subr.mxu0 0.0
    %1493 = vmatpush1.msra.mxu0 0.0
    %1494 = vmatprep.subr.mxu0 0.0
    %1495 = vmatpush1.msra.mxu0 0.0
    %1496 = vmatprep.subr.mxu0 0.0
    %1497 = vmatpush1.msra.mxu0 0.0
    %1498 = vmatprep.subr.mxu0 0.0
    %1499 = vmatpush1.msra.mxu0 0.0
    %1500 = vmatprep.subr.mxu0 0.0
    %1501 = vmatpush1.msra.mxu0 0.0
    %1502 = vmatprep.subr.mxu0 0.0
    %1503 = vmatpush1.msra.mxu0 0.0
    %1504 = vmatprep.mubr.f32.mxu0 0.0
    %1505 = vmatmul.mubr.f32.gmra.mrb[0].mxu0 %v808
    %v1506 = vpop.f32.mrb[0].mxu0
    %v1507 = vadd.f32 0.0, %v1506
    %v1508 = vpop.f32.mrb[0].mxu0
    %1509 = vdwg.mxu0
    %1510 = vmatprep.subr.mxu0 0.0
    %1511 = vmatpush1.msra.mxu0 %v509
    %1512 = vmatprep.subr.mxu0 0.0
    %1513 = vmatpush1.msra.mxu0 %v514
    %1514 = vmatprep.subr.mxu0 0.0
    %1515 = vmatpush1.msra.mxu0 0.0
    %1516 = vmatprep.subr.mxu0 0.0
    %1517 = vmatpush1.msra.mxu0 0.0
    %1518 = vmatprep.subr.mxu0 0.0
    %1519 = vmatpush1.msra.mxu0 0.0
    %1520 = vmatprep.subr.mxu0 0.0
    %1521 = vmatpush1.msra.mxu0 0.0
    %1522 = vmatprep.subr.mxu0 0.0
    %1523 = vmatpush1.msra.mxu0 0.0
    %1524 = vmatprep.subr.mxu0 0.0
    %1525 = vmatpush1.msra.mxu0 0.0
    %1526 = vmatprep.subr.mxu0 0.0
    %1527 = vmatpush1.msra.mxu0 0.0
    %1528 = vmatprep.subr.mxu0 0.0
    %1529 = vmatpush1.msra.mxu0 0.0
    %1530 = vmatprep.subr.mxu0 0.0
    %1531 = vmatpush1.msra.mxu0 0.0
    %1532 = vmatprep.subr.mxu0 0.0
    %1533 = vmatpush1.msra.mxu0 0.0
    %1534 = vmatprep.subr.mxu0 0.0
    %1535 = vmatpush1.msra.mxu0 0.0
    %1536 = vmatprep.subr.mxu0 0.0
    %1537 = vmatpush1.msra.mxu0 0.0
    %1538 = vmatprep.subr.mxu0 0.0
    %1539 = vmatpush1.msra.mxu0 0.0
    %1540 = vmatprep.subr.mxu0 0.0
    %1541 = vmatpush1.msra.mxu0 0.0
    %1542 = vmatprep.subr.mxu0 0.0
    %1543 = vmatpush1.msra.mxu0 0.0
    %1544 = vmatprep.subr.mxu0 0.0
    %1545 = vmatpush1.msra.mxu0 0.0
    %1546 = vmatprep.subr.mxu0 0.0
    %1547 = vmatpush1.msra.mxu0 0.0
    %1548 = vmatprep.subr.mxu0 0.0
    %1549 = vmatpush1.msra.mxu0 0.0
    %1550 = vmatprep.subr.mxu0 0.0
    %1551 = vmatpush1.msra.mxu0 0.0
    %1552 = vmatprep.subr.mxu0 0.0
    %1553 = vmatpush1.msra.mxu0 0.0
    %1554 = vmatprep.subr.mxu0 0.0
    %1555 = vmatpush1.msra.mxu0 0.0
    %1556 = vmatprep.subr.mxu0 0.0
    %1557 = vmatpush1.msra.mxu0 0.0
    %1558 = vmatprep.subr.mxu0 0.0
    %1559 = vmatpush1.msra.mxu0 0.0
    %1560 = vmatprep.subr.mxu0 0.0
    %1561 = vmatpush1.msra.mxu0 0.0
    %1562 = vmatprep.subr.mxu0 0.0
    %1563 = vmatpush1.msra.mxu0 0.0
    %1564 = vmatprep.subr.mxu0 0.0
    %1565 = vmatpush1.msra.mxu0 0.0
    %1566 = vmatprep.subr.mxu0 0.0
    %1567 = vmatpush1.msra.mxu0 0.0
    %1568 = vmatprep.subr.mxu0 0.0
    %1569 = vmatpush1.msra.mxu0 0.0
    %1570 = vmatprep.subr.mxu0 0.0
    %1571 = vmatpush1.msra.mxu0 0.0
    %1572 = vmatprep.subr.mxu0 0.0
    %1573 = vmatpush1.msra.mxu0 0.0
    %1574 = vmatprep.mubr.f32.mxu0 0.0
    %1575 = vmatmul.mubr.f32.gmra.mrb[0].mxu0 %v808
    %v1576 = vpop.f32.mrb[0].mxu0
    %v1577 = vadd.f32 0.0, %v1576
    %v1578 = vpop.f32.mrb[0].mxu0
    %1579 = vdwg.mxu0
    %1580 = vmatprep.subr.mxu0 0.0
    %1581 = vmatpush1.msra.mxu0 %v519
    %1582 = vmatprep.subr.mxu0 0.0
    %1583 = vmatpush1.msra.mxu0 %v524
    %1584 = vmatprep.subr.mxu0 0.0
    %1585 = vmatpush1.msra.mxu0 0.0
    %1586 = vmatprep.subr.mxu0 0.0
    %1587 = vmatpush1.msra.mxu0 0.0
    %1588 = vmatprep.subr.mxu0 0.0
    %1589 = vmatpush1.msra.mxu0 0.0
    %1590 = vmatprep.subr.mxu0 0.0
    %1591 = vmatpush1.msra.mxu0 0.0
    %1592 = vmatprep.subr.mxu0 0.0
    %1593 = vmatpush1.msra.mxu0 0.0
    %1594 = vmatprep.subr.mxu0 0.0
    %1595 = vmatpush1.msra.mxu0 0.0
    %1596 = vmatprep.subr.mxu0 0.0
    %1597 = vmatpush1.msra.mxu0 0.0
    %1598 = vmatprep.subr.mxu0 0.0
    %1599 = vmatpush1.msra.mxu0 0.0
    %1600 = vmatprep.subr.mxu0 0.0
    %1601 = vmatpush1.msra.mxu0 0.0
    %1602 = vmatprep.subr.mxu0 0.0
    %1603 = vmatpush1.msra.mxu0 0.0
    %1604 = vmatprep.subr.mxu0 0.0
    %1605 = vmatpush1.msra.mxu0 0.0
    %1606 = vmatprep.subr.mxu0 0.0
    %1607 = vmatpush1.msra.mxu0 0.0
    %1608 = vmatprep.subr.mxu0 0.0
    %1609 = vmatpush1.msra.mxu0 0.0
    %1610 = vmatprep.subr.mxu0 0.0
    %1611 = vmatpush1.msra.mxu0 0.0
    %1612 = vmatprep.subr.mxu0 0.0
    %1613 = vmatpush1.msra.mxu0 0.0
    %1614 = vmatprep.subr.mxu0 0.0
    %1615 = vmatpush1.msra.mxu0 0.0
    %1616 = vmatprep.subr.mxu0 0.0
    %1617 = vmatpush1.msra.mxu0 0.0
    %1618 = vmatprep.subr.mxu0 0.0
    %1619 = vmatpush1.msra.mxu0 0.0
    %1620 = vmatprep.subr.mxu0 0.0
    %1621 = vmatpush1.msra.mxu0 0.0
    %1622 = vmatprep.subr.mxu0 0.0
    %1623 = vmatpush1.msra.mxu0 0.0
    %1624 = vmatprep.subr.mxu0 0.0
    %1625 = vmatpush1.msra.mxu0 0.0
    %1626 = vmatprep.subr.mxu0 0.0
    %1627 = vmatpush1.msra.mxu0 0.0
    %1628 = vmatprep.subr.mxu0 0.0
    %1629 = vmatpush1.msra.mxu0 0.0
    %1630 = vmatprep.subr.mxu0 0.0
    %1631 = vmatpush1.msra.mxu0 0.0
    %1632 = vmatprep.subr.mxu0 0.0
    %1633 = vmatpush1.msra.mxu0 0.0
    %1634 = vmatprep.subr.mxu0 0.0
    %1635 = vmatpush1.msra.mxu0 0.0
    %1636 = vmatprep.subr.mxu0 0.0
    %1637 = vmatpush1.msra.mxu0 0.0
    %1638 = vmatprep.subr.mxu0 0.0
    %1639 = vmatpush1.msra.mxu0 0.0
    %1640 = vmatprep.subr.mxu0 0.0
    %1641 = vmatpush1.msra.mxu0 0.0
    %1642 = vmatprep.subr.mxu0 0.0
    %1643 = vmatpush1.msra.mxu0 0.0
    %1644 = vmatprep.mubr.f32.mxu0 0.0
    %1645 = vmatmul.mubr.f32.gmra.mrb[0].mxu0 %v808
    %v1646 = vpop.f32.mrb[0].mxu0
    %v1647 = vadd.f32 0.0, %v1646
    %v1648 = vpop.f32.mrb[0].mxu0
    %1649 = vdwg.mxu0
    %1650 = vmatprep.subr.mxu0 0.0
    %1651 = vmatpush1.msra.mxu0 %v529
    %1652 = vmatprep.subr.mxu0 0.0
    %1653 = vmatpush1.msra.mxu0 %v534
    %1654 = vmatprep.subr.mxu0 0.0
    %1655 = vmatpush1.msra.mxu0 0.0
    %1656 = vmatprep.subr.mxu0 0.0
    %1657 = vmatpush1.msra.mxu0 0.0
    %1658 = vmatprep.subr.mxu0 0.0
    %1659 = vmatpush1.msra.mxu0 0.0
    %1660 = vmatprep.subr.mxu0 0.0
    %1661 = vmatpush1.msra.mxu0 0.0
    %1662 = vmatprep.subr.mxu0 0.0
    %1663 = vmatpush1.msra.mxu0 0.0
    %1664 = vmatprep.subr.mxu0 0.0
    %1665 = vmatpush1.msra.mxu0 0.0
    %1666 = vmatprep.subr.mxu0 0.0
    %1667 = vmatpush1.msra.mxu0 0.0
    %1668 = vmatprep.subr.mxu0 0.0
    %1669 = vmatpush1.msra.mxu0 0.0
    %1670 = vmatprep.subr.mxu0 0.0
    %1671 = vmatpush1.msra.mxu0 0.0
    %1672 = vmatprep.subr.mxu0 0.0
    %1673 = vmatpush1.msra.mxu0 0.0
    %1674 = vmatprep.subr.mxu0 0.0
    %1675 = vmatpush1.msra.mxu0 0.0
    %1676 = vmatprep.subr.mxu0 0.0
    %1677 = vmatpush1.msra.mxu0 0.0
    %1678 = vmatprep.subr.mxu0 0.0
    %1679 = vmatpush1.msra.mxu0 0.0
    %1680 = vmatprep.subr.mxu0 0.0
    %1681 = vmatpush1.msra.mxu0 0.0
    %1682 = vmatprep.subr.mxu0 0.0
    %1683 = vmatpush1.msra.mxu0 0.0
    %1684 = vmatprep.subr.mxu0 0.0
    %1685 = vmatpush1.msra.mxu0 0.0
    %1686 = vmatprep.subr.mxu0 0.0
    %1687 = vmatpush1.msra.mxu0 0.0
    %1688 = vmatprep.subr.mxu0 0.0
    %1689 = vmatpush1.msra.mxu0 0.0
    %1690 = vmatprep.subr.mxu0 0.0
    %1691 = vmatpush1.msra.mxu0 0.0
    %1692 = vmatprep.subr.mxu0 0.0
    %1693 = vmatpush1.msra.mxu0 0.0
    %1694 = vmatprep.subr.mxu0 0.0
    %1695 = vmatpush1.msra.mxu0 0.0
    %1696 = vmatprep.subr.mxu0 0.0
    %1697 = vmatpush1.msra.mxu0 0.0
    %1698 = vmatprep.subr.mxu0 0.0
    %1699 = vmatpush1.msra.mxu0 0.0
    %1700 = vmatprep.subr.mxu0 0.0
    %1701 = vmatpush1.msra.mxu0 0.0
    %1702 = vmatprep.subr.mxu0 0.0
    %1703 = vmatpush1.msra.mxu0 0.0
    %1704 = vmatprep.subr.mxu0 0.0
    %1705 = vmatpush1.msra.mxu0 0.0
    %1706 = vmatprep.subr.mxu0 0.0
    %1707 = vmatpush1.msra.mxu0 0.0
    %1708 = vmatprep.subr.mxu0 0.0
    %1709 = vmatpush1.msra.mxu0 0.0
    %1710 = vmatprep.subr.mxu0 0.0
    %1711 = vmatpush1.msra.mxu0 0.0
    %1712 = vmatprep.subr.mxu0 0.0
    %1713 = vmatpush1.msra.mxu0 0.0
    %1714 = vmatprep.mubr.f32.mxu0 0.0
    %1715 = vmatmul.mubr.f32.gmra.mrb[0].mxu0 %v808
    %v1716 = vpop.f32.mrb[0].mxu0
    %v1717 = vadd.f32 0.0, %v1716
    %v1718 = vpop.f32.mrb[0].mxu0
    %1719 = vdwg.mxu0
    %1720 = vmatprep.subr.mxu0 0.0
    %1721 = vmatpush1.msra.mxu0 %v539
    %1722 = vmatprep.subr.mxu0 0.0
    %1723 = vmatpush1.msra.mxu0 %v544
    %1724 = vmatprep.subr.mxu0 0.0
    %1725 = vmatpush1.msra.mxu0 0.0
    %1726 = vmatprep.subr.mxu0 0.0
    %1727 = vmatpush1.msra.mxu0 0.0
    %1728 = vmatprep.subr.mxu0 0.0
    %1729 = vmatpush1.msra.mxu0 0.0
    %1730 = vmatprep.subr.mxu0 0.0
    %1731 = vmatpush1.msra.mxu0 0.0
    %1732 = vmatprep.subr.mxu0 0.0
    %1733 = vmatpush1.msra.mxu0 0.0
    %1734 = vmatprep.subr.mxu0 0.0
    %1735 = vmatpush1.msra.mxu0 0.0
    %1736 = vmatprep.subr.mxu0 0.0
    %1737 = vmatpush1.msra.mxu0 0.0
    %1738 = vmatprep.subr.mxu0 0.0
    %1739 = vmatpush1.msra.mxu0 0.0
    %1740 = vmatprep.subr.mxu0 0.0
    %1741 = vmatpush1.msra.mxu0 0.0
    %1742 = vmatprep.subr.mxu0 0.0
    %1743 = vmatpush1.msra.mxu0 0.0
    %1744 = vmatprep.subr.mxu0 0.0
    %1745 = vmatpush1.msra.mxu0 0.0
    %1746 = vmatprep.subr.mxu0 0.0
    %1747 = vmatpush1.msra.mxu0 0.0
    %1748 = vmatprep.subr.mxu0 0.0
    %1749 = vmatpush1.msra.mxu0 0.0
    %1750 = vmatprep.subr.mxu0 0.0
    %1751 = vmatpush1.msra.mxu0 0.0
    %1752 = vmatprep.subr.mxu0 0.0
    %1753 = vmatpush1.msra.mxu0 0.0
    %1754 = vmatprep.subr.mxu0 0.0
    %1755 = vmatpush1.msra.mxu0 0.0
    %1756 = vmatprep.subr.mxu0 0.0
    %1757 = vmatpush1.msra.mxu0 0.0
    %1758 = vmatprep.subr.mxu0 0.0
    %1759 = vmatpush1.msra.mxu0 0.0
    %1760 = vmatprep.subr.mxu0 0.0
    %1761 = vmatpush1.msra.mxu0 0.0
    %1762 = vmatprep.subr.mxu0 0.0
    %1763 = vmatpush1.msra.mxu0 0.0
    %1764 = vmatprep.subr.mxu0 0.0
    %1765 = vmatpush1.msra.mxu0 0.0
    %1766 = vmatprep.subr.mxu0 0.0
    %1767 = vmatpush1.msra.mxu0 0.0
    %1768 = vmatprep.subr.mxu0 0.0
    %1769 = vmatpush1.msra.mxu0 0.0
    %1770 = vmatprep.subr.mxu0 0.0
    %1771 = vmatpush1.msra.mxu0 0.0
    %1772 = vmatprep.subr.mxu0 0.0
    %1773 = vmatpush1.msra.mxu0 0.0
    %1774 = vmatprep.subr.mxu0 0.0
    %1775 = vmatpush1.msra.mxu0 0.0
    %1776 = vmatprep.subr.mxu0 0.0
    %1777 = vmatpush1.msra.mxu0 0.0
    %1778 = vmatprep.subr.mxu0 0.0
    %1779 = vmatpush1.msra.mxu0 0.0
    %1780 = vmatprep.subr.mxu0 0.0
    %1781 = vmatpush1.msra.mxu0 0.0
    %1782 = vmatprep.subr.mxu0 0.0
    %1783 = vmatpush1.msra.mxu0 0.0
    %1784 = vmatprep.mubr.f32.mxu0 0.0
    %1785 = vmatmul.mubr.f32.gmra.mrb[0].mxu0 %v808
    %v1786 = vpop.f32.mrb[0].mxu0
    %v1787 = vadd.f32 0.0, %v1786
    %v1788 = vpop.f32.mrb[0].mxu0
    %1789 = vdwg.mxu0
    %1790 = vmatprep.subr.mxu0 0.0
    %1791 = vmatpush1.msra.mxu0 %v549
    %1792 = vmatprep.subr.mxu0 0.0
    %1793 = vmatpush1.msra.mxu0 %v554
    %1794 = vmatprep.subr.mxu0 0.0
    %1795 = vmatpush1.msra.mxu0 0.0
    %1796 = vmatprep.subr.mxu0 0.0
    %1797 = vmatpush1.msra.mxu0 0.0
    %1798 = vmatprep.subr.mxu0 0.0
    %1799 = vmatpush1.msra.mxu0 0.0
    %1800 = vmatprep.subr.mxu0 0.0
    %1801 = vmatpush1.msra.mxu0 0.0
    %1802 = vmatprep.subr.mxu0 0.0
    %1803 = vmatpush1.msra.mxu0 0.0
    %1804 = vmatprep.subr.mxu0 0.0
    %1805 = vmatpush1.msra.mxu0 0.0
    %1806 = vmatprep.subr.mxu0 0.0
    %1807 = vmatpush1.msra.mxu0 0.0
    %1808 = vmatprep.subr.mxu0 0.0
    %1809 = vmatpush1.msra.mxu0 0.0
    %1810 = vmatprep.subr.mxu0 0.0
    %1811 = vmatpush1.msra.mxu0 0.0
    %1812 = vmatprep.subr.mxu0 0.0
    %1813 = vmatpush1.msra.mxu0 0.0
    %1814 = vmatprep.subr.mxu0 0.0
    %1815 = vmatpush1.msra.mxu0 0.0
    %1816 = vmatprep.subr.mxu0 0.0
    %1817 = vmatpush1.msra.mxu0 0.0
    %1818 = vmatprep.subr.mxu0 0.0
    %1819 = vmatpush1.msra.mxu0 0.0
    %1820 = vmatprep.subr.mxu0 0.0
    %1821 = vmatpush1.msra.mxu0 0.0
    %1822 = vmatprep.subr.mxu0 0.0
    %1823 = vmatpush1.msra.mxu0 0.0
    %1824 = vmatprep.subr.mxu0 0.0
    %1825 = vmatpush1.msra.mxu0 0.0
    %1826 = vmatprep.subr.mxu0 0.0
    %1827 = vmatpush1.msra.mxu0 0.0
    %1828 = vmatprep.subr.mxu0 0.0
    %1829 = vmatpush1.msra.mxu0 0.0
    %1830 = vmatprep.subr.mxu0 0.0
    %1831 = vmatpush1.msra.mxu0 0.0
    %1832 = vmatprep.subr.mxu0 0.0
    %1833 = vmatpush1.msra.mxu0 0.0
    %1834 = vmatprep.subr.mxu0 0.0
    %1835 = vmatpush1.msra.mxu0 0.0
    %1836 = vmatprep.subr.mxu0 0.0
    %1837 = vmatpush1.msra.mxu0 0.0
    %1838 = vmatprep.subr.mxu0 0.0
    %1839 = vmatpush1.msra.mxu0 0.0
    %1840 = vmatprep.subr.mxu0 0.0
    %1841 = vmatpush1.msra.mxu0 0.0
    %1842 = vmatprep.subr.mxu0 0.0
    %1843 = vmatpush1.msra.mxu0 0.0
    %1844 = vmatprep.subr.mxu0 0.0
    %1845 = vmatpush1.msra.mxu0 0.0
    %1846 = vmatprep.subr.mxu0 0.0
    %1847 = vmatpush1.msra.mxu0 0.0
    %1848 = vmatprep.subr.mxu0 0.0
    %1849 = vmatpush1.msra.mxu0 0.0
    %1850 = vmatprep.subr.mxu0 0.0
    %1851 = vmatpush1.msra.mxu0 0.0
    %1852 = vmatprep.subr.mxu0 0.0
    %1853 = vmatpush1.msra.mxu0 0.0
    %1854 = vmatprep.mubr.f32.mxu0 0.0
    %1855 = vmatmul.mubr.f32.gmra.mrb[0].mxu0 %v808
    %v1856 = vpop.f32.mrb[0].mxu0
    %v1857 = vadd.f32 0.0, %v1856
    %v1858 = vpop.f32.mrb[0].mxu0
    %1859 = vdwg.mxu0
    %1860 = vmatprep.subr.mxu0 0.0
    %1861 = vmatpush1.msra.mxu0 %v559
    %1862 = vmatprep.subr.mxu0 0.0
    %1863 = vmatpush1.msra.mxu0 %v564
    %1864 = vmatprep.subr.mxu0 0.0
    %1865 = vmatpush1.msra.mxu0 0.0
    %1866 = vmatprep.subr.mxu0 0.0
    %1867 = vmatpush1.msra.mxu0 0.0
    %1868 = vmatprep.subr.mxu0 0.0
    %1869 = vmatpush1.msra.mxu0 0.0
    %1870 = vmatprep.subr.mxu0 0.0
    %1871 = vmatpush1.msra.mxu0 0.0
    %1872 = vmatprep.subr.mxu0 0.0
    %1873 = vmatpush1.msra.mxu0 0.0
    %1874 = vmatprep.subr.mxu0 0.0
    %1875 = vmatpush1.msra.mxu0 0.0
    %1876 = vmatprep.subr.mxu0 0.0
    %1877 = vmatpush1.msra.mxu0 0.0
    %1878 = vmatprep.subr.mxu0 0.0
    %1879 = vmatpush1.msra.mxu0 0.0
    %1880 = vmatprep.subr.mxu0 0.0
    %1881 = vmatpush1.msra.mxu0 0.0
    %1882 = vmatprep.subr.mxu0 0.0
    %1883 = vmatpush1.msra.mxu0 0.0
    %1884 = vmatprep.subr.mxu0 0.0
    %1885 = vmatpush1.msra.mxu0 0.0
    %1886 = vmatprep.subr.mxu0 0.0
    %1887 = vmatpush1.msra.mxu0 0.0
    %1888 = vmatprep.subr.mxu0 0.0
    %1889 = vmatpush1.msra.mxu0 0.0
    %1890 = vmatprep.subr.mxu0 0.0
    %1891 = vmatpush1.msra.mxu0 0.0
    %1892 = vmatprep.subr.mxu0 0.0
    %1893 = vmatpush1.msra.mxu0 0.0
    %1894 = vmatprep.subr.mxu0 0.0
    %1895 = vmatpush1.msra.mxu0 0.0
    %1896 = vmatprep.subr.mxu0 0.0
    %1897 = vmatpush1.msra.mxu0 0.0
    %1898 = vmatprep.subr.mxu0 0.0
    %1899 = vmatpush1.msra.mxu0 0.0
    %1900 = vmatprep.subr.mxu0 0.0
    %1901 = vmatpush1.msra.mxu0 0.0
    %1902 = vmatprep.subr.mxu0 0.0
    %1903 = vmatpush1.msra.mxu0 0.0
    %1904 = vmatprep.subr.mxu0 0.0
    %1905 = vmatpush1.msra.mxu0 0.0
    %1906 = vmatprep.subr.mxu0 0.0
    %1907 = vmatpush1.msra.mxu0 0.0
    %1908 = vmatprep.subr.mxu0 0.0
    %1909 = vmatpush1.msra.mxu0 0.0
    %1910 = vmatprep.subr.mxu0 0.0
    %1911 = vmatpush1.msra.mxu0 0.0
    %1912 = vmatprep.subr.mxu0 0.0
    %1913 = vmatpush1.msra.mxu0 0.0
    %1914 = vmatprep.subr.mxu0 0.0
    %1915 = vmatpush1.msra.mxu0 0.0
    %1916 = vmatprep.subr.mxu0 0.0
    %1917 = vmatpush1.msra.mxu0 0.0
    %1918 = vmatprep.subr.mxu0 0.0
    %1919 = vmatpush1.msra.mxu0 0.0
    %1920 = vmatprep.subr.mxu0 0.0
    %1921 = vmatpush1.msra.mxu0 0.0
    %1922 = vmatprep.subr.mxu0 0.0
    %1923 = vmatpush1.msra.mxu0 0.0
    %1924 = vmatprep.mubr.f32.mxu0 0.0
    %1925 = vmatmul.mubr.f32.gmra.mrb[0].mxu0 %v808
    %v1926 = vpop.f32.mrb[0].mxu0
    %v1927 = vadd.f32 0.0, %v1926
    %v1928 = vpop.f32.mrb[0].mxu0
    %1929 = vdwg.mxu0
    %1930 = vmatprep.subr.mxu0 0.0
    %1931 = vmatpush1.msra.mxu0 %v569
    %1932 = vmatprep.subr.mxu0 0.0
    %1933 = vmatpush1.msra.mxu0 %v574
    %1934 = vmatprep.subr.mxu0 0.0
    %1935 = vmatpush1.msra.mxu0 0.0
    %1936 = vmatprep.subr.mxu0 0.0
    %1937 = vmatpush1.msra.mxu0 0.0
    %1938 = vmatprep.subr.mxu0 0.0
    %1939 = vmatpush1.msra.mxu0 0.0
    %1940 = vmatprep.subr.mxu0 0.0
    %1941 = vmatpush1.msra.mxu0 0.0
    %1942 = vmatprep.subr.mxu0 0.0
    %1943 = vmatpush1.msra.mxu0 0.0
    %1944 = vmatprep.subr.mxu0 0.0
    %1945 = vmatpush1.msra.mxu0 0.0
    %1946 = vmatprep.subr.mxu0 0.0
    %1947 = vmatpush1.msra.mxu0 0.0
    %1948 = vmatprep.subr.mxu0 0.0
    %1949 = vmatpush1.msra.mxu0 0.0
    %1950 = vmatprep.subr.mxu0 0.0
    %1951 = vmatpush1.msra.mxu0 0.0
    %1952 = vmatprep.subr.mxu0 0.0
    %1953 = vmatpush1.msra.mxu0 0.0
    %1954 = vmatprep.subr.mxu0 0.0
    %1955 = vmatpush1.msra.mxu0 0.0
    %1956 = vmatprep.subr.mxu0 0.0
    %1957 = vmatpush1.msra.mxu0 0.0
    %1958 = vmatprep.subr.mxu0 0.0
    %1959 = vmatpush1.msra.mxu0 0.0
    %1960 = vmatprep.subr.mxu0 0.0
    %1961 = vmatpush1.msra.mxu0 0.0
    %1962 = vmatprep.subr.mxu0 0.0
    %1963 = vmatpush1.msra.mxu0 0.0
    %1964 = vmatprep.subr.mxu0 0.0
    %1965 = vmatpush1.msra.mxu0 0.0
    %1966 = vmatprep.subr.mxu0 0.0
    %1967 = vmatpush1.msra.mxu0 0.0
    %1968 = vmatprep.subr.mxu0 0.0
    %1969 = vmatpush1.msra.mxu0 0.0
    %1970 = vmatprep.subr.mxu0 0.0
    %1971 = vmatpush1.msra.mxu0 0.0
    %1972 = vmatprep.subr.mxu0 0.0
    %1973 = vmatpush1.msra.mxu0 0.0
    %1974 = vmatprep.subr.mxu0 0.0
    %1975 = vmatpush1.msra.mxu0 0.0
    %1976 = vmatprep.subr.mxu0 0.0
    %1977 = vmatpush1.msra.mxu0 0.0
    %1978 = vmatprep.subr.mxu0 0.0
    %1979 = vmatpush1.msra.mxu0 0.0
    %1980 = vmatprep.subr.mxu0 0.0
    %1981 = vmatpush1.msra.mxu0 0.0
    %1982 = vmatprep.subr.mxu0 0.0
    %1983 = vmatpush1.msra.mxu0 0.0
    %1984 = vmatprep.subr.mxu0 0.0
    %1985 = vmatpush1.msra.mxu0 0.0
    %1986 = vmatprep.subr.mxu0 0.0
    %1987 = vmatpush1.msra.mxu0 0.0
    %1988 = vmatprep.subr.mxu0 0.0
    %1989 = vmatpush1.msra.mxu0 0.0
    %1990 = vmatprep.subr.mxu0 0.0
    %1991 = vmatpush1.msra.mxu0 0.0
    %1992 = vmatprep.subr.mxu0 0.0
    %1993 = vmatpush1.msra.mxu0 0.0
    %1994 = vmatprep.mubr.f32.mxu0 0.0
    %1995 = vmatmul.mubr.f32.gmra.mrb[0].mxu0 %v808
    %v1996 = vpop.f32.mrb[0].mxu0
    %v1997 = vadd.f32 0.0, %v1996
    %v1998 = vpop.f32.mrb[0].mxu0
    %1999 = vdwg.mxu0
    %2000 = vmatprep.subr.mxu0 0.0
    %2001 = vmatpush1.msra.mxu0 %v579
    %2002 = vmatprep.subr.mxu0 0.0
    %2003 = vmatpush1.msra.mxu0 %v584
    %2004 = vmatprep.subr.mxu0 0.0
    %2005 = vmatpush1.msra.mxu0 0.0
    %2006 = vmatprep.subr.mxu0 0.0
    %2007 = vmatpush1.msra.mxu0 0.0
    %2008 = vmatprep.subr.mxu0 0.0
    %2009 = vmatpush1.msra.mxu0 0.0
    %2010 = vmatprep.subr.mxu0 0.0
    %2011 = vmatpush1.msra.mxu0 0.0
    %2012 = vmatprep.subr.mxu0 0.0
    %2013 = vmatpush1.msra.mxu0 0.0
    %2014 = vmatprep.subr.mxu0 0.0
    %2015 = vmatpush1.msra.mxu0 0.0
    %2016 = vmatprep.subr.mxu0 0.0
    %2017 = vmatpush1.msra.mxu0 0.0
    %2018 = vmatprep.subr.mxu0 0.0
    %2019 = vmatpush1.msra.mxu0 0.0
    %2020 = vmatprep.subr.mxu0 0.0
    %2021 = vmatpush1.msra.mxu0 0.0
    %2022 = vmatprep.subr.mxu0 0.0
    %2023 = vmatpush1.msra.mxu0 0.0
    %2024 = vmatprep.subr.mxu0 0.0
    %2025 = vmatpush1.msra.mxu0 0.0
    %2026 = vmatprep.subr.mxu0 0.0
    %2027 = vmatpush1.msra.mxu0 0.0
    %2028 = vmatprep.subr.mxu0 0.0
    %2029 = vmatpush1.msra.mxu0 0.0
    %2030 = vmatprep.subr.mxu0 0.0
    %2031 = vmatpush1.msra.mxu0 0.0
    %2032 = vmatprep.subr.mxu0 0.0
    %2033 = vmatpush1.msra.mxu0 0.0
    %2034 = vmatprep.subr.mxu0 0.0
    %2035 = vmatpush1.msra.mxu0 0.0
    %2036 = vmatprep.subr.mxu0 0.0
    %2037 = vmatpush1.msra.mxu0 0.0
    %2038 = vmatprep.subr.mxu0 0.0
    %2039 = vmatpush1.msra.mxu0 0.0
    %2040 = vmatprep.subr.mxu0 0.0
    %2041 = vmatpush1.msra.mxu0 0.0
    %2042 = vmatprep.subr.mxu0 0.0
    %2043 = vmatpush1.msra.mxu0 0.0
    %2044 = vmatprep.subr.mxu0 0.0
    %2045 = vmatpush1.msra.mxu0 0.0
    %2046 = vmatprep.subr.mxu0 0.0
    %2047 = vmatpush1.msra.mxu0 0.0
    %2048 = vmatprep.subr.mxu0 0.0
    %2049 = vmatpush1.msra.mxu0 0.0
    %2050 = vmatprep.subr.mxu0 0.0
    %2051 = vmatpush1.msra.mxu0 0.0
    %2052 = vmatprep.subr.mxu0 0.0
    %2053 = vmatpush1.msra.mxu0 0.0
    %2054 = vmatprep.subr.mxu0 0.0
    %2055 = vmatpush1.msra.mxu0 0.0
    %2056 = vmatprep.subr.mxu0 0.0
    %2057 = vmatpush1.msra.mxu0 0.0
    %2058 = vmatprep.subr.mxu0 0.0
    %2059 = vmatpush1.msra.mxu0 0.0
    %2060 = vmatprep.subr.mxu0 0.0
    %2061 = vmatpush1.msra.mxu0 0.0
    %2062 = vmatprep.subr.mxu0 0.0
    %2063 = vmatpush1.msra.mxu0 0.0
    %2064 = vmatprep.mubr.f32.mxu0 0.0
    %2065 = vmatmul.mubr.f32.gmra.mrb[0].mxu0 %v808
    %v2066 = vpop.f32.mrb[0].mxu0
    %v2067 = vadd.f32 0.0, %v2066
    %v2068 = vpop.f32.mrb[0].mxu0
    %2069 = vdwg.mxu0
    %2070 = vmatprep.subr.mxu0 0.0
    %2071 = vmatpush1.msra.mxu0 %v589
    %2072 = vmatprep.subr.mxu0 0.0
    %2073 = vmatpush1.msra.mxu0 %v594
    %2074 = vmatprep.subr.mxu0 0.0
    %2075 = vmatpush1.msra.mxu0 0.0
    %2076 = vmatprep.subr.mxu0 0.0
    %2077 = vmatpush1.msra.mxu0 0.0
    %2078 = vmatprep.subr.mxu0 0.0
    %2079 = vmatpush1.msra.mxu0 0.0
    %2080 = vmatprep.subr.mxu0 0.0
    %2081 = vmatpush1.msra.mxu0 0.0
    %2082 = vmatprep.subr.mxu0 0.0
    %2083 = vmatpush1.msra.mxu0 0.0
    %2084 = vmatprep.subr.mxu0 0.0
    %2085 = vmatpush1.msra.mxu0 0.0
    %2086 = vmatprep.subr.mxu0 0.0
    %2087 = vmatpush1.msra.mxu0 0.0
    %2088 = vmatprep.subr.mxu0 0.0
    %2089 = vmatpush1.msra.mxu0 0.0
    %2090 = vmatprep.subr.mxu0 0.0
    %2091 = vmatpush1.msra.mxu0 0.0
    %2092 = vmatprep.subr.mxu0 0.0
    %2093 = vmatpush1.msra.mxu0 0.0
    %2094 = vmatprep.subr.mxu0 0.0
    %2095 = vmatpush1.msra.mxu0 0.0
    %2096 = vmatprep.subr.mxu0 0.0
    %2097 = vmatpush1.msra.mxu0 0.0
    %2098 = vmatprep.subr.mxu0 0.0
    %2099 = vmatpush1.msra.mxu0 0.0
    %2100 = vmatprep.subr.mxu0 0.0
    %2101 = vmatpush1.msra.mxu0 0.0
    %2102 = vmatprep.subr.mxu0 0.0
    %2103 = vmatpush1.msra.mxu0 0.0
    %2104 = vmatprep.subr.mxu0 0.0
    %2105 = vmatpush1.msra.mxu0 0.0
    %2106 = vmatprep.subr.mxu0 0.0
    %2107 = vmatpush1.msra.mxu0 0.0
    %2108 = vmatprep.subr.mxu0 0.0
    %2109 = vmatpush1.msra.mxu0 0.0
    %2110 = vmatprep.subr.mxu0 0.0
    %2111 = vmatpush1.msra.mxu0 0.0
    %2112 = vmatprep.subr.mxu0 0.0
    %2113 = vmatpush1.msra.mxu0 0.0
    %2114 = vmatprep.subr.mxu0 0.0
    %2115 = vmatpush1.msra.mxu0 0.0
    %2116 = vmatprep.subr.mxu0 0.0
    %2117 = vmatpush1.msra.mxu0 0.0
    %2118 = vmatprep.subr.mxu0 0.0
    %2119 = vmatpush1.msra.mxu0 0.0
    %2120 = vmatprep.subr.mxu0 0.0
    %2121 = vmatpush1.msra.mxu0 0.0
    %2122 = vmatprep.subr.mxu0 0.0
    %2123 = vmatpush1.msra.mxu0 0.0
    %2124 = vmatprep.subr.mxu0 0.0
    %2125 = vmatpush1.msra.mxu0 0.0
    %2126 = vmatprep.subr.mxu0 0.0
    %2127 = vmatpush1.msra.mxu0 0.0
    %2128 = vmatprep.subr.mxu0 0.0
    %2129 = vmatpush1.msra.mxu0 0.0
    %2130 = vmatprep.subr.mxu0 0.0
    %2131 = vmatpush1.msra.mxu0 0.0
    %2132 = vmatprep.subr.mxu0 0.0
    %2133 = vmatpush1.msra.mxu0 0.0
    %2134 = vmatprep.mubr.f32.mxu0 0.0
    %2135 = vmatmul.mubr.f32.gmra.mrb[0].mxu0 %v808
    %v2136 = vpop.f32.mrb[0].mxu0
    %v2137 = vadd.f32 0.0, %v2136
    %v2138 = vpop.f32.mrb[0].mxu0
    %2139 = vdwg.mxu0
    %2140 = vmatprep.subr.mxu0 0.0
    %2141 = vmatpush1.msra.mxu0 %v599
    %2142 = vmatprep.subr.mxu0 0.0
    %2143 = vmatpush1.msra.mxu0 %v604
    %2144 = vmatprep.subr.mxu0 0.0
    %2145 = vmatpush1.msra.mxu0 0.0
    %2146 = vmatprep.subr.mxu0 0.0
    %2147 = vmatpush1.msra.mxu0 0.0
    %2148 = vmatprep.subr.mxu0 0.0
    %2149 = vmatpush1.msra.mxu0 0.0
    %2150 = vmatprep.subr.mxu0 0.0
    %2151 = vmatpush1.msra.mxu0 0.0
    %2152 = vmatprep.subr.mxu0 0.0
    %2153 = vmatpush1.msra.mxu0 0.0
    %2154 = vmatprep.subr.mxu0 0.0
    %2155 = vmatpush1.msra.mxu0 0.0
    %2156 = vmatprep.subr.mxu0 0.0
    %2157 = vmatpush1.msra.mxu0 0.0
    %2158 = vmatprep.subr.mxu0 0.0
    %2159 = vmatpush1.msra.mxu0 0.0
    %2160 = vmatprep.subr.mxu0 0.0
    %2161 = vmatpush1.msra.mxu0 0.0
    %2162 = vmatprep.subr.mxu0 0.0
    %2163 = vmatpush1.msra.mxu0 0.0
    %2164 = vmatprep.subr.mxu0 0.0
    %2165 = vmatpush1.msra.mxu0 0.0
    %2166 = vmatprep.subr.mxu0 0.0
    %2167 = vmatpush1.msra.mxu0 0.0
    %2168 = vmatprep.subr.mxu0 0.0
    %2169 = vmatpush1.msra.mxu0 0.0
    %2170 = vmatprep.subr.mxu0 0.0
    %2171 = vmatpush1.msra.mxu0 0.0
    %2172 = vmatprep.subr.mxu0 0.0
    %2173 = vmatpush1.msra.mxu0 0.0
    %2174 = vmatprep.subr.mxu0 0.0
    %2175 = vmatpush1.msra.mxu0 0.0
    %2176 = vmatprep.subr.mxu0 0.0
    %2177 = vmatpush1.msra.mxu0 0.0
    %2178 = vmatprep.subr.mxu0 0.0
    %2179 = vmatpush1.msra.mxu0 0.0
    %2180 = vmatprep.subr.mxu0 0.0
    %2181 = vmatpush1.msra.mxu0 0.0
    %2182 = vmatprep.subr.mxu0 0.0
    %2183 = vmatpush1.msra.mxu0 0.0
    %2184 = vmatprep.subr.mxu0 0.0
    %2185 = vmatpush1.msra.mxu0 0.0
    %2186 = vmatprep.subr.mxu0 0.0
    %2187 = vmatpush1.msra.mxu0 0.0
    %2188 = vmatprep.subr.mxu0 0.0
    %2189 = vmatpush1.msra.mxu0 0.0
    %2190 = vmatprep.subr.mxu0 0.0
    %2191 = vmatpush1.msra.mxu0 0.0
    %2192 = vmatprep.subr.mxu0 0.0
    %2193 = vmatpush1.msra.mxu0 0.0
    %2194 = vmatprep.subr.mxu0 0.0
    %2195 = vmatpush1.msra.mxu0 0.0
    %2196 = vmatprep.subr.mxu0 0.0
    %2197 = vmatpush1.msra.mxu0 0.0
    %2198 = vmatprep.subr.mxu0 0.0
    %2199 = vmatpush1.msra.mxu0 0.0
    %2200 = vmatprep.subr.mxu0 0.0
    %2201 = vmatpush1.msra.mxu0 0.0
    %2202 = vmatprep.subr.mxu0 0.0
    %2203 = vmatpush1.msra.mxu0 0.0
    %2204 = vmatprep.mubr.f32.mxu0 0.0
    %2205 = vmatmul.mubr.f32.gmra.mrb[0].mxu0 %v808
    %v2206 = vpop.f32.mrb[0].mxu0
    %v2207 = vadd.f32 0.0, %v2206
    %v2208 = vpop.f32.mrb[0].mxu0
    %2209 = vdwg.mxu0
    %2210 = vmatprep.subr.mxu0 0.0
    %2211 = vmatpush1.msra.mxu0 %v609
    %2212 = vmatprep.subr.mxu0 0.0
    %2213 = vmatpush1.msra.mxu0 %v614
    %2214 = vmatprep.subr.mxu0 0.0
    %2215 = vmatpush1.msra.mxu0 0.0
    %2216 = vmatprep.subr.mxu0 0.0
    %2217 = vmatpush1.msra.mxu0 0.0
    %2218 = vmatprep.subr.mxu0 0.0
    %2219 = vmatpush1.msra.mxu0 0.0
    %2220 = vmatprep.subr.mxu0 0.0
    %2221 = vmatpush1.msra.mxu0 0.0
    %2222 = vmatprep.subr.mxu0 0.0
    %2223 = vmatpush1.msra.mxu0 0.0
    %2224 = vmatprep.subr.mxu0 0.0
    %2225 = vmatpush1.msra.mxu0 0.0
    %2226 = vmatprep.subr.mxu0 0.0
    %2227 = vmatpush1.msra.mxu0 0.0
    %2228 = vmatprep.subr.mxu0 0.0
    %2229 = vmatpush1.msra.mxu0 0.0
    %2230 = vmatprep.subr.mxu0 0.0
    %2231 = vmatpush1.msra.mxu0 0.0
    %2232 = vmatprep.subr.mxu0 0.0
    %2233 = vmatpush1.msra.mxu0 0.0
    %2234 = vmatprep.subr.mxu0 0.0
    %2235 = vmatpush1.msra.mxu0 0.0
    %2236 = vmatprep.subr.mxu0 0.0
    %2237 = vmatpush1.msra.mxu0 0.0
    %2238 = vmatprep.subr.mxu0 0.0
    %2239 = vmatpush1.msra.mxu0 0.0
    %2240 = vmatprep.subr.mxu0 0.0
    %2241 = vmatpush1.msra.mxu0 0.0
    %2242 = vmatprep.subr.mxu0 0.0
    %2243 = vmatpush1.msra.mxu0 0.0
    %2244 = vmatprep.subr.mxu0 0.0
    %2245 = vmatpush1.msra.mxu0 0.0
    %2246 = vmatprep.subr.mxu0 0.0
    %2247 = vmatpush1.msra.mxu0 0.0
    %2248 = vmatprep.subr.mxu0 0.0
    %2249 = vmatpush1.msra.mxu0 0.0
    %2250 = vmatprep.subr.mxu0 0.0
    %2251 = vmatpush1.msra.mxu0 0.0
    %2252 = vmatprep.subr.mxu0 0.0
    %2253 = vmatpush1.msra.mxu0 0.0
    %2254 = vmatprep.subr.mxu0 0.0
    %2255 = vmatpush1.msra.mxu0 0.0
    %2256 = vmatprep.subr.mxu0 0.0
    %2257 = vmatpush1.msra.mxu0 0.0
    %2258 = vmatprep.subr.mxu0 0.0
    %2259 = vmatpush1.msra.mxu0 0.0
    %2260 = vmatprep.subr.mxu0 0.0
    %2261 = vmatpush1.msra.mxu0 0.0
    %2262 = vmatprep.subr.mxu0 0.0
    %2263 = vmatpush1.msra.mxu0 0.0
    %2264 = vmatprep.subr.mxu0 0.0
    %2265 = vmatpush1.msra.mxu0 0.0
    %2266 = vmatprep.subr.mxu0 0.0
    %2267 = vmatpush1.msra.mxu0 0.0
    %2268 = vmatprep.subr.mxu0 0.0
    %2269 = vmatpush1.msra.mxu0 0.0
    %2270 = vmatprep.subr.mxu0 0.0
    %2271 = vmatpush1.msra.mxu0 0.0
    %2272 = vmatprep.subr.mxu0 0.0
    %2273 = vmatpush1.msra.mxu0 0.0
    %2274 = vmatprep.mubr.f32.mxu0 0.0
    %2275 = vmatmul.mubr.f32.gmra.mrb[0].mxu0 %v808
    %v2276 = vpop.f32.mrb[0].mxu0
    %v2277 = vadd.f32 0.0, %v2276
    %v2278 = vpop.f32.mrb[0].mxu0
    %2279 = vdwg.mxu0
    %2280 = vmatprep.subr.mxu0 0.0
    %2281 = vmatpush1.msra.mxu0 %v619
    %2282 = vmatprep.subr.mxu0 0.0
    %2283 = vmatpush1.msra.mxu0 %v624
    %2284 = vmatprep.subr.mxu0 0.0
    %2285 = vmatpush1.msra.mxu0 0.0
    %2286 = vmatprep.subr.mxu0 0.0
    %2287 = vmatpush1.msra.mxu0 0.0
    %2288 = vmatprep.subr.mxu0 0.0
    %2289 = vmatpush1.msra.mxu0 0.0
    %2290 = vmatprep.subr.mxu0 0.0
    %2291 = vmatpush1.msra.mxu0 0.0
    %2292 = vmatprep.subr.mxu0 0.0
    %2293 = vmatpush1.msra.mxu0 0.0
    %2294 = vmatprep.subr.mxu0 0.0
    %2295 = vmatpush1.msra.mxu0 0.0
    %2296 = vmatprep.subr.mxu0 0.0
    %2297 = vmatpush1.msra.mxu0 0.0
    %2298 = vmatprep.subr.mxu0 0.0
    %2299 = vmatpush1.msra.mxu0 0.0
    %2300 = vmatprep.subr.mxu0 0.0
    %2301 = vmatpush1.msra.mxu0 0.0
    %2302 = vmatprep.subr.mxu0 0.0
    %2303 = vmatpush1.msra.mxu0 0.0
    %2304 = vmatprep.subr.mxu0 0.0
    %2305 = vmatpush1.msra.mxu0 0.0
    %2306 = vmatprep.subr.mxu0 0.0
    %2307 = vmatpush1.msra.mxu0 0.0
    %2308 = vmatprep.subr.mxu0 0.0
    %2309 = vmatpush1.msra.mxu0 0.0
    %2310 = vmatprep.subr.mxu0 0.0
    %2311 = vmatpush1.msra.mxu0 0.0
    %2312 = vmatprep.subr.mxu0 0.0
    %2313 = vmatpush1.msra.mxu0 0.0
    %2314 = vmatprep.subr.mxu0 0.0
    %2315 = vmatpush1.msra.mxu0 0.0
    %2316 = vmatprep.subr.mxu0 0.0
    %2317 = vmatpush1.msra.mxu0 0.0
    %2318 = vmatprep.subr.mxu0 0.0
    %2319 = vmatpush1.msra.mxu0 0.0
    %2320 = vmatprep.subr.mxu0 0.0
    %2321 = vmatpush1.msra.mxu0 0.0
    %2322 = vmatprep.subr.mxu0 0.0
    %2323 = vmatpush1.msra.mxu0 0.0
    %2324 = vmatprep.subr.mxu0 0.0
    %2325 = vmatpush1.msra.mxu0 0.0
    %2326 = vmatprep.subr.mxu0 0.0
    %2327 = vmatpush1.msra.mxu0 0.0
    %2328 = vmatprep.subr.mxu0 0.0
    %2329 = vmatpush1.msra.mxu0 0.0
    %2330 = vmatprep.subr.mxu0 0.0
    %2331 = vmatpush1.msra.mxu0 0.0
    %2332 = vmatprep.subr.mxu0 0.0
    %2333 = vmatpush1.msra.mxu0 0.0
    %2334 = vmatprep.subr.mxu0 0.0
    %2335 = vmatpush1.msra.mxu0 0.0
    %2336 = vmatprep.subr.mxu0 0.0
    %2337 = vmatpush1.msra.mxu0 0.0
    %2338 = vmatprep.subr.mxu0 0.0
    %2339 = vmatpush1.msra.mxu0 0.0
    %2340 = vmatprep.subr.mxu0 0.0
    %2341 = vmatpush1.msra.mxu0 0.0
    %2342 = vmatprep.subr.mxu0 0.0
    %2343 = vmatpush1.msra.mxu0 0.0
    %2344 = vmatprep.mubr.f32.mxu0 0.0
    %2345 = vmatmul.mubr.f32.gmra.mrb[0].mxu0 %v808
    %v2346 = vpop.f32.mrb[0].mxu0
    %v2347 = vadd.f32 0.0, %v2346
    %v2348 = vpop.f32.mrb[0].mxu0
    %2349 = vdwg.mxu0
    %2350 = vmatprep.subr.mxu0 0.0
    %2351 = vmatpush1.msra.mxu0 %v629
    %2352 = vmatprep.subr.mxu0 0.0
    %2353 = vmatpush1.msra.mxu0 %v634
    %2354 = vmatprep.subr.mxu0 0.0
    %2355 = vmatpush1.msra.mxu0 0.0
    %2356 = vmatprep.subr.mxu0 0.0
    %2357 = vmatpush1.msra.mxu0 0.0
    %2358 = vmatprep.subr.mxu0 0.0
    %2359 = vmatpush1.msra.mxu0 0.0
    %2360 = vmatprep.subr.mxu0 0.0
    %2361 = vmatpush1.msra.mxu0 0.0
    %2362 = vmatprep.subr.mxu0 0.0
    %2363 = vmatpush1.msra.mxu0 0.0
    %2364 = vmatprep.subr.mxu0 0.0
    %2365 = vmatpush1.msra.mxu0 0.0
    %2366 = vmatprep.subr.mxu0 0.0
    %2367 = vmatpush1.msra.mxu0 0.0
    %2368 = vmatprep.subr.mxu0 0.0
    %2369 = vmatpush1.msra.mxu0 0.0
    %2370 = vmatprep.subr.mxu0 0.0
    %2371 = vmatpush1.msra.mxu0 0.0
    %2372 = vmatprep.subr.mxu0 0.0
    %2373 = vmatpush1.msra.mxu0 0.0
    %2374 = vmatprep.subr.mxu0 0.0
    %2375 = vmatpush1.msra.mxu0 0.0
    %2376 = vmatprep.subr.mxu0 0.0
    %2377 = vmatpush1.msra.mxu0 0.0
    %2378 = vmatprep.subr.mxu0 0.0
    %2379 = vmatpush1.msra.mxu0 0.0
    %2380 = vmatprep.subr.mxu0 0.0
    %2381 = vmatpush1.msra.mxu0 0.0
    %2382 = vmatprep.subr.mxu0 0.0
    %2383 = vmatpush1.msra.mxu0 0.0
    %2384 = vmatprep.subr.mxu0 0.0
    %2385 = vmatpush1.msra.mxu0 0.0
    %2386 = vmatprep.subr.mxu0 0.0
    %2387 = vmatpush1.msra.mxu0 0.0
    %2388 = vmatprep.subr.mxu0 0.0
    %2389 = vmatpush1.msra.mxu0 0.0
    %2390 = vmatprep.subr.mxu0 0.0
    %2391 = vmatpush1.msra.mxu0 0.0
    %2392 = vmatprep.subr.mxu0 0.0
    %2393 = vmatpush1.msra.mxu0 0.0
    %2394 = vmatprep.subr.mxu0 0.0
    %2395 = vmatpush1.msra.mxu0 0.0
    %2396 = vmatprep.subr.mxu0 0.0
    %2397 = vmatpush1.msra.mxu0 0.0
    %2398 = vmatprep.subr.mxu0 0.0
    %2399 = vmatpush1.msra.mxu0 0.0
    %2400 = vmatprep.subr.mxu0 0.0
    %2401 = vmatpush1.msra.mxu0 0.0
    %2402 = vmatprep.subr.mxu0 0.0
    %2403 = vmatpush1.msra.mxu0 0.0
    %2404 = vmatprep.subr.mxu0 0.0
    %2405 = vmatpush1.msra.mxu0 0.0
    %2406 = vmatprep.subr.mxu0 0.0
    %2407 = vmatpush1.msra.mxu0 0.0
    %2408 = vmatprep.subr.mxu0 0.0
    %2409 = vmatpush1.msra.mxu0 0.0
    %2410 = vmatprep.subr.mxu0 0.0
    %2411 = vmatpush1.msra.mxu0 0.0
    %2412 = vmatprep.subr.mxu0 0.0
    %2413 = vmatpush1.msra.mxu0 0.0
    %2414 = vmatprep.mubr.f32.mxu0 0.0
    %2415 = vmatmul.mubr.f32.gmra.mrb[0].mxu0 %v808
    %v2416 = vpop.f32.mrb[0].mxu0
    %v2417 = vadd.f32 0.0, %v2416
    %v2418 = vpop.f32.mrb[0].mxu0
    %2419 = vdwg.mxu0
    %2420 = vmatprep.subr.mxu0 0.0
    %2421 = vmatpush1.msra.mxu0 %v639
    %2422 = vmatprep.subr.mxu0 0.0
    %2423 = vmatpush1.msra.mxu0 %v644
    %2424 = vmatprep.subr.mxu0 0.0
    %2425 = vmatpush1.msra.mxu0 0.0
    %2426 = vmatprep.subr.mxu0 0.0
    %2427 = vmatpush1.msra.mxu0 0.0
    %2428 = vmatprep.subr.mxu0 0.0
    %2429 = vmatpush1.msra.mxu0 0.0
    %2430 = vmatprep.subr.mxu0 0.0
    %2431 = vmatpush1.msra.mxu0 0.0
    %2432 = vmatprep.subr.mxu0 0.0
    %2433 = vmatpush1.msra.mxu0 0.0
    %2434 = vmatprep.subr.mxu0 0.0
    %2435 = vmatpush1.msra.mxu0 0.0
    %2436 = vmatprep.subr.mxu0 0.0
    %2437 = vmatpush1.msra.mxu0 0.0
    %2438 = vmatprep.subr.mxu0 0.0
    %2439 = vmatpush1.msra.mxu0 0.0
    %2440 = vmatprep.subr.mxu0 0.0
    %2441 = vmatpush1.msra.mxu0 0.0
    %2442 = vmatprep.subr.mxu0 0.0
    %2443 = vmatpush1.msra.mxu0 0.0
    %2444 = vmatprep.subr.mxu0 0.0
    %2445 = vmatpush1.msra.mxu0 0.0
    %2446 = vmatprep.subr.mxu0 0.0
    %2447 = vmatpush1.msra.mxu0 0.0
    %2448 = vmatprep.subr.mxu0 0.0
    %2449 = vmatpush1.msra.mxu0 0.0
    %2450 = vmatprep.subr.mxu0 0.0
    %2451 = vmatpush1.msra.mxu0 0.0
    %2452 = vmatprep.subr.mxu0 0.0
    %2453 = vmatpush1.msra.mxu0 0.0
    %2454 = vmatprep.subr.mxu0 0.0
    %2455 = vmatpush1.msra.mxu0 0.0
    %2456 = vmatprep.subr.mxu0 0.0
    %2457 = vmatpush1.msra.mxu0 0.0
    %2458 = vmatprep.subr.mxu0 0.0
    %2459 = vmatpush1.msra.mxu0 0.0
    %2460 = vmatprep.subr.mxu0 0.0
    %2461 = vmatpush1.msra.mxu0 0.0
    %2462 = vmatprep.subr.mxu0 0.0
    %2463 = vmatpush1.msra.mxu0 0.0
    %2464 = vmatprep.subr.mxu0 0.0
    %2465 = vmatpush1.msra.mxu0 0.0
    %2466 = vmatprep.subr.mxu0 0.0
    %2467 = vmatpush1.msra.mxu0 0.0
    %2468 = vmatprep.subr.mxu0 0.0
    %2469 = vmatpush1.msra.mxu0 0.0
    %2470 = vmatprep.subr.mxu0 0.0
    %2471 = vmatpush1.msra.mxu0 0.0
    %2472 = vmatprep.subr.mxu0 0.0
    %2473 = vmatpush1.msra.mxu0 0.0
    %2474 = vmatprep.subr.mxu0 0.0
    %2475 = vmatpush1.msra.mxu0 0.0
    %2476 = vmatprep.subr.mxu0 0.0
    %2477 = vmatpush1.msra.mxu0 0.0
    %2478 = vmatprep.subr.mxu0 0.0
    %2479 = vmatpush1.msra.mxu0 0.0
    %2480 = vmatprep.subr.mxu0 0.0
    %2481 = vmatpush1.msra.mxu0 0.0
    %2482 = vmatprep.subr.mxu0 0.0
    %2483 = vmatpush1.msra.mxu0 0.0
    %2484 = vmatprep.mubr.f32.mxu0 0.0
    %2485 = vmatmul.mubr.f32.gmra.mrb[0].mxu0 %v808
    %v2486 = vpop.f32.mrb[0].mxu0
    %v2487 = vadd.f32 0.0, %v2486
    %v2488 = vpop.f32.mrb[0].mxu0
    %2489 = vdwg.mxu0
    %2490 = vmatprep.subr.mxu0 0.0
    %2491 = vmatpush1.msra.mxu0 %v649
    %2492 = vmatprep.subr.mxu0 0.0
    %2493 = vmatpush1.msra.mxu0 %v654
    %2494 = vmatprep.subr.mxu0 0.0
    %2495 = vmatpush1.msra.mxu0 0.0
    %2496 = vmatprep.subr.mxu0 0.0
    %2497 = vmatpush1.msra.mxu0 0.0
    %2498 = vmatprep.subr.mxu0 0.0
    %2499 = vmatpush1.msra.mxu0 0.0
    %2500 = vmatprep.subr.mxu0 0.0
    %2501 = vmatpush1.msra.mxu0 0.0
    %2502 = vmatprep.subr.mxu0 0.0
    %2503 = vmatpush1.msra.mxu0 0.0
    %2504 = vmatprep.subr.mxu0 0.0
    %2505 = vmatpush1.msra.mxu0 0.0
    %2506 = vmatprep.subr.mxu0 0.0
    %2507 = vmatpush1.msra.mxu0 0.0
    %2508 = vmatprep.subr.mxu0 0.0
    %2509 = vmatpush1.msra.mxu0 0.0
    %2510 = vmatprep.subr.mxu0 0.0
    %2511 = vmatpush1.msra.mxu0 0.0
    %2512 = vmatprep.subr.mxu0 0.0
    %2513 = vmatpush1.msra.mxu0 0.0
    %2514 = vmatprep.subr.mxu0 0.0
    %2515 = vmatpush1.msra.mxu0 0.0
    %2516 = vmatprep.subr.mxu0 0.0
    %2517 = vmatpush1.msra.mxu0 0.0
    %2518 = vmatprep.subr.mxu0 0.0
    %2519 = vmatpush1.msra.mxu0 0.0
    %2520 = vmatprep.subr.mxu0 0.0
    %2521 = vmatpush1.msra.mxu0 0.0
    %2522 = vmatprep.subr.mxu0 0.0
    %2523 = vmatpush1.msra.mxu0 0.0
    %2524 = vmatprep.subr.mxu0 0.0
    %2525 = vmatpush1.msra.mxu0 0.0
    %2526 = vmatprep.subr.mxu0 0.0
    %2527 = vmatpush1.msra.mxu0 0.0
    %2528 = vmatprep.subr.mxu0 0.0
    %2529 = vmatpush1.msra.mxu0 0.0
    %2530 = vmatprep.subr.mxu0 0.0
    %2531 = vmatpush1.msra.mxu0 0.0
    %2532 = vmatprep.subr.mxu0 0.0
    %2533 = vmatpush1.msra.mxu0 0.0
    %2534 = vmatprep.subr.mxu0 0.0
    %2535 = vmatpush1.msra.mxu0 0.0
    %2536 = vmatprep.subr.mxu0 0.0
    %2537 = vmatpush1.msra.mxu0 0.0
    %2538 = vmatprep.subr.mxu0 0.0
    %2539 = vmatpush1.msra.mxu0 0.0
    %2540 = vmatprep.subr.mxu0 0.0
    %2541 = vmatpush1.msra.mxu0 0.0
    %2542 = vmatprep.subr.mxu0 0.0
    %2543 = vmatpush1.msra.mxu0 0.0
    %2544 = vmatprep.subr.mxu0 0.0
    %2545 = vmatpush1.msra.mxu0 0.0
    %2546 = vmatprep.subr.mxu0 0.0
    %2547 = vmatpush1.msra.mxu0 0.0
    %2548 = vmatprep.subr.mxu0 0.0
    %2549 = vmatpush1.msra.mxu0 0.0
    %2550 = vmatprep.subr.mxu0 0.0
    %2551 = vmatpush1.msra.mxu0 0.0
    %2552 = vmatprep.subr.mxu0 0.0
    %2553 = vmatpush1.msra.mxu0 0.0
    %2554 = vmatprep.mubr.f32.mxu0 0.0
    %2555 = vmatmul.mubr.f32.gmra.mrb[0].mxu0 %v808
    %v2556 = vpop.f32.mrb[0].mxu0
    %v2557 = vadd.f32 0.0, %v2556
    %v2558 = vpop.f32.mrb[0].mxu0
    %2559 = vdwg.mxu0
    %2560 = vmatprep.subr.mxu0 0.0
    %2561 = vmatpush1.msra.mxu0 %v659
    %2562 = vmatprep.subr.mxu0 0.0
    %2563 = vmatpush1.msra.mxu0 %v664
    %2564 = vmatprep.subr.mxu0 0.0
    %2565 = vmatpush1.msra.mxu0 0.0
    %2566 = vmatprep.subr.mxu0 0.0
    %2567 = vmatpush1.msra.mxu0 0.0
    %2568 = vmatprep.subr.mxu0 0.0
    %2569 = vmatpush1.msra.mxu0 0.0
    %2570 = vmatprep.subr.mxu0 0.0
    %2571 = vmatpush1.msra.mxu0 0.0
    %2572 = vmatprep.subr.mxu0 0.0
    %2573 = vmatpush1.msra.mxu0 0.0
    %2574 = vmatprep.subr.mxu0 0.0
    %2575 = vmatpush1.msra.mxu0 0.0
    %2576 = vmatprep.subr.mxu0 0.0
    %2577 = vmatpush1.msra.mxu0 0.0
    %2578 = vmatprep.subr.mxu0 0.0
    %2579 = vmatpush1.msra.mxu0 0.0
    %2580 = vmatprep.subr.mxu0 0.0
    %2581 = vmatpush1.msra.mxu0 0.0
    %2582 = vmatprep.subr.mxu0 0.0
    %2583 = vmatpush1.msra.mxu0 0.0
    %2584 = vmatprep.subr.mxu0 0.0
    %2585 = vmatpush1.msra.mxu0 0.0
    %2586 = vmatprep.subr.mxu0 0.0
    %2587 = vmatpush1.msra.mxu0 0.0
    %2588 = vmatprep.subr.mxu0 0.0
    %2589 = vmatpush1.msra.mxu0 0.0
    %2590 = vmatprep.subr.mxu0 0.0
    %2591 = vmatpush1.msra.mxu0 0.0
    %2592 = vmatprep.subr.mxu0 0.0
    %2593 = vmatpush1.msra.mxu0 0.0
    %2594 = vmatprep.subr.mxu0 0.0
    %2595 = vmatpush1.msra.mxu0 0.0
    %2596 = vmatprep.subr.mxu0 0.0
    %2597 = vmatpush1.msra.mxu0 0.0
    %2598 = vmatprep.subr.mxu0 0.0
    %2599 = vmatpush1.msra.mxu0 0.0
    %2600 = vmatprep.subr.mxu0 0.0
    %2601 = vmatpush1.msra.mxu0 0.0
    %2602 = vmatprep.subr.mxu0 0.0
    %2603 = vmatpush1.msra.mxu0 0.0
    %2604 = vmatprep.subr.mxu0 0.0
    %2605 = vmatpush1.msra.mxu0 0.0
    %2606 = vmatprep.subr.mxu0 0.0
    %2607 = vmatpush1.msra.mxu0 0.0
    %2608 = vmatprep.subr.mxu0 0.0
    %2609 = vmatpush1.msra.mxu0 0.0
    %2610 = vmatprep.subr.mxu0 0.0
    %2611 = vmatpush1.msra.mxu0 0.0
    %2612 = vmatprep.subr.mxu0 0.0
    %2613 = vmatpush1.msra.mxu0 0.0
    %2614 = vmatprep.subr.mxu0 0.0
    %2615 = vmatpush1.msra.mxu0 0.0
    %2616 = vmatprep.subr.mxu0 0.0
    %2617 = vmatpush1.msra.mxu0 0.0
    %2618 = vmatprep.subr.mxu0 0.0
    %2619 = vmatpush1.msra.mxu0 0.0
    %2620 = vmatprep.subr.mxu0 0.0
    %2621 = vmatpush1.msra.mxu0 0.0
    %2622 = vmatprep.subr.mxu0 0.0
    %2623 = vmatpush1.msra.mxu0 0.0
    %2624 = vmatprep.mubr.f32.mxu0 0.0
    %2625 = vmatmul.mubr.f32.gmra.mrb[0].mxu0 %v808
    %v2626 = vpop.f32.mrb[0].mxu0
    %v2627 = vadd.f32 0.0, %v2626
    %v2628 = vpop.f32.mrb[0].mxu0
    %2629 = vdwg.mxu0
    %2630 = vmatprep.subr.mxu0 0.0
    %2631 = vmatpush1.msra.mxu0 %v669
    %2632 = vmatprep.subr.mxu0 0.0
    %2633 = vmatpush1.msra.mxu0 %v674
    %2634 = vmatprep.subr.mxu0 0.0
    %2635 = vmatpush1.msra.mxu0 0.0
    %2636 = vmatprep.subr.mxu0 0.0
    %2637 = vmatpush1.msra.mxu0 0.0
    %2638 = vmatprep.subr.mxu0 0.0
    %2639 = vmatpush1.msra.mxu0 0.0
    %2640 = vmatprep.subr.mxu0 0.0
    %2641 = vmatpush1.msra.mxu0 0.0
    %2642 = vmatprep.subr.mxu0 0.0
    %2643 = vmatpush1.msra.mxu0 0.0
    %2644 = vmatprep.subr.mxu0 0.0
    %2645 = vmatpush1.msra.mxu0 0.0
    %2646 = vmatprep.subr.mxu0 0.0
    %2647 = vmatpush1.msra.mxu0 0.0
    %2648 = vmatprep.subr.mxu0 0.0
    %2649 = vmatpush1.msra.mxu0 0.0
    %2650 = vmatprep.subr.mxu0 0.0
    %2651 = vmatpush1.msra.mxu0 0.0
    %2652 = vmatprep.subr.mxu0 0.0
    %2653 = vmatpush1.msra.mxu0 0.0
    %2654 = vmatprep.subr.mxu0 0.0
    %2655 = vmatpush1.msra.mxu0 0.0
    %2656 = vmatprep.subr.mxu0 0.0
    %2657 = vmatpush1.msra.mxu0 0.0
    %2658 = vmatprep.subr.mxu0 0.0
    %2659 = vmatpush1.msra.mxu0 0.0
    %2660 = vmatprep.subr.mxu0 0.0
    %2661 = vmatpush1.msra.mxu0 0.0
    %2662 = vmatprep.subr.mxu0 0.0
    %2663 = vmatpush1.msra.mxu0 0.0
    %2664 = vmatprep.subr.mxu0 0.0
    %2665 = vmatpush1.msra.mxu0 0.0
    %2666 = vmatprep.subr.mxu0 0.0
    %2667 = vmatpush1.msra.mxu0 0.0
    %2668 = vmatprep.subr.mxu0 0.0
    %2669 = vmatpush1.msra.mxu0 0.0
    %2670 = vmatprep.subr.mxu0 0.0
    %2671 = vmatpush1.msra.mxu0 0.0
    %2672 = vmatprep.subr.mxu0 0.0
    %2673 = vmatpush1.msra.mxu0 0.0
    %2674 = vmatprep.subr.mxu0 0.0
    %2675 = vmatpush1.msra.mxu0 0.0
    %2676 = vmatprep.subr.mxu0 0.0
    %2677 = vmatpush1.msra.mxu0 0.0
    %2678 = vmatprep.subr.mxu0 0.0
    %2679 = vmatpush1.msra.mxu0 0.0
    %2680 = vmatprep.subr.mxu0 0.0
    %2681 = vmatpush1.msra.mxu0 0.0
    %2682 = vmatprep.subr.mxu0 0.0
    %2683 = vmatpush1.msra.mxu0 0.0
    %2684 = vmatprep.subr.mxu0 0.0
    %2685 = vmatpush1.msra.mxu0 0.0
    %2686 = vmatprep.subr.mxu0 0.0
    %2687 = vmatpush1.msra.mxu0 0.0
    %2688 = vmatprep.subr.mxu0 0.0
    %2689 = vmatpush1.msra.mxu0 0.0
    %2690 = vmatprep.subr.mxu0 0.0
    %2691 = vmatpush1.msra.mxu0 0.0
    %2692 = vmatprep.subr.mxu0 0.0
    %2693 = vmatpush1.msra.mxu0 0.0
    %2694 = vmatprep.mubr.f32.mxu0 0.0
    %2695 = vmatmul.mubr.f32.gmra.mrb[0].mxu0 %v808
    %v2696 = vpop.f32.mrb[0].mxu0
    %v2697 = vadd.f32 0.0, %v2696
    %v2698 = vpop.f32.mrb[0].mxu0
    %2699 = vdwg.mxu0
    %2700 = vmatprep.subr.mxu0 0.0
    %2701 = vmatpush1.msra.mxu0 %v679
    %2702 = vmatprep.subr.mxu0 0.0
    %2703 = vmatpush1.msra.mxu0 %v684
    %2704 = vmatprep.subr.mxu0 0.0
    %2705 = vmatpush1.msra.mxu0 0.0
    %2706 = vmatprep.subr.mxu0 0.0
    %2707 = vmatpush1.msra.mxu0 0.0
    %2708 = vmatprep.subr.mxu0 0.0
    %2709 = vmatpush1.msra.mxu0 0.0
    %2710 = vmatprep.subr.mxu0 0.0
    %2711 = vmatpush1.msra.mxu0 0.0
    %2712 = vmatprep.subr.mxu0 0.0
    %2713 = vmatpush1.msra.mxu0 0.0
    %2714 = vmatprep.subr.mxu0 0.0
    %2715 = vmatpush1.msra.mxu0 0.0
    %2716 = vmatprep.subr.mxu0 0.0
    %2717 = vmatpush1.msra.mxu0 0.0
    %2718 = vmatprep.subr.mxu0 0.0
    %2719 = vmatpush1.msra.mxu0 0.0
    %2720 = vmatprep.subr.mxu0 0.0
    %2721 = vmatpush1.msra.mxu0 0.0
    %2722 = vmatprep.subr.mxu0 0.0
    %2723 = vmatpush1.msra.mxu0 0.0
    %2724 = vmatprep.subr.mxu0 0.0
    %2725 = vmatpush1.msra.mxu0 0.0
    %2726 = vmatprep.subr.mxu0 0.0
    %2727 = vmatpush1.msra.mxu0 0.0
    %2728 = vmatprep.subr.mxu0 0.0
    %2729 = vmatpush1.msra.mxu0 0.0
    %2730 = vmatprep.subr.mxu0 0.0
    %2731 = vmatpush1.msra.mxu0 0.0
    %2732 = vmatprep.subr.mxu0 0.0
    %2733 = vmatpush1.msra.mxu0 0.0
    %2734 = vmatprep.subr.mxu0 0.0
    %2735 = vmatpush1.msra.mxu0 0.0
    %2736 = vmatprep.subr.mxu0 0.0
    %2737 = vmatpush1.msra.mxu0 0.0
    %2738 = vmatprep.subr.mxu0 0.0
    %2739 = vmatpush1.msra.mxu0 0.0
    %2740 = vmatprep.subr.mxu0 0.0
    %2741 = vmatpush1.msra.mxu0 0.0
    %2742 = vmatprep.subr.mxu0 0.0
    %2743 = vmatpush1.msra.mxu0 0.0
    %2744 = vmatprep.subr.mxu0 0.0
    %2745 = vmatpush1.msra.mxu0 0.0
    %2746 = vmatprep.subr.mxu0 0.0
    %2747 = vmatpush1.msra.mxu0 0.0
    %2748 = vmatprep.subr.mxu0 0.0
    %2749 = vmatpush1.msra.mxu0 0.0
    %2750 = vmatprep.subr.mxu0 0.0
    %2751 = vmatpush1.msra.mxu0 0.0
    %2752 = vmatprep.subr.mxu0 0.0
    %2753 = vmatpush1.msra.mxu0 0.0
    %2754 = vmatprep.subr.mxu0 0.0
    %2755 = vmatpush1.msra.mxu0 0.0
    %2756 = vmatprep.subr.mxu0 0.0
    %2757 = vmatpush1.msra.mxu0 0.0
    %2758 = vmatprep.subr.mxu0 0.0
    %2759 = vmatpush1.msra.mxu0 0.0
    %2760 = vmatprep.subr.mxu0 0.0
    %2761 = vmatpush1.msra.mxu0 0.0
    %2762 = vmatprep.subr.mxu0 0.0
    %2763 = vmatpush1.msra.mxu0 0.0
    %2764 = vmatprep.mubr.f32.mxu0 0.0
    %2765 = vmatmul.mubr.f32.gmra.mrb[0].mxu0 %v808
    %v2766 = vpop.f32.mrb[0].mxu0
    %v2767 = vadd.f32 0.0, %v2766
    %v2768 = vpop.f32.mrb[0].mxu0
    %2769 = vdwg.mxu0
    %2770 = vmatprep.subr.mxu0 0.0
    %2771 = vmatpush1.msra.mxu0 %v689
    %2772 = vmatprep.subr.mxu0 0.0
    %2773 = vmatpush1.msra.mxu0 %v694
    %2774 = vmatprep.subr.mxu0 0.0
    %2775 = vmatpush1.msra.mxu0 0.0
    %2776 = vmatprep.subr.mxu0 0.0
    %2777 = vmatpush1.msra.mxu0 0.0
    %2778 = vmatprep.subr.mxu0 0.0
    %2779 = vmatpush1.msra.mxu0 0.0
    %2780 = vmatprep.subr.mxu0 0.0
    %2781 = vmatpush1.msra.mxu0 0.0
    %2782 = vmatprep.subr.mxu0 0.0
    %2783 = vmatpush1.msra.mxu0 0.0
    %2784 = vmatprep.subr.mxu0 0.0
    %2785 = vmatpush1.msra.mxu0 0.0
    %2786 = vmatprep.subr.mxu0 0.0
    %2787 = vmatpush1.msra.mxu0 0.0
    %2788 = vmatprep.subr.mxu0 0.0
    %2789 = vmatpush1.msra.mxu0 0.0
    %2790 = vmatprep.subr.mxu0 0.0
    %2791 = vmatpush1.msra.mxu0 0.0
    %2792 = vmatprep.subr.mxu0 0.0
    %2793 = vmatpush1.msra.mxu0 0.0
    %2794 = vmatprep.subr.mxu0 0.0
    %2795 = vmatpush1.msra.mxu0 0.0
    %2796 = vmatprep.subr.mxu0 0.0
    %2797 = vmatpush1.msra.mxu0 0.0
    %2798 = vmatprep.subr.mxu0 0.0
    %2799 = vmatpush1.msra.mxu0 0.0
    %2800 = vmatprep.subr.mxu0 0.0
    %2801 = vmatpush1.msra.mxu0 0.0
    %2802 = vmatprep.subr.mxu0 0.0
    %2803 = vmatpush1.msra.mxu0 0.0
    %2804 = vmatprep.subr.mxu0 0.0
    %2805 = vmatpush1.msra.mxu0 0.0
    %2806 = vmatprep.subr.mxu0 0.0
    %2807 = vmatpush1.msra.mxu0 0.0
    %2808 = vmatprep.subr.mxu0 0.0
    %2809 = vmatpush1.msra.mxu0 0.0
    %2810 = vmatprep.subr.mxu0 0.0
    %2811 = vmatpush1.msra.mxu0 0.0
    %2812 = vmatprep.subr.mxu0 0.0
    %2813 = vmatpush1.msra.mxu0 0.0
    %2814 = vmatprep.subr.mxu0 0.0
    %2815 = vmatpush1.msra.mxu0 0.0
    %2816 = vmatprep.subr.mxu0 0.0
    %2817 = vmatpush1.msra.mxu0 0.0
    %2818 = vmatprep.subr.mxu0 0.0
    %2819 = vmatpush1.msra.mxu0 0.0
    %2820 = vmatprep.subr.mxu0 0.0
    %2821 = vmatpush1.msra.mxu0 0.0
    %2822 = vmatprep.subr.mxu0 0.0
    %2823 = vmatpush1.msra.mxu0 0.0
    %2824 = vmatprep.subr.mxu0 0.0
    %2825 = vmatpush1.msra.mxu0 0.0
    %2826 = vmatprep.subr.mxu0 0.0
    %2827 = vmatpush1.msra.mxu0 0.0
    %2828 = vmatprep.subr.mxu0 0.0
    %2829 = vmatpush1.msra.mxu0 0.0
    %2830 = vmatprep.subr.mxu0 0.0
    %2831 = vmatpush1.msra.mxu0 0.0
    %2832 = vmatprep.subr.mxu0 0.0
    %2833 = vmatpush1.msra.mxu0 0.0
    %2834 = vmatprep.mubr.f32.mxu0 0.0
    %2835 = vmatmul.mubr.f32.gmra.mrb[0].mxu0 %v808
    %v2836 = vpop.f32.mrb[0].mxu0
    %v2837 = vadd.f32 0.0, %v2836
    %v2838 = vpop.f32.mrb[0].mxu0
    %2839 = vdwg.mxu0
    %2840 = vmatprep.subr.mxu0 0.0
    %2841 = vmatpush1.msra.mxu0 %v699
    %2842 = vmatprep.subr.mxu0 0.0
    %2843 = vmatpush1.msra.mxu0 %v704
    %2844 = vmatprep.subr.mxu0 0.0
    %2845 = vmatpush1.msra.mxu0 0.0
    %2846 = vmatprep.subr.mxu0 0.0
    %2847 = vmatpush1.msra.mxu0 0.0
    %2848 = vmatprep.subr.mxu0 0.0
    %2849 = vmatpush1.msra.mxu0 0.0
    %2850 = vmatprep.subr.mxu0 0.0
    %2851 = vmatpush1.msra.mxu0 0.0
    %2852 = vmatprep.subr.mxu0 0.0
    %2853 = vmatpush1.msra.mxu0 0.0
    %2854 = vmatprep.subr.mxu0 0.0
    %2855 = vmatpush1.msra.mxu0 0.0
    %2856 = vmatprep.subr.mxu0 0.0
    %2857 = vmatpush1.msra.mxu0 0.0
    %2858 = vmatprep.subr.mxu0 0.0
    %2859 = vmatpush1.msra.mxu0 0.0
    %2860 = vmatprep.subr.mxu0 0.0
    %2861 = vmatpush1.msra.mxu0 0.0
    %2862 = vmatprep.subr.mxu0 0.0
    %2863 = vmatpush1.msra.mxu0 0.0
    %2864 = vmatprep.subr.mxu0 0.0
    %2865 = vmatpush1.msra.mxu0 0.0
    %2866 = vmatprep.subr.mxu0 0.0
    %2867 = vmatpush1.msra.mxu0 0.0
    %2868 = vmatprep.subr.mxu0 0.0
    %2869 = vmatpush1.msra.mxu0 0.0
    %2870 = vmatprep.subr.mxu0 0.0
    %2871 = vmatpush1.msra.mxu0 0.0
    %2872 = vmatprep.subr.mxu0 0.0
    %2873 = vmatpush1.msra.mxu0 0.0
    %2874 = vmatprep.subr.mxu0 0.0
    %2875 = vmatpush1.msra.mxu0 0.0
    %2876 = vmatprep.subr.mxu0 0.0
    %2877 = vmatpush1.msra.mxu0 0.0
    %2878 = vmatprep.subr.mxu0 0.0
    %2879 = vmatpush1.msra.mxu0 0.0
    %2880 = vmatprep.subr.mxu0 0.0
    %2881 = vmatpush1.msra.mxu0 0.0
    %2882 = vmatprep.subr.mxu0 0.0
    %2883 = vmatpush1.msra.mxu0 0.0
    %2884 = vmatprep.subr.mxu0 0.0
    %2885 = vmatpush1.msra.mxu0 0.0
    %2886 = vmatprep.subr.mxu0 0.0
    %2887 = vmatpush1.msra.mxu0 0.0
    %2888 = vmatprep.subr.mxu0 0.0
    %2889 = vmatpush1.msra.mxu0 0.0
    %2890 = vmatprep.subr.mxu0 0.0
    %2891 = vmatpush1.msra.mxu0 0.0
    %2892 = vmatprep.subr.mxu0 0.0
    %2893 = vmatpush1.msra.mxu0 0.0
    %2894 = vmatprep.subr.mxu0 0.0
    %2895 = vmatpush1.msra.mxu0 0.0
    %2896 = vmatprep.subr.mxu0 0.0
    %2897 = vmatpush1.msra.mxu0 0.0
    %2898 = vmatprep.subr.mxu0 0.0
    %2899 = vmatpush1.msra.mxu0 0.0
    %2900 = vmatprep.subr.mxu0 0.0
    %2901 = vmatpush1.msra.mxu0 0.0
    %2902 = vmatprep.subr.mxu0 0.0
    %2903 = vmatpush1.msra.mxu0 0.0
    %2904 = vmatprep.mubr.f32.mxu0 0.0
    %2905 = vmatmul.mubr.f32.gmra.mrb[0].mxu0 %v808
    %v2906 = vpop.f32.mrb[0].mxu0
    %v2907 = vadd.f32 0.0, %v2906
    %v2908 = vpop.f32.mrb[0].mxu0
    %2909 = vdwg.mxu0
    %2910 = vmatprep.subr.mxu0 0.0
    %2911 = vmatpush1.msra.mxu0 %v709
    %2912 = vmatprep.subr.mxu0 0.0
    %2913 = vmatpush1.msra.mxu0 %v714
    %2914 = vmatprep.subr.mxu0 0.0
    %2915 = vmatpush1.msra.mxu0 0.0
    %2916 = vmatprep.subr.mxu0 0.0
    %2917 = vmatpush1.msra.mxu0 0.0
    %2918 = vmatprep.subr.mxu0 0.0
    %2919 = vmatpush1.msra.mxu0 0.0
    %2920 = vmatprep.subr.mxu0 0.0
    %2921 = vmatpush1.msra.mxu0 0.0
    %2922 = vmatprep.subr.mxu0 0.0
    %2923 = vmatpush1.msra.mxu0 0.0
    %2924 = vmatprep.subr.mxu0 0.0
    %2925 = vmatpush1.msra.mxu0 0.0
    %2926 = vmatprep.subr.mxu0 0.0
    %2927 = vmatpush1.msra.mxu0 0.0
    %2928 = vmatprep.subr.mxu0 0.0
    %2929 = vmatpush1.msra.mxu0 0.0
    %2930 = vmatprep.subr.mxu0 0.0
    %2931 = vmatpush1.msra.mxu0 0.0
    %2932 = vmatprep.subr.mxu0 0.0
    %2933 = vmatpush1.msra.mxu0 0.0
    %2934 = vmatprep.subr.mxu0 0.0
    %2935 = vmatpush1.msra.mxu0 0.0
    %2936 = vmatprep.subr.mxu0 0.0
    %2937 = vmatpush1.msra.mxu0 0.0
    %2938 = vmatprep.subr.mxu0 0.0
    %2939 = vmatpush1.msra.mxu0 0.0
    %2940 = vmatprep.subr.mxu0 0.0
    %2941 = vmatpush1.msra.mxu0 0.0
    %2942 = vmatprep.subr.mxu0 0.0
    %2943 = vmatpush1.msra.mxu0 0.0
    %2944 = vmatprep.subr.mxu0 0.0
    %2945 = vmatpush1.msra.mxu0 0.0
    %2946 = vmatprep.subr.mxu0 0.0
    %2947 = vmatpush1.msra.mxu0 0.0
    %2948 = vmatprep.subr.mxu0 0.0
    %2949 = vmatpush1.msra.mxu0 0.0
    %2950 = vmatprep.subr.mxu0 0.0
    %2951 = vmatpush1.msra.mxu0 0.0
    %2952 = vmatprep.subr.mxu0 0.0
    %2953 = vmatpush1.msra.mxu0 0.0
    %2954 = vmatprep.subr.mxu0 0.0
    %2955 = vmatpush1.msra.mxu0 0.0
    %2956 = vmatprep.subr.mxu0 0.0
    %2957 = vmatpush1.msra.mxu0 0.0
    %2958 = vmatprep.subr.mxu0 0.0
    %2959 = vmatpush1.msra.mxu0 0.0
    %2960 = vmatprep.subr.mxu0 0.0
    %2961 = vmatpush1.msra.mxu0 0.0
    %2962 = vmatprep.subr.mxu0 0.0
    %2963 = vmatpush1.msra.mxu0 0.0
    %2964 = vmatprep.subr.mxu0 0.0
    %2965 = vmatpush1.msra.mxu0 0.0
    %2966 = vmatprep.subr.mxu0 0.0
    %2967 = vmatpush1.msra.mxu0 0.0
    %2968 = vmatprep.subr.mxu0 0.0
    %2969 = vmatpush1.msra.mxu0 0.0
    %2970 = vmatprep.subr.mxu0 0.0
    %2971 = vmatpush1.msra.mxu0 0.0
    %2972 = vmatprep.subr.mxu0 0.0
    %2973 = vmatpush1.msra.mxu0 0.0
    %2974 = vmatprep.mubr.f32.mxu0 0.0
    %2975 = vmatmul.mubr.f32.gmra.mrb[0].mxu0 %v808
    %v2976 = vpop.f32.mrb[0].mxu0
    %v2977 = vadd.f32 0.0, %v2976
    %v2978 = vpop.f32.mrb[0].mxu0
    %2979 = vdwg.mxu0
    %2980 = vmatprep.subr.mxu0 0.0
    %2981 = vmatpush1.msra.mxu0 %v719
    %2982 = vmatprep.subr.mxu0 0.0
    %2983 = vmatpush1.msra.mxu0 %v724
    %2984 = vmatprep.subr.mxu0 0.0
    %2985 = vmatpush1.msra.mxu0 0.0
    %2986 = vmatprep.subr.mxu0 0.0
    %2987 = vmatpush1.msra.mxu0 0.0
    %2988 = vmatprep.subr.mxu0 0.0
    %2989 = vmatpush1.msra.mxu0 0.0
    %2990 = vmatprep.subr.mxu0 0.0
    %2991 = vmatpush1.msra.mxu0 0.0
    %2992 = vmatprep.subr.mxu0 0.0
    %2993 = vmatpush1.msra.mxu0 0.0
    %2994 = vmatprep.subr.mxu0 0.0
    %2995 = vmatpush1.msra.mxu0 0.0
    %2996 = vmatprep.subr.mxu0 0.0
    %2997 = vmatpush1.msra.mxu0 0.0
    %2998 = vmatprep.subr.mxu0 0.0
    %2999 = vmatpush1.msra.mxu0 0.0
    %3000 = vmatprep.subr.mxu0 0.0
    %3001 = vmatpush1.msra.mxu0 0.0
    %3002 = vmatprep.subr.mxu0 0.0
    %3003 = vmatpush1.msra.mxu0 0.0
    %3004 = vmatprep.subr.mxu0 0.0
    %3005 = vmatpush1.msra.mxu0 0.0
    %3006 = vmatprep.subr.mxu0 0.0
    %3007 = vmatpush1.msra.mxu0 0.0
    %3008 = vmatprep.subr.mxu0 0.0
    %3009 = vmatpush1.msra.mxu0 0.0
    %3010 = vmatprep.subr.mxu0 0.0
    %3011 = vmatpush1.msra.mxu0 0.0
    %3012 = vmatprep.subr.mxu0 0.0
    %3013 = vmatpush1.msra.mxu0 0.0
    %3014 = vmatprep.subr.mxu0 0.0
    %3015 = vmatpush1.msra.mxu0 0.0
    %3016 = vmatprep.subr.mxu0 0.0
    %3017 = vmatpush1.msra.mxu0 0.0
    %3018 = vmatprep.subr.mxu0 0.0
    %3019 = vmatpush1.msra.mxu0 0.0
    %3020 = vmatprep.subr.mxu0 0.0
    %3021 = vmatpush1.msra.mxu0 0.0
    %3022 = vmatprep.subr.mxu0 0.0
    %3023 = vmatpush1.msra.mxu0 0.0
    %3024 = vmatprep.subr.mxu0 0.0
    %3025 = vmatpush1.msra.mxu0 0.0
    %3026 = vmatprep.subr.mxu0 0.0
    %3027 = vmatpush1.msra.mxu0 0.0
    %3028 = vmatprep.subr.mxu0 0.0
    %3029 = vmatpush1.msra.mxu0 0.0
    %3030 = vmatprep.subr.mxu0 0.0
    %3031 = vmatpush1.msra.mxu0 0.0
    %3032 = vmatprep.subr.mxu0 0.0
    %3033 = vmatpush1.msra.mxu0 0.0
    %3034 = vmatprep.subr.mxu0 0.0
    %3035 = vmatpush1.msra.mxu0 0.0
    %3036 = vmatprep.subr.mxu0 0.0
    %3037 = vmatpush1.msra.mxu0 0.0
    %3038 = vmatprep.subr.mxu0 0.0
    %3039 = vmatpush1.msra.mxu0 0.0
    %3040 = vmatprep.subr.mxu0 0.0
    %3041 = vmatpush1.msra.mxu0 0.0
    %3042 = vmatprep.subr.mxu0 0.0
    %3043 = vmatpush1.msra.mxu0 0.0
    %3044 = vmatprep.mubr.f32.mxu0 0.0
    %3045 = vmatmul.mubr.f32.gmra.mrb[0].mxu0 %v808
    %v3046 = vpop.f32.mrb[0].mxu0
    %v3047 = vadd.f32 0.0, %v3046
    %v3048 = vpop.f32.mrb[0].mxu0
    %3049 = vdwg.mxu0
    %3050 = vmatprep.subr.mxu0 0.0
    %3051 = vmatpush1.msra.mxu0 %v729
    %3052 = vmatprep.subr.mxu0 0.0
    %3053 = vmatpush1.msra.mxu0 %v734
    %3054 = vmatprep.subr.mxu0 0.0
    %3055 = vmatpush1.msra.mxu0 0.0
    %3056 = vmatprep.subr.mxu0 0.0
    %3057 = vmatpush1.msra.mxu0 0.0
    %3058 = vmatprep.subr.mxu0 0.0
    %3059 = vmatpush1.msra.mxu0 0.0
    %3060 = vmatprep.subr.mxu0 0.0
    %3061 = vmatpush1.msra.mxu0 0.0
    %3062 = vmatprep.subr.mxu0 0.0
    %3063 = vmatpush1.msra.mxu0 0.0
    %3064 = vmatprep.subr.mxu0 0.0
    %3065 = vmatpush1.msra.mxu0 0.0
    %3066 = vmatprep.subr.mxu0 0.0
    %3067 = vmatpush1.msra.mxu0 0.0
    %3068 = vmatprep.subr.mxu0 0.0
    %3069 = vmatpush1.msra.mxu0 0.0
    %3070 = vmatprep.subr.mxu0 0.0
    %3071 = vmatpush1.msra.mxu0 0.0
    %3072 = vmatprep.subr.mxu0 0.0
    %3073 = vmatpush1.msra.mxu0 0.0
    %3074 = vmatprep.subr.mxu0 0.0
    %3075 = vmatpush1.msra.mxu0 0.0
    %3076 = vmatprep.subr.mxu0 0.0
    %3077 = vmatpush1.msra.mxu0 0.0
    %3078 = vmatprep.subr.mxu0 0.0
    %3079 = vmatpush1.msra.mxu0 0.0
    %3080 = vmatprep.subr.mxu0 0.0
    %3081 = vmatpush1.msra.mxu0 0.0
    %3082 = vmatprep.subr.mxu0 0.0
    %3083 = vmatpush1.msra.mxu0 0.0
    %3084 = vmatprep.subr.mxu0 0.0
    %3085 = vmatpush1.msra.mxu0 0.0
    %3086 = vmatprep.subr.mxu0 0.0
    %3087 = vmatpush1.msra.mxu0 0.0
    %3088 = vmatprep.subr.mxu0 0.0
    %3089 = vmatpush1.msra.mxu0 0.0
    %3090 = vmatprep.subr.mxu0 0.0
    %3091 = vmatpush1.msra.mxu0 0.0
    %3092 = vmatprep.subr.mxu0 0.0
    %3093 = vmatpush1.msra.mxu0 0.0
    %3094 = vmatprep.subr.mxu0 0.0
    %3095 = vmatpush1.msra.mxu0 0.0
    %3096 = vmatprep.subr.mxu0 0.0
    %3097 = vmatpush1.msra.mxu0 0.0
    %3098 = vmatprep.subr.mxu0 0.0
    %3099 = vmatpush1.msra.mxu0 0.0
    %3100 = vmatprep.subr.mxu0 0.0
    %3101 = vmatpush1.msra.mxu0 0.0
    %3102 = vmatprep.subr.mxu0 0.0
    %3103 = vmatpush1.msra.mxu0 0.0
    %3104 = vmatprep.subr.mxu0 0.0
    %3105 = vmatpush1.msra.mxu0 0.0
    %3106 = vmatprep.subr.mxu0 0.0
    %3107 = vmatpush1.msra.mxu0 0.0
    %3108 = vmatprep.subr.mxu0 0.0
    %3109 = vmatpush1.msra.mxu0 0.0
    %3110 = vmatprep.subr.mxu0 0.0
    %3111 = vmatpush1.msra.mxu0 0.0
    %3112 = vmatprep.subr.mxu0 0.0
    %3113 = vmatpush1.msra.mxu0 0.0
    %3114 = vmatprep.mubr.f32.mxu0 0.0
    %3115 = vmatmul.mubr.f32.gmra.mrb[0].mxu0 %v808
    %v3116 = vpop.f32.mrb[0].mxu0
    %v3117 = vadd.f32 0.0, %v3116
    %v3118 = vpop.f32.mrb[0].mxu0
    %3119 = vdwg.mxu0
    %3120 = vmatprep.subr.mxu0 0.0
    %3121 = vmatpush1.msra.mxu0 %v739
    %3122 = vmatprep.subr.mxu0 0.0
    %3123 = vmatpush1.msra.mxu0 %v744
    %3124 = vmatprep.subr.mxu0 0.0
    %3125 = vmatpush1.msra.mxu0 0.0
    %3126 = vmatprep.subr.mxu0 0.0
    %3127 = vmatpush1.msra.mxu0 0.0
    %3128 = vmatprep.subr.mxu0 0.0
    %3129 = vmatpush1.msra.mxu0 0.0
    %3130 = vmatprep.subr.mxu0 0.0
    %3131 = vmatpush1.msra.mxu0 0.0
    %3132 = vmatprep.subr.mxu0 0.0
    %3133 = vmatpush1.msra.mxu0 0.0
    %3134 = vmatprep.subr.mxu0 0.0
    %3135 = vmatpush1.msra.mxu0 0.0
    %3136 = vmatprep.subr.mxu0 0.0
    %3137 = vmatpush1.msra.mxu0 0.0
    %3138 = vmatprep.subr.mxu0 0.0
    %3139 = vmatpush1.msra.mxu0 0.0
    %3140 = vmatprep.subr.mxu0 0.0
    %3141 = vmatpush1.msra.mxu0 0.0
    %3142 = vmatprep.subr.mxu0 0.0
    %3143 = vmatpush1.msra.mxu0 0.0
    %3144 = vmatprep.subr.mxu0 0.0
    %3145 = vmatpush1.msra.mxu0 0.0
    %3146 = vmatprep.subr.mxu0 0.0
    %3147 = vmatpush1.msra.mxu0 0.0
    %3148 = vmatprep.subr.mxu0 0.0
    %3149 = vmatpush1.msra.mxu0 0.0
    %3150 = vmatprep.subr.mxu0 0.0
    %3151 = vmatpush1.msra.mxu0 0.0
    %3152 = vmatprep.subr.mxu0 0.0
    %3153 = vmatpush1.msra.mxu0 0.0
    %3154 = vmatprep.subr.mxu0 0.0
    %3155 = vmatpush1.msra.mxu0 0.0
    %3156 = vmatprep.subr.mxu0 0.0
    %3157 = vmatpush1.msra.mxu0 0.0
    %3158 = vmatprep.subr.mxu0 0.0
    %3159 = vmatpush1.msra.mxu0 0.0
    %3160 = vmatprep.subr.mxu0 0.0
    %3161 = vmatpush1.msra.mxu0 0.0
    %3162 = vmatprep.subr.mxu0 0.0
    %3163 = vmatpush1.msra.mxu0 0.0
    %3164 = vmatprep.subr.mxu0 0.0
    %3165 = vmatpush1.msra.mxu0 0.0
    %3166 = vmatprep.subr.mxu0 0.0
    %3167 = vmatpush1.msra.mxu0 0.0
    %3168 = vmatprep.subr.mxu0 0.0
    %3169 = vmatpush1.msra.mxu0 0.0
    %3170 = vmatprep.subr.mxu0 0.0
    %3171 = vmatpush1.msra.mxu0 0.0
    %3172 = vmatprep.subr.mxu0 0.0
    %3173 = vmatpush1.msra.mxu0 0.0
    %3174 = vmatprep.subr.mxu0 0.0
    %3175 = vmatpush1.msra.mxu0 0.0
    %3176 = vmatprep.subr.mxu0 0.0
    %3177 = vmatpush1.msra.mxu0 0.0
    %3178 = vmatprep.subr.mxu0 0.0
    %3179 = vmatpush1.msra.mxu0 0.0
    %3180 = vmatprep.subr.mxu0 0.0
    %3181 = vmatpush1.msra.mxu0 0.0
    %3182 = vmatprep.subr.mxu0 0.0
    %3183 = vmatpush1.msra.mxu0 0.0
    %3184 = vmatprep.mubr.f32.mxu0 0.0
    %3185 = vmatmul.mubr.f32.gmra.mrb[0].mxu0 %v808
    %v3186 = vpop.f32.mrb[0].mxu0
    %v3187 = vadd.f32 0.0, %v3186
    %v3188 = vpop.f32.mrb[0].mxu0
    %3189 = vdwg.mxu0
    %3190 = vmatprep.subr.mxu0 0.0
    %3191 = vmatpush1.msra.mxu0 %v749
    %3192 = vmatprep.subr.mxu0 0.0
    %3193 = vmatpush1.msra.mxu0 %v754
    %3194 = vmatprep.subr.mxu0 0.0
    %3195 = vmatpush1.msra.mxu0 0.0
    %3196 = vmatprep.subr.mxu0 0.0
    %3197 = vmatpush1.msra.mxu0 0.0
    %3198 = vmatprep.subr.mxu0 0.0
    %3199 = vmatpush1.msra.mxu0 0.0
    %3200 = vmatprep.subr.mxu0 0.0
    %3201 = vmatpush1.msra.mxu0 0.0
    %3202 = vmatprep.subr.mxu0 0.0
    %3203 = vmatpush1.msra.mxu0 0.0
    %3204 = vmatprep.subr.mxu0 0.0
    %3205 = vmatpush1.msra.mxu0 0.0
    %3206 = vmatprep.subr.mxu0 0.0
    %3207 = vmatpush1.msra.mxu0 0.0
    %3208 = vmatprep.subr.mxu0 0.0
    %3209 = vmatpush1.msra.mxu0 0.0
    %3210 = vmatprep.subr.mxu0 0.0
    %3211 = vmatpush1.msra.mxu0 0.0
    %3212 = vmatprep.subr.mxu0 0.0
    %3213 = vmatpush1.msra.mxu0 0.0
    %3214 = vmatprep.subr.mxu0 0.0
    %3215 = vmatpush1.msra.mxu0 0.0
    %3216 = vmatprep.subr.mxu0 0.0
    %3217 = vmatpush1.msra.mxu0 0.0
    %3218 = vmatprep.subr.mxu0 0.0
    %3219 = vmatpush1.msra.mxu0 0.0
    %3220 = vmatprep.subr.mxu0 0.0
    %3221 = vmatpush1.msra.mxu0 0.0
    %3222 = vmatprep.subr.mxu0 0.0
    %3223 = vmatpush1.msra.mxu0 0.0
    %3224 = vmatprep.subr.mxu0 0.0
    %3225 = vmatpush1.msra.mxu0 0.0
    %3226 = vmatprep.subr.mxu0 0.0
    %3227 = vmatpush1.msra.mxu0 0.0
    %3228 = vmatprep.subr.mxu0 0.0
    %3229 = vmatpush1.msra.mxu0 0.0
    %3230 = vmatprep.subr.mxu0 0.0
    %3231 = vmatpush1.msra.mxu0 0.0
    %3232 = vmatprep.subr.mxu0 0.0
    %3233 = vmatpush1.msra.mxu0 0.0
    %3234 = vmatprep.subr.mxu0 0.0
    %3235 = vmatpush1.msra.mxu0 0.0
    %3236 = vmatprep.subr.mxu0 0.0
    %3237 = vmatpush1.msra.mxu0 0.0
    %3238 = vmatprep.subr.mxu0 0.0
    %3239 = vmatpush1.msra.mxu0 0.0
    %3240 = vmatprep.subr.mxu0 0.0
    %3241 = vmatpush1.msra.mxu0 0.0
    %3242 = vmatprep.subr.mxu0 0.0
    %3243 = vmatpush1.msra.mxu0 0.0
    %3244 = vmatprep.subr.mxu0 0.0
    %3245 = vmatpush1.msra.mxu0 0.0
    %3246 = vmatprep.subr.mxu0 0.0
    %3247 = vmatpush1.msra.mxu0 0.0
    %3248 = vmatprep.subr.mxu0 0.0
    %3249 = vmatpush1.msra.mxu0 0.0
    %3250 = vmatprep.subr.mxu0 0.0
    %3251 = vmatpush1.msra.mxu0 0.0
    %3252 = vmatprep.subr.mxu0 0.0
    %3253 = vmatpush1.msra.mxu0 0.0
    %3254 = vmatprep.mubr.f32.mxu0 0.0
    %3255 = vmatmul.mubr.f32.gmra.mrb[0].mxu0 %v808
    %v3256 = vpop.f32.mrb[0].mxu0
    %v3257 = vadd.f32 0.0, %v3256
    %v3258 = vpop.f32.mrb[0].mxu0
    %3259 = vdwg.mxu0
    %3260 = vmatprep.subr.mxu0 0.0
    %3261 = vmatpush1.msra.mxu0 %v759
    %3262 = vmatprep.subr.mxu0 0.0
    %3263 = vmatpush1.msra.mxu0 %v764
    %3264 = vmatprep.subr.mxu0 0.0
    %3265 = vmatpush1.msra.mxu0 0.0
    %3266 = vmatprep.subr.mxu0 0.0
    %3267 = vmatpush1.msra.mxu0 0.0
    %3268 = vmatprep.subr.mxu0 0.0
    %3269 = vmatpush1.msra.mxu0 0.0
    %3270 = vmatprep.subr.mxu0 0.0
    %3271 = vmatpush1.msra.mxu0 0.0
    %3272 = vmatprep.subr.mxu0 0.0
    %3273 = vmatpush1.msra.mxu0 0.0
    %3274 = vmatprep.subr.mxu0 0.0
    %3275 = vmatpush1.msra.mxu0 0.0
    %3276 = vmatprep.subr.mxu0 0.0
    %3277 = vmatpush1.msra.mxu0 0.0
    %3278 = vmatprep.subr.mxu0 0.0
    %3279 = vmatpush1.msra.mxu0 0.0
    %3280 = vmatprep.subr.mxu0 0.0
    %3281 = vmatpush1.msra.mxu0 0.0
    %3282 = vmatprep.subr.mxu0 0.0
    %3283 = vmatpush1.msra.mxu0 0.0
    %3284 = vmatprep.subr.mxu0 0.0
    %3285 = vmatpush1.msra.mxu0 0.0
    %3286 = vmatprep.subr.mxu0 0.0
    %3287 = vmatpush1.msra.mxu0 0.0
    %3288 = vmatprep.subr.mxu0 0.0
    %3289 = vmatpush1.msra.mxu0 0.0
    %3290 = vmatprep.subr.mxu0 0.0
    %3291 = vmatpush1.msra.mxu0 0.0
    %3292 = vmatprep.subr.mxu0 0.0
    %3293 = vmatpush1.msra.mxu0 0.0
    %3294 = vmatprep.subr.mxu0 0.0
    %3295 = vmatpush1.msra.mxu0 0.0
    %3296 = vmatprep.subr.mxu0 0.0
    %3297 = vmatpush1.msra.mxu0 0.0
    %3298 = vmatprep.subr.mxu0 0.0
    %3299 = vmatpush1.msra.mxu0 0.0
    %3300 = vmatprep.subr.mxu0 0.0
    %3301 = vmatpush1.msra.mxu0 0.0
    %3302 = vmatprep.subr.mxu0 0.0
    %3303 = vmatpush1.msra.mxu0 0.0
    %3304 = vmatprep.subr.mxu0 0.0
    %3305 = vmatpush1.msra.mxu0 0.0
    %3306 = vmatprep.subr.mxu0 0.0
    %3307 = vmatpush1.msra.mxu0 0.0
    %3308 = vmatprep.subr.mxu0 0.0
    %3309 = vmatpush1.msra.mxu0 0.0
    %3310 = vmatprep.subr.mxu0 0.0
    %3311 = vmatpush1.msra.mxu0 0.0
    %3312 = vmatprep.subr.mxu0 0.0
    %3313 = vmatpush1.msra.mxu0 0.0
    %3314 = vmatprep.subr.mxu0 0.0
    %3315 = vmatpush1.msra.mxu0 0.0
    %3316 = vmatprep.subr.mxu0 0.0
    %3317 = vmatpush1.msra.mxu0 0.0
    %3318 = vmatprep.subr.mxu0 0.0
    %3319 = vmatpush1.msra.mxu0 0.0
    %3320 = vmatprep.subr.mxu0 0.0
    %3321 = vmatpush1.msra.mxu0 0.0
    %3322 = vmatprep.subr.mxu0 0.0
    %3323 = vmatpush1.msra.mxu0 0.0
    %3324 = vmatprep.mubr.f32.mxu0 0.0
    %3325 = vmatmul.mubr.f32.gmra.mrb[0].mxu0 %v808
    %v3326 = vpop.f32.mrb[0].mxu0
    %v3327 = vadd.f32 0.0, %v3326
    %v3328 = vpop.f32.mrb[0].mxu0
    %3329 = vdwg.mxu0
    %3330 = vmatprep.subr.mxu0 0.0
    %3331 = vmatpush1.msra.mxu0 %v769
    %3332 = vmatprep.subr.mxu0 0.0
    %3333 = vmatpush1.msra.mxu0 %v774
    %3334 = vmatprep.subr.mxu0 0.0
    %3335 = vmatpush1.msra.mxu0 0.0
    %3336 = vmatprep.subr.mxu0 0.0
    %3337 = vmatpush1.msra.mxu0 0.0
    %3338 = vmatprep.subr.mxu0 0.0
    %3339 = vmatpush1.msra.mxu0 0.0
    %3340 = vmatprep.subr.mxu0 0.0
    %3341 = vmatpush1.msra.mxu0 0.0
    %3342 = vmatprep.subr.mxu0 0.0
    %3343 = vmatpush1.msra.mxu0 0.0
    %3344 = vmatprep.subr.mxu0 0.0
    %3345 = vmatpush1.msra.mxu0 0.0
    %3346 = vmatprep.subr.mxu0 0.0
    %3347 = vmatpush1.msra.mxu0 0.0
    %3348 = vmatprep.subr.mxu0 0.0
    %3349 = vmatpush1.msra.mxu0 0.0
    %3350 = vmatprep.subr.mxu0 0.0
    %3351 = vmatpush1.msra.mxu0 0.0
    %3352 = vmatprep.subr.mxu0 0.0
    %3353 = vmatpush1.msra.mxu0 0.0
    %3354 = vmatprep.subr.mxu0 0.0
    %3355 = vmatpush1.msra.mxu0 0.0
    %3356 = vmatprep.subr.mxu0 0.0
    %3357 = vmatpush1.msra.mxu0 0.0
    %3358 = vmatprep.subr.mxu0 0.0
    %3359 = vmatpush1.msra.mxu0 0.0
    %3360 = vmatprep.subr.mxu0 0.0
    %3361 = vmatpush1.msra.mxu0 0.0
    %3362 = vmatprep.subr.mxu0 0.0
    %3363 = vmatpush1.msra.mxu0 0.0
    %3364 = vmatprep.subr.mxu0 0.0
    %3365 = vmatpush1.msra.mxu0 0.0
    %3366 = vmatprep.subr.mxu0 0.0
    %3367 = vmatpush1.msra.mxu0 0.0
    %3368 = vmatprep.subr.mxu0 0.0
    %3369 = vmatpush1.msra.mxu0 0.0
    %3370 = vmatprep.subr.mxu0 0.0
    %3371 = vmatpush1.msra.mxu0 0.0
    %3372 = vmatprep.subr.mxu0 0.0
    %3373 = vmatpush1.msra.mxu0 0.0
    %3374 = vmatprep.subr.mxu0 0.0
    %3375 = vmatpush1.msra.mxu0 0.0
    %3376 = vmatprep.subr.mxu0 0.0
    %3377 = vmatpush1.msra.mxu0 0.0
    %3378 = vmatprep.subr.mxu0 0.0
    %3379 = vmatpush1.msra.mxu0 0.0
    %3380 = vmatprep.subr.mxu0 0.0
    %3381 = vmatpush1.msra.mxu0 0.0
    %3382 = vmatprep.subr.mxu0 0.0
    %3383 = vmatpush1.msra.mxu0 0.0
    %3384 = vmatprep.subr.mxu0 0.0
    %3385 = vmatpush1.msra.mxu0 0.0
    %3386 = vmatprep.subr.mxu0 0.0
    %3387 = vmatpush1.msra.mxu0 0.0
    %3388 = vmatprep.subr.mxu0 0.0
    %3389 = vmatpush1.msra.mxu0 0.0
    %3390 = vmatprep.subr.mxu0 0.0
    %3391 = vmatpush1.msra.mxu0 0.0
    %3392 = vmatprep.subr.mxu0 0.0
    %3393 = vmatpush1.msra.mxu0 0.0
    %3394 = vmatprep.mubr.f32.mxu0 0.0
    %3395 = vmatmul.mubr.f32.gmra.mrb[0].mxu0 %v808
    %v3396 = vpop.f32.mrb[0].mxu0
    %v3397 = vadd.f32 0.0, %v3396
    %v3398 = vpop.f32.mrb[0].mxu0
    %3399 = vdwg.mxu0
    %3400 = vmatprep.subr.mxu0 0.0
    %3401 = vmatpush1.msra.mxu0 %v779
    %3402 = vmatprep.subr.mxu0 0.0
    %3403 = vmatpush1.msra.mxu0 %v784
    %3404 = vmatprep.subr.mxu0 0.0
    %3405 = vmatpush1.msra.mxu0 0.0
    %3406 = vmatprep.subr.mxu0 0.0
    %3407 = vmatpush1.msra.mxu0 0.0
    %3408 = vmatprep.subr.mxu0 0.0
    %3409 = vmatpush1.msra.mxu0 0.0
    %3410 = vmatprep.subr.mxu0 0.0
    %3411 = vmatpush1.msra.mxu0 0.0
    %3412 = vmatprep.subr.mxu0 0.0
    %3413 = vmatpush1.msra.mxu0 0.0
    %3414 = vmatprep.subr.mxu0 0.0
    %3415 = vmatpush1.msra.mxu0 0.0
    %3416 = vmatprep.subr.mxu0 0.0
    %3417 = vmatpush1.msra.mxu0 0.0
    %3418 = vmatprep.subr.mxu0 0.0
    %3419 = vmatpush1.msra.mxu0 0.0
    %3420 = vmatprep.subr.mxu0 0.0
    %3421 = vmatpush1.msra.mxu0 0.0
    %3422 = vmatprep.subr.mxu0 0.0
    %3423 = vmatpush1.msra.mxu0 0.0
    %3424 = vmatprep.subr.mxu0 0.0
    %3425 = vmatpush1.msra.mxu0 0.0
    %3426 = vmatprep.subr.mxu0 0.0
    %3427 = vmatpush1.msra.mxu0 0.0
    %3428 = vmatprep.subr.mxu0 0.0
    %3429 = vmatpush1.msra.mxu0 0.0
    %3430 = vmatprep.subr.mxu0 0.0
    %3431 = vmatpush1.msra.mxu0 0.0
    %3432 = vmatprep.subr.mxu0 0.0
    %3433 = vmatpush1.msra.mxu0 0.0
    %3434 = vmatprep.subr.mxu0 0.0
    %3435 = vmatpush1.msra.mxu0 0.0
    %3436 = vmatprep.subr.mxu0 0.0
    %3437 = vmatpush1.msra.mxu0 0.0
    %3438 = vmatprep.subr.mxu0 0.0
    %3439 = vmatpush1.msra.mxu0 0.0
    %3440 = vmatprep.subr.mxu0 0.0
    %3441 = vmatpush1.msra.mxu0 0.0
    %3442 = vmatprep.subr.mxu0 0.0
    %3443 = vmatpush1.msra.mxu0 0.0
    %3444 = vmatprep.subr.mxu0 0.0
    %3445 = vmatpush1.msra.mxu0 0.0
    %3446 = vmatprep.subr.mxu0 0.0
    %3447 = vmatpush1.msra.mxu0 0.0
    %3448 = vmatprep.subr.mxu0 0.0
    %3449 = vmatpush1.msra.mxu0 0.0
    %3450 = vmatprep.subr.mxu0 0.0
    %3451 = vmatpush1.msra.mxu0 0.0
    %3452 = vmatprep.subr.mxu0 0.0
    %3453 = vmatpush1.msra.mxu0 0.0
    %3454 = vmatprep.subr.mxu0 0.0
    %3455 = vmatpush1.msra.mxu0 0.0
    %3456 = vmatprep.subr.mxu0 0.0
    %3457 = vmatpush1.msra.mxu0 0.0
    %3458 = vmatprep.subr.mxu0 0.0
    %3459 = vmatpush1.msra.mxu0 0.0
    %3460 = vmatprep.subr.mxu0 0.0
    %3461 = vmatpush1.msra.mxu0 0.0
    %3462 = vmatprep.subr.mxu0 0.0
    %3463 = vmatpush1.msra.mxu0 0.0
    %3464 = vmatprep.mubr.f32.mxu0 0.0
    %3465 = vmatmul.mubr.f32.gmra.mrb[0].mxu0 %v808
    %v3466 = vpop.f32.mrb[0].mxu0
    %v3467 = vadd.f32 0.0, %v3466
    %v3468 = vpop.f32.mrb[0].mxu0
    %3469 = vdwg.mxu0
    %3470 = vmatprep.subr.mxu0 0.0
    %3471 = vmatpush1.msra.mxu0 %v789
    %3472 = vmatprep.subr.mxu0 0.0
    %3473 = vmatpush1.msra.mxu0 %v794
    %3474 = vmatprep.subr.mxu0 0.0
    %3475 = vmatpush1.msra.mxu0 0.0
    %3476 = vmatprep.subr.mxu0 0.0
    %3477 = vmatpush1.msra.mxu0 0.0
    %3478 = vmatprep.subr.mxu0 0.0
    %3479 = vmatpush1.msra.mxu0 0.0
    %3480 = vmatprep.subr.mxu0 0.0
    %3481 = vmatpush1.msra.mxu0 0.0
    %3482 = vmatprep.subr.mxu0 0.0
    %3483 = vmatpush1.msra.mxu0 0.0
    %3484 = vmatprep.subr.mxu0 0.0
    %3485 = vmatpush1.msra.mxu0 0.0
    %3486 = vmatprep.subr.mxu0 0.0
    %3487 = vmatpush1.msra.mxu0 0.0
    %3488 = vmatprep.subr.mxu0 0.0
    %3489 = vmatpush1.msra.mxu0 0.0
    %3490 = vmatprep.subr.mxu0 0.0
    %3491 = vmatpush1.msra.mxu0 0.0
    %3492 = vmatprep.subr.mxu0 0.0
    %3493 = vmatpush1.msra.mxu0 0.0
    %3494 = vmatprep.subr.mxu0 0.0
    %3495 = vmatpush1.msra.mxu0 0.0
    %3496 = vmatprep.subr.mxu0 0.0
    %3497 = vmatpush1.msra.mxu0 0.0
    %3498 = vmatprep.subr.mxu0 0.0
    %3499 = vmatpush1.msra.mxu0 0.0
    %3500 = vmatprep.subr.mxu0 0.0
    %3501 = vmatpush1.msra.mxu0 0.0
    %3502 = vmatprep.subr.mxu0 0.0
    %3503 = vmatpush1.msra.mxu0 0.0
    %3504 = vmatprep.subr.mxu0 0.0
    %3505 = vmatpush1.msra.mxu0 0.0
    %3506 = vmatprep.subr.mxu0 0.0
    %3507 = vmatpush1.msra.mxu0 0.0
    %3508 = vmatprep.subr.mxu0 0.0
    %3509 = vmatpush1.msra.mxu0 0.0
    %3510 = vmatprep.subr.mxu0 0.0
    %3511 = vmatpush1.msra.mxu0 0.0
    %3512 = vmatprep.subr.mxu0 0.0
    %3513 = vmatpush1.msra.mxu0 0.0
    %3514 = vmatprep.subr.mxu0 0.0
    %3515 = vmatpush1.msra.mxu0 0.0
    %3516 = vmatprep.subr.mxu0 0.0
    %3517 = vmatpush1.msra.mxu0 0.0
    %3518 = vmatprep.subr.mxu0 0.0
    %3519 = vmatpush1.msra.mxu0 0.0
    %3520 = vmatprep.subr.mxu0 0.0
    %3521 = vmatpush1.msra.mxu0 0.0
    %3522 = vmatprep.subr.mxu0 0.0
    %3523 = vmatpush1.msra.mxu0 0.0
    %3524 = vmatprep.subr.mxu0 0.0
    %3525 = vmatpush1.msra.mxu0 0.0
    %3526 = vmatprep.subr.mxu0 0.0
    %3527 = vmatpush1.msra.mxu0 0.0
    %3528 = vmatprep.subr.mxu0 0.0
    %3529 = vmatpush1.msra.mxu0 0.0
    %3530 = vmatprep.subr.mxu0 0.0
    %3531 = vmatpush1.msra.mxu0 0.0
    %3532 = vmatprep.subr.mxu0 0.0
    %3533 = vmatpush1.msra.mxu0 0.0
    %3534 = vmatprep.mubr.f32.mxu0 0.0
    %3535 = vmatmul.mubr.f32.gmra.mrb[0].mxu0 %v808
    %v3536 = vpop.f32.mrb[0].mxu0
    %v3537 = vadd.f32 0.0, %v3536
    %v3538 = vpop.f32.mrb[0].mxu0
    %3539 = vdwg.mxu0
    %3540 = vmatprep.subr.mxu0 0.0
    %3541 = vmatpush1.msra.mxu0 %v799
    %3542 = vmatprep.subr.mxu0 0.0
    %3543 = vmatpush1.msra.mxu0 %v804
    %3544 = vmatprep.subr.mxu0 0.0
    %3545 = vmatpush1.msra.mxu0 0.0
    %3546 = vmatprep.subr.mxu0 0.0
    %3547 = vmatpush1.msra.mxu0 0.0
    %3548 = vmatprep.subr.mxu0 0.0
    %3549 = vmatpush1.msra.mxu0 0.0
    %3550 = vmatprep.subr.mxu0 0.0
    %3551 = vmatpush1.msra.mxu0 0.0
    %3552 = vmatprep.subr.mxu0 0.0
    %3553 = vmatpush1.msra.mxu0 0.0
    %3554 = vmatprep.subr.mxu0 0.0
    %3555 = vmatpush1.msra.mxu0 0.0
    %3556 = vmatprep.subr.mxu0 0.0
    %3557 = vmatpush1.msra.mxu0 0.0
    %3558 = vmatprep.subr.mxu0 0.0
    %3559 = vmatpush1.msra.mxu0 0.0
    %3560 = vmatprep.subr.mxu0 0.0
    %3561 = vmatpush1.msra.mxu0 0.0
    %3562 = vmatprep.subr.mxu0 0.0
    %3563 = vmatpush1.msra.mxu0 0.0
    %3564 = vmatprep.subr.mxu0 0.0
    %3565 = vmatpush1.msra.mxu0 0.0
    %3566 = vmatprep.subr.mxu0 0.0
    %3567 = vmatpush1.msra.mxu0 0.0
    %3568 = vmatprep.subr.mxu0 0.0
    %3569 = vmatpush1.msra.mxu0 0.0
    %3570 = vmatprep.subr.mxu0 0.0
    %3571 = vmatpush1.msra.mxu0 0.0
    %3572 = vmatprep.subr.mxu0 0.0
    %3573 = vmatpush1.msra.mxu0 0.0
    %3574 = vmatprep.subr.mxu0 0.0
    %3575 = vmatpush1.msra.mxu0 0.0
    %3576 = vmatprep.subr.mxu0 0.0
    %3577 = vmatpush1.msra.mxu0 0.0
    %3578 = vmatprep.subr.mxu0 0.0
    %3579 = vmatpush1.msra.mxu0 0.0
    %3580 = vmatprep.subr.mxu0 0.0
    %3581 = vmatpush1.msra.mxu0 0.0
    %3582 = vmatprep.subr.mxu0 0.0
    %3583 = vmatpush1.msra.mxu0 0.0
    %3584 = vmatprep.subr.mxu0 0.0
    %3585 = vmatpush1.msra.mxu0 0.0
    %3586 = vmatprep.subr.mxu0 0.0
    %3587 = vmatpush1.msra.mxu0 0.0
    %3588 = vmatprep.subr.mxu0 0.0
    %3589 = vmatpush1.msra.mxu0 0.0
    %3590 = vmatprep.subr.mxu0 0.0
    %3591 = vmatpush1.msra.mxu0 0.0
    %3592 = vmatprep.subr.mxu0 0.0
    %3593 = vmatpush1.msra.mxu0 0.0
    %3594 = vmatprep.subr.mxu0 0.0
    %3595 = vmatpush1.msra.mxu0 0.0
    %3596 = vmatprep.subr.mxu0 0.0
    %3597 = vmatpush1.msra.mxu0 0.0
    %3598 = vmatprep.subr.mxu0 0.0
    %3599 = vmatpush1.msra.mxu0 0.0
    %3600 = vmatprep.subr.mxu0 0.0
    %3601 = vmatpush1.msra.mxu0 0.0
    %3602 = vmatprep.subr.mxu0 0.0
    %3603 = vmatpush1.msra.mxu0 0.0
    %3604 = vmatprep.mubr.f32.mxu0 0.0
    %3605 = vmatmul.mubr.f32.gmra.mrb[0].mxu0 %v808
    %v3606 = vpop.f32.mrb[0].mxu0
    %v3607 = vadd.f32 0.0, %v3606
    %v3608 = vpop.f32.mrb[0].mxu0
    %3609 = vdwg.mxu0
    %v3610 = vmul.f32 %v877, %v877
    %v3611 = vmul.f32 %v947, %v947
    %v3612 = vmul.f32 %v1017, %v1017
    %v3613 = vmul.f32 %v1087, %v1087
    %v3614 = vmul.f32 %v1157, %v1157
    %v3615 = vmul.f32 %v1227, %v1227
    %v3616 = vmul.f32 %v1297, %v1297
    %v3617 = vmul.f32 %v1367, %v1367
    %v3618 = vsub.f32 %v1997, %v3610
    %v3619 = vsub.f32 %v2067, %v3611
    %v3620 = vsub.f32 %v2137, %v3612
    %v3621 = vsub.f32 %v2207, %v3613
    %v3622 = vsub.f32 %v2277, %v3614
    %v3623 = vsub.f32 %v2347, %v3615
    %v3624 = vsub.f32 %v2417, %v3616
    %v3625 = vsub.f32 %v2487, %v3617
    %v3626 = vmul.f32 %v1437, %v1437
    %v3627 = vmul.f32 %v1507, %v1507
    %v3628 = vmul.f32 %v1577, %v1577
    %v3629 = vmul.f32 %v1647, %v1647
    %v3630 = vmul.f32 %v1717, %v1717
    %v3631 = vmul.f32 %v1787, %v1787
    %v3632 = vmul.f32 %v1857, %v1857
    %v3633 = vmul.f32 %v1927, %v1927
    %v3634 = vsub.f32 %v2557, %v3626
    %v3635 = vsub.f32 %v2627, %v3627
    %v3636 = vsub.f32 %v2697, %v3628
    %v3637 = vsub.f32 %v2767, %v3629
    %v3638 = vsub.f32 %v2837, %v3630
    %v3639 = vsub.f32 %v2907, %v3631
    %v3640 = vsub.f32 %v2977, %v3632
    %v3641 = vsub.f32 %v3047, %v3633
    %v3642 = vmul.f32 %v877, %v1437
    %v3643 = vmul.f32 %v947, %v1507
    %v3644 = vmul.f32 %v1017, %v1577
    %v3645 = vmul.f32 %v1087, %v1647
    %v3646 = vmul.f32 %v1157, %v1717
    %v3647 = vmul.f32 %v1227, %v1787
    %v3648 = vmul.f32 %v1297, %v1857
    %v3649 = vmul.f32 %v1367, %v1927
    %v3650 = vsub.f32 %v3117, %v3642
    %v3651 = vsub.f32 %v3187, %v3643
    %v3652 = vsub.f32 %v3257, %v3644
    %v3653 = vsub.f32 %v3327, %v3645
    %v3654 = vsub.f32 %v3397, %v3646
    %v3655 = vsub.f32 %v3467, %v3647
    %v3656 = vsub.f32 %v3537, %v3648
    %v3657 = vsub.f32 %v3607, %v3649
    %v3658 = vmul.f32 %v877, 2.0
    %v3659 = vmul.f32 %v947, 2.0
    %v3660 = vmul.f32 %v1017, 2.0
    %v3661 = vmul.f32 %v1087, 2.0
    %v3662 = vmul.f32 %v1157, 2.0
    %v3663 = vmul.f32 %v1227, 2.0
    %v3664 = vmul.f32 %v1297, 2.0
    %v3665 = vmul.f32 %v1367, 2.0
    %v3666 = vmul.f32 %v3658, %v1437
    %v3667 = vmul.f32 %v3659, %v1507
    %v3668 = vmul.f32 %v3660, %v1577
    %v3669 = vmul.f32 %v3661, %v1647
    %v3670 = vmul.f32 %v3662, %v1717
    %v3671 = vmul.f32 %v3663, %v1787
    %v3672 = vmul.f32 %v3664, %v1857
    %v3673 = vmul.f32 %v3665, %v1927
    %v3674 = vadd.f32 %v3666, 0.0001
    %v3675 = vadd.f32 %v3667, 0.0001
    %v3676 = vadd.f32 %v3668, 0.0001
    %v3677 = vadd.f32 %v3669, 0.0001
    %v3678 = vadd.f32 %v3670, 0.0001
    %v3679 = vadd.f32 %v3671, 0.0001
    %v3680 = vadd.f32 %v3672, 0.0001
    %v3681 = vadd.f32 %v3673, 0.0001
    %v3682 = vmul.f32 %v3650, 2.0
    %v3683 = vmul.f32 %v3651, 2.0
    %v3684 = vmul.f32 %v3652, 2.0
    %v3685 = vmul.f32 %v3653, 2.0
    %v3686 = vmul.f32 %v3654, 2.0
    %v3687 = vmul.f32 %v3655, 2.0
    %v3688 = vmul.f32 %v3656, 2.0
    %v3689 = vmul.f32 %v3657, 2.0
    %v3690 = vadd.f32 %v3682, 0.0009
    %v3691 = vadd.f32 %v3683, 0.0009
    %v3692 = vadd.f32 %v3684, 0.0009
    %v3693 = vadd.f32 %v3685, 0.0009
    %v3694 = vadd.f32 %v3686, 0.0009
    %v3695 = vadd.f32 %v3687, 0.0009
    %v3696 = vadd.f32 %v3688, 0.0009
    %v3697 = vadd.f32 %v3689, 0.0009
    %v3698 = vmul.f32 %v3674, %v3690
    %v3699 = vmul.f32 %v3675, %v3691
    %v3700 = vmul.f32 %v3676, %v3692
    %v3701 = vmul.f32 %v3677, %v3693
    %v3702 = vmul.f32 %v3678, %v3694
    %v3703 = vmul.f32 %v3679, %v3695
    %v3704 = vmul.f32 %v3680, %v3696
    %v3705 = vmul.f32 %v3681, %v3697
    %v3706 = vadd.f32 %v3610, %v3626
    %v3707 = vadd.f32 %v3611, %v3627
    %v3708 = vadd.f32 %v3612, %v3628
    %v3709 = vadd.f32 %v3613, %v3629
    %v3710 = vadd.f32 %v3614, %v3630
    %v3711 = vadd.f32 %v3615, %v3631
    %v3712 = vadd.f32 %v3616, %v3632
    %v3713 = vadd.f32 %v3617, %v3633
    %v3714 = vadd.f32 %v3706, 0.0001
    %v3715 = vadd.f32 %v3707, 0.0001
    %v3716 = vadd.f32 %v3708, 0.0001
    %v3717 = vadd.f32 %v3709, 0.0001
    %v3718 = vadd.f32 %v3710, 0.0001
    %v3719 = vadd.f32 %v3711, 0.0001
    %v3720 = vadd.f32 %v3712, 0.0001
    %v3721 = vadd.f32 %v3713, 0.0001
    %v3722 = vadd.f32 %v3618, %v3634
    %v3723 = vadd.f32 %v3619, %v3635
    %v3724 = vadd.f32 %v3620, %v3636
    %v3725 = vadd.f32 %v3621, %v3637
    %v3726 = vadd.f32 %v3622, %v3638
    %v3727 = vadd.f32 %v3623, %v3639
    %v3728 = vadd.f32 %v3624, %v3640
    %v3729 = vadd.f32 %v3625, %v3641
    %v3730 = vadd.f32 %v3722, 0.0009
    %v3731 = vadd.f32 %v3723, 0.0009
    %v3732 = vadd.f32 %v3724, 0.0009
    %v3733 = vadd.f32 %v3725, 0.0009
    %v3734 = vadd.f32 %v3726, 0.0009
    %v3735 = vadd.f32 %v3727, 0.0009
    %v3736 = vadd.f32 %v3728, 0.0009
    %v3737 = vadd.f32 %v3729, 0.0009
    %v3738 = vmul.f32 %v3714, %v3730
    %v3739 = vmul.f32 %v3715, %v3731
    %v3740 = vmul.f32 %v3716, %v3732
    %v3741 = vmul.f32 %v3717, %v3733
    %v3742 = vmul.f32 %v3718, %v3734
    %v3743 = vmul.f32 %v3719, %v3735
    %v3744 = vmul.f32 %v3720, %v3736
    %v3745 = vmul.f32 %v3721, %v3737
    %v3746 = vrcp.pop %v3738
    %v3747 = vrcp.pop %v3739
    %v3748 = vrcp.pop %v3740
    %v3749 = vrcp.pop %v3741
    %v3750 = vrcp.pop %v3742
    %v3751 = vrcp.pop %v3743
    %v3752 = vrcp.pop %v3744
    %v3753 = vrcp.pop %v3745
    %v3754 = vmul.f32 %v3698, %v3746
    %v3755 = vmul.f32 %v3699, %v3747
    %v3756 = vmul.f32 %v3700, %v3748
    %v3757 = vmul.f32 %v3701, %v3749
    %v3758 = vmul.f32 %v3702, %v3750
    %v3759 = vmul.f32 %v3703, %v3751
    %v3760 = vmul.f32 %v3704, %v3752
    %v3761 = vmul.f32 %v3705, %v3753
    %vm3762 = vcmask 46080
    %v3763 = vsel %vm3762, %v3754, 0.0
    %v3764 = vsel %vm3762, %v3755, 0.0
    %v3765 = vadd.f32 %v3763, %v3764
    %v3766 = vsel %vm3762, %v3756, 0.0
    %v3767 = vadd.f32 %v3765, %v3766
    %v3768 = vsel %vm3762, %v3757, 0.0
    %v3769 = vadd.f32 %v3767, %v3768
    %v3770 = vsel %vm3762, %v3758, 0.0
    %v3771 = vadd.f32 %v3769, %v3770
    %v3772 = vsel %vm3762, %v3759, 0.0
    %v3773 = vadd.f32 %v3771, %v3772
    %v3774 = vsel %vm3762, %v3760, 0.0
    %v3775 = vadd.f32 %v3773, %v3774
    %v3776 = vsel %vm3762, %v3761, 0.0
    %v3777 = vadd.f32 %v3775, %v3776
    %v3778 = vsel %vm3762, %v3777, 0.0
    %3779 = vadd.xlane.f32.xlu0 %v3778
    %v3780 = vpop.xlane.xlu0 %3779
    %v3781 = vrot.slane %v3780, 4
    %v3782 = vadd.f32 %v3780, %v3781
    %v3783 = vrot.slane %v3782, 2
    %v3784 = vadd.f32 %v3782, %v3783
    %v3785 = vrot.slane %v3784, 1
    %v3786 = vadd.f32 %v3784, %v3785
    %s3787 = vtos %v3786
    %v3788 = vstv %s3787
    %v3789 = vadd.f32 %v3788, 0.0
    %vm3790 = vcmask 0
    %3791 = vst.msk [vmem:[#allocation2] sm:$0x1] %vm3790, %v3789
    // Predicated region
    $region18: #{tpu_custom_call.1} parent=1 // pred_check
      _
    $region19: #{tpu_custom_call.1} parent=1 // pred_check_branch
      %3793 = sbr.rel (0) target = $region21
    $region20: #{tpu_custom_call.1} parent=1 // pred_region
      %s3795 = ssub.s32 16, 16
      %3796 = vsyncadd [#allocation3], %s3795
      %s3798 = sshll.u32 [#allocation2], 4
      %s3799 = int_to_ptr.vmem [resolvable:$true] %s3798
      %3801 = dma.vmem_to_hbm [thread:$0]  %s3799, 16, %s4, [#allocation3]
    $region21: #{tpu_custom_call.1} parent=1 // pred_fallthru
      _
    // Predicated region
    $region22: #{tpu_custom_call.1} parent=1 // pred_check
      _
    $region23: #{tpu_custom_call.1} parent=1 // pred_check_branch
      %3803 = sbr.rel (0) target = $region25
    $region24: #{tpu_custom_call.1} parent=1 // pred_region
      %3804 = dma.done [#allocation3], 16
    $region25: #{tpu_custom_call.1} parent=1 // pred_fallthru
      _
    %3805 = vsyncpa [#allocation3], 1

</llo_original>
